<compile_context>
chip_gen: v6e
topology: v6e:2x2x1
jax: 0.10.0
libtpu: 0.0.40
codegen_flags: <defaults>
</compile_context>

<pallas_src>
import functools

import jax
import jax.numpy as jnp
from jax.experimental import pallas as pl
from jax.experimental.pallas import tpu as pltpu

NEG_SLOPE = 0.2
BN_EPS = 1e-5
FUSED_MAX_ROWS = 256          # use the single fused kernel when B*n_views <= this


def _leaky_relu(x):
    return jnp.where(x > 0, x, NEG_SLOPE * x)


def _pick_lane_tile(n):
    """Largest lane tile dividing n (n is a multiple of 128), preferring >=2 tiles."""
    split = [t for t in (2048, 1024, 512, 256, 128) if n % t == 0 and n // t >= 2]
    if split:
        return max(split)
    return n


def _pick_row_tile(m, max_tile=2048):
    """Largest row tile (multiple of 8, <= max_tile) dividing m, preferring a grid
    of >= 2 tiles so v7x's two TensorCores both get work.  max_tile=2048 keeps the
    double-buffered live set at D=512 well under the 32 MiB scoped-VMEM default."""
    divs = [t for t in range(8, min(max_tile, m) + 1, 8) if m % t == 0]
    if not divs:
        raise ValueError(
            f"tiled path needs B*n_views (= {m}) to be a multiple of 8; "
            "pad the batch or stay on the fused path")
    split = [t for t in divs if m // t >= 2]
    if split and max(split) >= 256:
        return max(split)
    return max(divs)


# ----------------------------------------------------------------------------
# Kernel 1: R MLP (hoisted out of the k-loop), lane-major layout.
#   Input [10, M*k] (rows on the 128-lane axis), Linear(10,10)+LeakyReLU x2,
#   Linear(10,1)  -> lane-dense [1, M*k] per-neighbor scalar weights.
# ----------------------------------------------------------------------------
def r_mlp_kernel(x_ref, w1t_ref, b1_ref, w2t_ref, b2_ref, w3_ref, b3_ref, o_ref):
    x = x_ref[...]                                                    # [10, T]
    h = _leaky_relu(jnp.dot(w1t_ref[...], x,
                            preferred_element_type=jnp.float32) + b1_ref[...])
    h = _leaky_relu(jnp.dot(w2t_ref[...], h,
                            preferred_element_type=jnp.float32) + b2_ref[...])
    o_ref[...] = (jnp.dot(w3_ref[...], h,
                          preferred_element_type=jnp.float32) + b3_ref[0, 0])


def r_mlp(vf_t, r_params):
    """vf_t: [10, Mk] lane-major geometric features -> [Mk] scalar weights."""
    w1t, b1c, w2t, b2c, w3, b3 = r_params
    mk = vf_t.shape[1]
    mk_pad = ((mk + 127) // 128) * 128
    if mk_pad != mk:
        vf_t = jnp.pad(vf_t, ((0, 0), (0, mk_pad - mk)))
    t = _pick_lane_tile(mk_pad)
    g = mk_pad // t
    out = pl.pallas_call(
        r_mlp_kernel,
        out_shape=jax.ShapeDtypeStruct((1, mk_pad), jnp.float32),
        grid=(g,),
        in_specs=[
            pl.BlockSpec((10, t), lambda i: (0, i)),
            pl.BlockSpec((10, 10), lambda i: (0, 0)),
            pl.BlockSpec((10, 1), lambda i: (0, 0)),
            pl.BlockSpec((10, 10), lambda i: (0, 0)),
            pl.BlockSpec((10, 1), lambda i: (0, 0)),
            pl.BlockSpec((1, 10), lambda i: (0, 0)),
            pl.BlockSpec(memory_space=pltpu.MemorySpace.SMEM),   # scalar bias
        ],
        out_specs=pl.BlockSpec((1, t), lambda i: (0, i)),
        compiler_params=pltpu.CompilerParams(
            dimension_semantics=("parallel",)),
    )(vf_t, w1t, b1c, w2t, b2c, w3, b3)
    return out[0, :mk]


# ----------------------------------------------------------------------------
# Kernel 2 (small-M fast path): the whole GAT body in ONE VMEM-resident call.
#   F1 = A @ F, conv#1 (Linear+BN+LeakyReLU), attention MLP, per-view softmax
#   (same-batch mask, lane-major logits), rescale, conv#2 (shared weights/BN).
# ----------------------------------------------------------------------------
def fused_gat_kernel(a_ref, seg_ref, f_ref, wc_ref, bc_ref, gamma_ref, beta_ref,
                     wa1_ref, ba1_ref, wa2_ref, ba2_ref, o_ref):
    m = a_ref.shape[0]
    inv_m = 1.0 / m

    # (1) KNN aggregation: F1 = A @ F  (A = block-diagonal per-batch weights).
    f1 = jnp.dot(a_ref[...], f_ref[...], preferred_element_type=jnp.float32)

    # (2) conv #1: Linear (bf16 MXU, f32 acc) + BatchNorm (batch stats) + LeakyReLU.
    y1 = jnp.dot(f1.astype(jnp.bfloat16), wc_ref[...],
                 preferred_element_type=jnp.float32) + bc_ref[...]
    mean1 = jnp.sum(y1, axis=0, keepdims=True) * inv_m
    var1 = jnp.maximum(jnp.sum(y1 * y1, axis=0, keepdims=True) * inv_m
                       - mean1 * mean1, 0.0)
    scale1 = gamma_ref[...] * jax.lax.rsqrt(var1 + BN_EPS)
    f2 = _leaky_relu(y1 * scale1 + (beta_ref[...] - mean1 * scale1))

    # (3) attention MLP; logits produced lane-major [1, M] directly (no narrow
    #     masked stores, no [M,1]->[1,M] relayout needed for the softmax).
    h = _leaky_relu(jnp.dot(f2.astype(jnp.bfloat16), wa1_ref[...],
                            preferred_element_type=jnp.float32) + ba1_ref[...])
    z = (jnp.einsum('od,md->om', wa2_ref[...], h,
                    preferred_element_type=jnp.float32) + ba2_ref[0, 0])   # [1, M]

    # (4) softmax over the views of each batch via the same-batch mask `seg`.
    seg = seg_ref[...]
    zc = jnp.broadcast_to(z, (m, m))                          # zc[i, j] = z[j]
    zmax = jnp.max(jnp.where(seg > 0, zc, -1e30), axis=-1, keepdims=True)
    e = jnp.where(seg > 0, jnp.exp(zc - zmax), 0.0)
    denom = jnp.sum(e, axis=-1, keepdims=True)
    eye = (jax.lax.broadcasted_iota(jnp.int32, (m, m), 0)
           == jax.lax.broadcasted_iota(jnp.int32, (m, m), 1))
    numer = jnp.sum(jnp.where(eye, e, 0.0), axis=-1, keepdims=True)
    attn = numer / denom                                      # [M, 1]

    # (5) attention rescale + conv #2 (shared Linear/BN params, fresh batch stats).
    y2 = jnp.dot((f2 * attn).astype(jnp.bfloat16), wc_ref[...],
                 preferred_element_type=jnp.float32) + bc_ref[...]
    mean2 = jnp.sum(y2, axis=0, keepdims=True) * inv_m
    var2 = jnp.maximum(jnp.sum(y2 * y2, axis=0, keepdims=True) * inv_m
                       - mean2 * mean2, 0.0)
    scale2 = gamma_ref[...] * jax.lax.rsqrt(var2 + BN_EPS)
    o_ref[...] = _leaky_relu(y2 * scale2 + (beta_ref[...] - mean2 * scale2))


def fused_gat(a_dense, seg, f_flat, conv_params, attn_params):
    Wc_bf, bc, gamma, beta = conv_params
    Wa1_bf, ba1, wa2, ba2 = attn_params
    m, d = f_flat.shape
    return pl.pallas_call(
        fused_gat_kernel,
        out_shape=jax.ShapeDtypeStruct((m, d), jnp.float32),
        grid=(1,),
        in_specs=[
            pl.BlockSpec((m, m), lambda i: (0, 0)),   # A (block-diag aggregation)
            pl.BlockSpec((m, m), lambda i: (0, 0)),   # same-batch mask
            pl.BlockSpec((m, d), lambda i: (0, 0)),   # F
            pl.BlockSpec((d, d), lambda i: (0, 0)),   # conv W (bf16)
            pl.BlockSpec((1, d), lambda i: (0, 0)),   # conv b
            pl.BlockSpec((1, d), lambda i: (0, 0)),   # BN gamma
            pl.BlockSpec((1, d), lambda i: (0, 0)),   # BN beta
            pl.BlockSpec((d, d), lambda i: (0, 0)),   # attn W1 (bf16)
            pl.BlockSpec((1, d), lambda i: (0, 0)),   # attn b1
            pl.BlockSpec((1, d), lambda i: (0, 0)),   # attn w2
            pl.BlockSpec(memory_space=pltpu.MemorySpace.SMEM),   # attn b2 scalar
        ],
        out_specs=pl.BlockSpec((m, d), lambda i: (0, 0)),
        compiler_params=pltpu.CompilerParams(
            dimension_semantics=("arbitrary",)),
    )(a_dense, seg, f_flat, Wc_bf, bc, gamma, beta, Wa1_bf, ba1, wa2, ba2)


# ----------------------------------------------------------------------------
# Large-M tiled path (kernels 3-7): flat over M, bf16 intermediates, lane-dense
# logits, Buffered(1) constant operands, 'parallel' row tiles.
# ----------------------------------------------------------------------------
def agg_kernel(a_ref, f_ref, o_ref):
    o_ref[0] = jnp.dot(a_ref[0], f_ref[0],
                       preferred_element_type=jnp.float32).astype(o_ref.dtype)


def knn_aggregate_dense(a, f):
    b, n, d = f.shape
    return pl.pallas_call(
        agg_kernel,
        out_shape=jax.ShapeDtypeStruct((b, n, d), jnp.bfloat16),
        grid=(b,),
        in_specs=[
            pl.BlockSpec((1, n, n), lambda i: (i, 0, 0)),
            pl.BlockSpec((1, n, d), lambda i: (i, 0, 0)),
        ],
        out_specs=pl.BlockSpec((1, n, d), lambda i: (i, 0, 0)),
        compiler_params=pltpu.CompilerParams(
            dimension_semantics=("parallel",)),
    )(a, f)


def linear_bn_stats_kernel(x_ref, w_ref, b_ref, y_ref, psum_ref, psq_ref):
    y = jnp.dot(x_ref[...], w_ref[...],
                preferred_element_type=jnp.float32) + b_ref[...]
    y_ref[...] = y.astype(y_ref.dtype)                               # bf16 out
    psum_ref[0] = jnp.sum(y, axis=0, keepdims=True)
    psq_ref[0] = jnp.sum(y * y, axis=0, keepdims=True)


def linear_bn_stats(x, w_bf16, b, tm):
    m, d = x.shape
    g = m // tm
    const = dict(pipeline_mode=pl.Buffered(1))        # grid-invariant operands
    return pl.pallas_call(
        linear_bn_stats_kernel,
        out_shape=(jax.ShapeDtypeStruct((m, d), jnp.bfloat16),
                   jax.ShapeDtypeStruct((g, 1, d), jnp.float32),
                   jax.ShapeDtypeStruct((g, 1, d), jnp.float32)),
        grid=(g,),
        in_specs=[
            pl.BlockSpec((tm, d), lambda i: (i, 0)),
            pl.BlockSpec((d, d), lambda i: (0, 0), **const),
            pl.BlockSpec((1, d), lambda i: (0, 0), **const),
        ],
        out_specs=(pl.BlockSpec((tm, d), lambda i: (i, 0)),
                   pl.BlockSpec((1, 1, d), lambda i: (i, 0, 0)),
                   pl.BlockSpec((1, 1, d), lambda i: (i, 0, 0))),
        compiler_params=pltpu.CompilerParams(
            dimension_semantics=("parallel",)),
    )(x, w_bf16, b)


def bn_attention_kernel(y_ref, scale_ref, shift_ref, w1_ref, b1_ref,
                        w2_ref, b2_ref, f2_ref, logit_ref):
    f2 = _leaky_relu(y_ref[...].astype(jnp.float32) * scale_ref[...]
                     + shift_ref[...])                               # [TM, D]
    f2_ref[...] = f2.astype(f2_ref.dtype)                            # bf16 out
    h = _leaky_relu(jnp.dot(f2.astype(jnp.bfloat16), w1_ref[...],
                            preferred_element_type=jnp.float32) + b1_ref[...])
    # logits lane-major [1, TM] -> dense vst instead of masked [TM,1] stores
    logit_ref[0] = (jnp.einsum('od,md->om', w2_ref[...], h,
                               preferred_element_type=jnp.float32) + b2_ref[0, 0])


def bn_attention(y, scale, shift, w1_bf16, b1, w2, b2, tm):
    m, d = y.shape
    g = m // tm
    const = dict(pipeline_mode=pl.Buffered(1))
    return pl.pallas_call(
        bn_attention_kernel,
        out_shape=(jax.ShapeDtypeStruct((m, d), jnp.bfloat16),
                   jax.ShapeDtypeStruct((g, 1, tm), jnp.float32)),
        grid=(g,),
        in_specs=[
            pl.BlockSpec((tm, d), lambda i: (i, 0)),
            pl.BlockSpec((1, d), lambda i: (0, 0), **const),
            pl.BlockSpec((1, d), lambda i: (0, 0), **const),
            pl.BlockSpec((d, d), lambda i: (0, 0), **const),
            pl.BlockSpec((1, d), lambda i: (0, 0), **const),
            pl.BlockSpec((1, d), lambda i: (0, 0), **const),
            pl.BlockSpec(memory_space=pltpu.MemorySpace.SMEM),   # scalar bias
        ],
        out_specs=(pl.BlockSpec((tm, d), lambda i: (i, 0)),
                   pl.BlockSpec((1, 1, tm), lambda i: (i, 0, 0))),
        compiler_params=pltpu.CompilerParams(
            dimension_semantics=("parallel",)),
    )(y, scale, shift, w1_bf16, b1, w2, b2)


def scale_linear_bn_stats_kernel(f2_ref, attn_ref, w_ref, b_ref,
                                 y_ref, psum_ref, psq_ref):
    f3 = (f2_ref[...].astype(jnp.float32) * attn_ref[...]).astype(jnp.bfloat16)
    y = jnp.dot(f3, w_ref[...], preferred_element_type=jnp.float32) + b_ref[...]
    y_ref[...] = y.astype(y_ref.dtype)
    psum_ref[0] = jnp.sum(y, axis=0, keepdims=True)
    psq_ref[0] = jnp.sum(y * y, axis=0, keepdims=True)


def scale_linear_bn_stats(f2, attn, w_bf16, b, tm):
    m, d = f2.shape
    g = m // tm
    const = dict(pipeline_mode=pl.Buffered(1))
    return pl.pallas_call(
        scale_linear_bn_stats_kernel,
        out_shape=(jax.ShapeDtypeStruct((m, d), jnp.bfloat16),
                   jax.ShapeDtypeStruct((g, 1, d), jnp.float32),
                   jax.ShapeDtypeStruct((g, 1, d), jnp.float32)),
        grid=(g,),
        in_specs=[
            pl.BlockSpec((tm, d), lambda i: (i, 0)),
            pl.BlockSpec((tm, 1), lambda i: (i, 0)),
            pl.BlockSpec((d, d), lambda i: (0, 0), **const),
            pl.BlockSpec((1, d), lambda i: (0, 0), **const),
        ],
        out_specs=(pl.BlockSpec((tm, d), lambda i: (i, 0)),
                   pl.BlockSpec((1, 1, d), lambda i: (i, 0, 0)),
                   pl.BlockSpec((1, 1, d), lambda i: (i, 0, 0))),
        compiler_params=pltpu.CompilerParams(
            dimension_semantics=("parallel",)),
    )(f2, attn, w_bf16, b)


def bn_act_kernel(y_ref, scale_ref, shift_ref, o_ref):
    o_ref[...] = _leaky_relu(y_ref[...].astype(jnp.float32) * scale_ref[...]
                             + shift_ref[...])


def bn_act(y, scale, shift, tm):
    m, d = y.shape
    g = m // tm
    const = dict(pipeline_mode=pl.Buffered(1))
    return pl.pallas_call(
        bn_act_kernel,
        out_shape=jax.ShapeDtypeStruct((m, d), jnp.float32),
        grid=(g,),
        in_specs=[
            pl.BlockSpec((tm, d), lambda i: (i, 0)),
            pl.BlockSpec((1, d), lambda i: (0, 0), **const),
            pl.BlockSpec((1, d), lambda i: (0, 0), **const),
        ],
        out_specs=pl.BlockSpec((tm, d), lambda i: (i, 0)),
        compiler_params=pltpu.CompilerParams(
            dimension_semantics=("parallel",)),
    )(y, scale, shift)


# ----------------------------------------------------------------------------
# Plain-JAX glue: k-NN selection, tiny coordinate gather, BN affine finish.
# ----------------------------------------------------------------------------
def square_distance(src, dst):
    dist = -2.0 * jnp.einsum('bnc,bmc->bnm', src, dst)
    dist = dist + jnp.sum(src * src, axis=-1)[:, :, None]
    dist = dist + jnp.sum(dst * dst, axis=-1)[:, None, :]
    return dist


def knn_idx(k, xyz, new_xyz):
    # TODO(synk): top-k neighbor selection has no clean Pallas equivalent; use lax.top_k.
    dist = square_distance(xyz, new_xyz)            # [B, N, M]
    neg = -jnp.transpose(dist, (0, 2, 1))           # [B, M, N]
    _, idx = jax.lax.top_k(neg, k)                  # k smallest distances
    return idx                                      # [B, M, k]


def index_points(points, idx):
    # points [B, N, C], idx [B, S, k] -> [B, S, k, C]  (only used for 3-D coords)
    return jax.vmap(lambda p, i: p[i])(points, idx)


def _bn_affine(psum, psq, m, gamma, beta):
    mean = jnp.sum(psum, axis=0) / m                                  # [1, D]
    var = jnp.maximum(jnp.sum(psq, axis=0) / m - mean * mean, 0.0)    # biased
    scale = gamma * jax.lax.rsqrt(var + BN_EPS)
    shift = beta - mean * scale
    return scale, shift


# ----------------------------------------------------------------------------
# Full forward pass (BatchNorm in training mode, like the nn.Module default).
# ----------------------------------------------------------------------------
@functools.partial(jax.jit, static_argnums=(3,))
def graph_attention_forward(F, V, params, k):
    B, N, D = F.shape
    M = B * N

    Wc_bf, bc, gamma, beta = params['conv']
    Wa1_bf, ba1, wa2, ba2 = params['attn']

    # --- KNN_dist: geometric features + per-neighbor scalar weights ---------
    idx = knn_idx(k, V, V)                               # [B, N, k]
    v = index_points(V, idx)                             # [B, N, k, 3]
    v0 = jnp.broadcast_to(v[:, :, :1, :], v.shape)
    diff = v0 - v
    norm = jnp.sqrt(jnp.sum(diff * diff, axis=-1, keepdims=True))
    vF = jnp.concatenate([v0, v, diff, norm], axis=-1)   # [B, N, k, 10]
    w = r_mlp(vF.reshape(M * k, 10).T, params['R'])      # [M*k]
    w = w.reshape(B, N, k)

    F_flat = F.reshape(M, D)

    if M <= FUSED_MAX_ROWS:
        # Single fused kernel: build the tiny block-diagonal aggregation matrix
        # and the same-batch softmax mask, everything else runs VMEM-resident.
        # TODO(synk): data-dependent scatter of w into A stays in plain JAX.
        gidx = (idx + jnp.arange(B, dtype=idx.dtype)[:, None, None] * N).reshape(M, k)
        a_dense = jnp.einsum('mk,mkn->mn', w.reshape(M, k),
                             jax.nn.one_hot(gidx, M, dtype=jnp.float32))   # [M, M]
        rows = jnp.arange(M) // N
        seg = (rows[:, None] == rows[None, :]).astype(jnp.float32)
        F4 = fused_gat(a_dense, seg, F_flat,
                       (Wc_bf, bc, gamma, beta), (Wa1_bf, ba1, wa2, ba2))
    else:
        # Tiled multi-kernel path: flat over M, bf16 intermediates, two-pass BN.
        A = jnp.sum(w[..., None] * jax.nn.one_hot(idx, N, dtype=jnp.float32),
                    axis=2)                              # [B, N, N]
        F1 = knn_aggregate_dense(A, F).reshape(M, D)     # bf16 [M, D]
        tm = _pick_row_tile(M)
        Y1, ps1, pq1 = linear_bn_stats(F1, Wc_bf, bc, tm)
        scale1, shift1 = _bn_affine(ps1, pq1, M, gamma, beta)
        F2, logits = bn_attention(Y1, scale1, shift1, Wa1_bf, ba1, wa2, ba2, tm)
        attn = jax.nn.softmax(logits.reshape(B, N), axis=-1).reshape(M, 1)
        Y2, ps2, pq2 = scale_linear_bn_stats(F2, attn, Wc_bf, bc, tm)
        scale2, shift2 = _bn_affine(ps2, pq2, M, gamma, beta)
        F4 = bn_act(Y2, scale2, shift2, tm)

    return F4.reshape(B, N, D)


# ----------------------------------------------------------------------------
# Deterministic parameter init (PyTorch-Linear-like uniform; BN gamma=1, beta=0)
# and one-time (outside-jit) layout preparation.
# ----------------------------------------------------------------------------
def _linear_init(key, fan_in, w_shape, b_shape):
    kw, kb = jax.random.split(key)
    bound = 1.0 / jnp.sqrt(jnp.float32(fan_in))
    W = jax.random.uniform(kw, w_shape, jnp.float32, -bound, bound)
    b = jax.random.uniform(kb, b_shape, jnp.float32, -bound, bound)
    return W, b


def init_params(key, D=512):
    ks = jax.random.split(key, 6)
    # KNN_dist.R : Linear(10,10) -> Linear(10,10) -> Linear(10,1)
    w1, b1 = _linear_init(ks[0], 10, (10, 10), (1, 10))
    w2, b2 = _linear_init(ks[1], 10, (10, 10), (1, 10))
    w3, b3 = _linear_init(ks[2], 10, (1, 10), (1, 1))
    # conv : Linear(512,512) + BatchNorm1d(512)
    Wc, bc = _linear_init(ks[3], D, (D, D), (1, D))
    gamma = jnp.ones((1, D), jnp.float32)
    beta = jnp.zeros((1, D), jnp.float32)
    # attention : Linear(512,512), Linear(512,1)
    Wa1, ba1 = _linear_init(ks[4], D, (D, D), (1, D))
    wa2, ba2 = _linear_init(ks[5], D, (1, D), (1, 1))
    return {'R': (w1, b1, w2, b2, w3, b3),
            'conv': (Wc, bc, gamma, beta),
            'attn': (Wa1, ba1, wa2, ba2)}


def prepare_params(params):
    """Weight-layout prep done ONCE outside the jit: bf16 MXU copies of the
    512x512 weights and lane-major (transposed) copies of the tiny R weights."""
    w1, b1, w2, b2, w3, b3 = params['R']
    Wc, bc, gamma, beta = params['conv']
    Wa1, ba1, wa2, ba2 = params['attn']
    return {
        'R': (w1.T, b1.T, w2.T, b2.T, w3, b3),
        'conv': (Wc.astype(jnp.bfloat16), bc, gamma, beta),
        'attn': (Wa1.astype(jnp.bfloat16), ba1, wa2, ba2),
    }


if __name__ == "__main__":
    key = jax.random.PRNGKey(0)
    B, n_views, k, D = 2, 8, 4, 512
    kF, kV, kP = jax.random.split(key, 3)
    F = jax.random.normal(kF, (B, n_views, D), dtype=jnp.float32)
    V = jax.random.normal(kV, (B, n_views, 3), dtype=jnp.float32)
    params = prepare_params(init_params(kP, D))

    out = graph_attention_forward(F, V, params, k)
    out = jax.block_until_ready(out)
    assert out.shape == (B, n_views, D) and out.dtype == jnp.float32
    assert bool(jnp.all(jnp.isfinite(out)))
    print("KERNEL_OK")
</pallas_src>

<mosaic_0001>
module attributes {stable_mosaic.version = 11 : i64} {
  func.func @r_mlp_kernel(%arg0: i32, %arg1: memref<10x128xf32, #tpu.memory_space<vmem>>, %arg2: memref<10x10xf32, #tpu.memory_space<vmem>>, %arg3: memref<10x1xf32, #tpu.memory_space<vmem>>, %arg4: memref<10x10xf32, #tpu.memory_space<vmem>>, %arg5: memref<10x1xf32, #tpu.memory_space<vmem>>, %arg6: memref<1x10xf32, #tpu.memory_space<vmem>>, %arg7: memref<1x1xf32, #tpu.memory_space<smem>>, %arg8: memref<1x128xf32, #tpu.memory_space<vmem>>) attributes {dimension_semantics = [#tpu.dimension_semantics<parallel>], iteration_bounds = array<i64: 1>, scalar_prefetch = 0 : i64, scratch_operands = 0 : i64, tpu.core_type = #tpu.core_type<tc>, window_params = [{transform_indices = @transform_0, window_bounds = array<i64: 10, 128>}, {pipeline_mode = #tpu.pipeline_mode<synchronous>, transform_indices = @transform_1, window_bounds = array<i64: 10, 10>}, {pipeline_mode = #tpu.pipeline_mode<synchronous>, transform_indices = @transform_2, window_bounds = array<i64: 10, 1>}, {pipeline_mode = #tpu.pipeline_mode<synchronous>, transform_indices = @transform_3, window_bounds = array<i64: 10, 10>}, {pipeline_mode = #tpu.pipeline_mode<synchronous>, transform_indices = @transform_4, window_bounds = array<i64: 10, 1>}, {pipeline_mode = #tpu.pipeline_mode<synchronous>, transform_indices = @transform_5, window_bounds = array<i64: 1, 10>}, {transform_indices = @transform_6, window_bounds = array<i64: 1, 1>}, {transform_indices = @transform_7, window_bounds = array<i64: 1, 128>}]} {
    %c0 = arith.constant 0 : index
    %c0_0 = arith.constant 0 : index
    %0 = vector.load %arg1[%c0, %c0_0] : memref<10x128xf32, #tpu.memory_space<vmem>>, vector<10x128xf32>
    %c0_1 = arith.constant 0 : index
    %c0_2 = arith.constant 0 : index
    %1 = vector.load %arg2[%c0_1, %c0_2] : memref<10x10xf32, #tpu.memory_space<vmem>>, vector<10x10xf32>
    %cst = arith.constant dense<0.000000e+00> : vector<10x128xf32>
    %2 = tpu.matmul %1, %0, %cst {dimension_numbers = #tpu.dot_dimension_numbers<[1], [0], [0], [1], [0, 0, 1, 1], [], []>} : vector<10x10xf32>, vector<10x128xf32>, vector<10x128xf32> -> vector<10x128xf32>
    %c0_3 = arith.constant 0 : index
    %c0_4 = arith.constant 0 : index
    %3 = vector.load %arg3[%c0_3, %c0_4] : memref<10x1xf32, #tpu.memory_space<vmem>>, vector<10x1xf32>
    %4 = vector.broadcast %3 : vector<10x1xf32> to vector<10x128xf32>
    %5 = arith.addf %2, %4 : vector<10x128xf32>
    %cst_5 = arith.constant 0.000000e+00 : f32
    %6 = vector.broadcast %cst_5 : f32 to vector<10x128xf32>
    %7 = arith.cmpf ogt, %5, %6 : vector<10x128xf32>
    %cst_6 = arith.constant 2.000000e-01 : f32
    %8 = vector.broadcast %cst_6 : f32 to vector<10x128xf32>
    %9 = arith.mulf %8, %5 : vector<10x128xf32>
    %10 = arith.select %7, %5, %9 : vector<10x128xi1>, vector<10x128xf32>
    %c0_7 = arith.constant 0 : index
    %c0_8 = arith.constant 0 : index
    %11 = vector.load %arg4[%c0_7, %c0_8] : memref<10x10xf32, #tpu.memory_space<vmem>>, vector<10x10xf32>
    %cst_9 = arith.constant dense<0.000000e+00> : vector<10x128xf32>
    %12 = tpu.matmul %11, %10, %cst_9 {dimension_numbers = #tpu.dot_dimension_numbers<[1], [0], [0], [1], [0, 0, 1, 1], [], []>} : vector<10x10xf32>, vector<10x128xf32>, vector<10x128xf32> -> vector<10x128xf32>
    %c0_10 = arith.constant 0 : index
    %c0_11 = arith.constant 0 : index
    %13 = vector.load %arg5[%c0_10, %c0_11] : memref<10x1xf32, #tpu.memory_space<vmem>>, vector<10x1xf32>
    %14 = vector.broadcast %13 : vector<10x1xf32> to vector<10x128xf32>
    %15 = arith.addf %12, %14 : vector<10x128xf32>
    %cst_12 = arith.constant 0.000000e+00 : f32
    %16 = vector.broadcast %cst_12 : f32 to vector<10x128xf32>
    %17 = arith.cmpf ogt, %15, %16 : vector<10x128xf32>
    %cst_13 = arith.constant 2.000000e-01 : f32
    %18 = vector.broadcast %cst_13 : f32 to vector<10x128xf32>
    %19 = arith.mulf %18, %15 : vector<10x128xf32>
    %20 = arith.select %17, %15, %19 : vector<10x128xi1>, vector<10x128xf32>
    %c0_14 = arith.constant 0 : index
    %c0_15 = arith.constant 0 : index
    %21 = vector.load %arg6[%c0_14, %c0_15] : memref<1x10xf32, #tpu.memory_space<vmem>>, vector<1x10xf32>
    %cst_16 = arith.constant dense<0.000000e+00> : vector<1x128xf32>
    %22 = tpu.matmul %21, %20, %cst_16 {dimension_numbers = #tpu.dot_dimension_numbers<[1], [0], [0], [1], [0, 0, 1, 1], [], []>} : vector<1x10xf32>, vector<10x128xf32>, vector<1x128xf32> -> vector<1x128xf32>
    %c0_17 = arith.constant 0 : index
    %c0_18 = arith.constant 0 : index
    %23 = memref.load %arg7[%c0_17, %c0_18] : memref<1x1xf32, #tpu.memory_space<smem>>
    %24 = vector.broadcast %23 : f32 to vector<1x128xf32>
    %25 = arith.addf %22, %24 : vector<1x128xf32>
    %c0_19 = arith.constant 0 : index
    %c0_20 = arith.constant 0 : index
    %26 = vector.load %arg8[%c0_19, %c0_20] : memref<1x128xf32, #tpu.memory_space<vmem>>, vector<1x128xf32>
    tpu.vector_store %arg8[%c0_19, %c0_20], %25 {strides = array<i32>} : memref<1x128xf32, #tpu.memory_space<vmem>>, vector<1x128xf32>,
    return
  }
  func.func @transform_0(%arg0: i32) -> (i32, i32) {
    %c0_i32 = arith.constant 0 : i32
    %c0_i32_0 = arith.constant 0 : i32
    return %c0_i32, %arg0 : i32, i32
  }
  func.func @transform_1(%arg0: i32) -> (i32, i32) {
    %c0_i32 = arith.constant 0 : i32
    %c0_i32_0 = arith.constant 0 : i32
    %c0_i32_1 = arith.constant 0 : i32
    return %c0_i32, %c0_i32_0 : i32, i32
  }
  func.func @transform_2(%arg0: i32) -> (i32, i32) {
    %c0_i32 = arith.constant 0 : i32
    %c0_i32_0 = arith.constant 0 : i32
    %c0_i32_1 = arith.constant 0 : i32
    return %c0_i32, %c0_i32_0 : i32, i32
  }
  func.func @transform_3(%arg0: i32) -> (i32, i32) {
    %c0_i32 = arith.constant 0 : i32
    %c0_i32_0 = arith.constant 0 : i32
    %c0_i32_1 = arith.constant 0 : i32
    return %c0_i32, %c0_i32_0 : i32, i32
  }
  func.func @transform_4(%arg0: i32) -> (i32, i32) {
    %c0_i32 = arith.constant 0 : i32
    %c0_i32_0 = arith.constant 0 : i32
    %c0_i32_1 = arith.constant 0 : i32
    return %c0_i32, %c0_i32_0 : i32, i32
  }
  func.func @transform_5(%arg0: i32) -> (i32, i32) {
    %c0_i32 = arith.constant 0 : i32
    %c0_i32_0 = arith.constant 0 : i32
    %c0_i32_1 = arith.constant 0 : i32
    return %c0_i32, %c0_i32_0 : i32, i32
  }
  func.func @transform_6(%arg0: i32) -> (i32, i32) {
    %c0_i32 = arith.constant 0 : i32
    %c0_i32_0 = arith.constant 0 : i32
    %c0_i32_1 = arith.constant 0 : i32
    return %c0_i32, %c0_i32_0 : i32, i32
  }
  func.func @transform_7(%arg0: i32) -> (i32, i32) {
    %c0_i32 = arith.constant 0 : i32
    %c0_i32_0 = arith.constant 0 : i32
    return %c0_i32, %arg0 : i32, i32
  }
}

module attributes {stable_mosaic.version = 11 : i64} {
  func.func @fused_gat_kernel(%arg0: i32, %arg1: memref<16x16xf32, #tpu.memory_space<vmem>>, %arg2: memref<16x16xf32, #tpu.memory_space<vmem>>, %arg3: memref<16x512xf32, #tpu.memory_space<vmem>>, %arg4: memref<512x512xbf16, #tpu.memory_space<vmem>>, %arg5: memref<1x512xf32, #tpu.memory_space<vmem>>, %arg6: memref<1x512xf32, #tpu.memory_space<vmem>>, %arg7: memref<1x512xf32, #tpu.memory_space<vmem>>, %arg8: memref<512x512xbf16, #tpu.memory_space<vmem>>, %arg9: memref<1x512xf32, #tpu.memory_space<vmem>>, %arg10: memref<1x512xf32, #tpu.memory_space<vmem>>, %arg11: memref<1x1xf32, #tpu.memory_space<smem>>, %arg12: memref<16x512xf32, #tpu.memory_space<vmem>>) attributes {dimension_semantics = [#tpu.dimension_semantics<arbitrary>], iteration_bounds = array<i64: 1>, scalar_prefetch = 0 : i64, scratch_operands = 0 : i64, tpu.core_type = #tpu.core_type<tc>, window_params = [{pipeline_mode = #tpu.pipeline_mode<synchronous>, transform_indices = @transform_0, window_bounds = array<i64: 16, 16>}, {pipeline_mode = #tpu.pipeline_mode<synchronous>, transform_indices = @transform_1, window_bounds = array<i64: 16, 16>}, {pipeline_mode = #tpu.pipeline_mode<synchronous>, transform_indices = @transform_2, window_bounds = array<i64: 16, 512>}, {pipeline_mode = #tpu.pipeline_mode<synchronous>, transform_indices = @transform_3, window_bounds = array<i64: 512, 512>}, {pipeline_mode = #tpu.pipeline_mode<synchronous>, transform_indices = @transform_4, window_bounds = array<i64: 1, 512>}, {pipeline_mode = #tpu.pipeline_mode<synchronous>, transform_indices = @transform_5, window_bounds = array<i64: 1, 512>}, {pipeline_mode = #tpu.pipeline_mode<synchronous>, transform_indices = @transform_6, window_bounds = array<i64: 1, 512>}, {pipeline_mode = #tpu.pipeline_mode<synchronous>, transform_indices = @transform_7, window_bounds = array<i64: 512, 512>}, {pipeline_mode = #tpu.pipeline_mode<synchronous>, transform_indices = @transform_8, window_bounds = array<i64: 1, 512>}, {pipeline_mode = #tpu.pipeline_mode<synchronous>, transform_indices = @transform_9, window_bounds = array<i64: 1, 512>}, {transform_indices = @transform_10, window_bounds = array<i64: 1, 1>}, {pipeline_mode = #tpu.pipeline_mode<synchronous>, transform_indices = @transform_11, window_bounds = array<i64: 16, 512>}]} {
    %c0 = arith.constant 0 : index
    %c0_0 = arith.constant 0 : index
    %0 = vector.load %arg1[%c0, %c0_0] : memref<16x16xf32, #tpu.memory_space<vmem>>, vector<16x16xf32>
    %c0_1 = arith.constant 0 : index
    %c0_2 = arith.constant 0 : index
    %1 = vector.load %arg3[%c0_1, %c0_2] : memref<16x512xf32, #tpu.memory_space<vmem>>, vector<16x512xf32>
    %cst = arith.constant dense<0.000000e+00> : vector<16x512xf32>
    %2 = tpu.matmul %0, %1, %cst {dimension_numbers = #tpu.dot_dimension_numbers<[1], [0], [0], [1], [0, 0, 1, 1], [], []>} : vector<16x16xf32>, vector<16x512xf32>, vector<16x512xf32> -> vector<16x512xf32>
    %3 = arith.truncf %2 : vector<16x512xf32> to vector<16x512xbf16>
    %c0_3 = arith.constant 0 : index
    %c0_4 = arith.constant 0 : index
    %4 = vector.load %arg4[%c0_3, %c0_4] : memref<512x512xbf16, #tpu.memory_space<vmem>>, vector<512x512xbf16>
    %cst_5 = arith.constant dense<0.000000e+00> : vector<16x512xf32>
    %5 = tpu.matmul %3, %4, %cst_5 {dimension_numbers = #tpu.dot_dimension_numbers<[1], [0], [0], [1], [0, 0, 1, 1], [], []>} : vector<16x512xbf16>, vector<512x512xbf16>, vector<16x512xf32> -> vector<16x512xf32>
    %c0_6 = arith.constant 0 : index
    %c0_7 = arith.constant 0 : index
    %6 = vector.load %arg5[%c0_6, %c0_7] : memref<1x512xf32, #tpu.memory_space<vmem>>, vector<1x512xf32>
    %7 = vector.broadcast %6 : vector<1x512xf32> to vector<16x512xf32>
    %8 = arith.addf %5, %7 : vector<16x512xf32>
    %cst_8 = arith.constant dense<0.000000e+00> : vector<512xf32>
    %9 = vector.multi_reduction <add>, %8, %cst_8 [0] : vector<16x512xf32> to vector<512xf32>
    %10 = vector.shape_cast %9 : vector<512xf32> to vector<1x512xf32>
    %cst_9 = arith.constant 6.250000e-02 : f32
    %11 = vector.broadcast %cst_9 : f32 to vector<1x512xf32>
    %12 = arith.mulf %10, %11 : vector<1x512xf32>
    %13 = arith.mulf %8, %8 : vector<16x512xf32>
    %cst_10 = arith.constant dense<0.000000e+00> : vector<512xf32>
    %14 = vector.multi_reduction <add>, %13, %cst_10 [0] : vector<16x512xf32> to vector<512xf32>
    %15 = vector.shape_cast %14 : vector<512xf32> to vector<1x512xf32>
    %cst_11 = arith.constant 6.250000e-02 : f32
    %16 = vector.broadcast %cst_11 : f32 to vector<1x512xf32>
    %17 = arith.mulf %15, %16 : vector<1x512xf32>
    %18 = arith.mulf %12, %12 : vector<1x512xf32>
    %19 = arith.subf %17, %18 : vector<1x512xf32>
    %cst_12 = arith.constant 0.000000e+00 : f32
    %20 = vector.broadcast %cst_12 : f32 to vector<1x512xf32>
    %21 = arith.maximumf %19, %20 : vector<1x512xf32>
    %c0_13 = arith.constant 0 : index
    %c0_14 = arith.constant 0 : index
    %22 = vector.load %arg6[%c0_13, %c0_14] : memref<1x512xf32, #tpu.memory_space<vmem>>, vector<1x512xf32>
    %cst_15 = arith.constant 9.99999974E-6 : f32
    %23 = vector.broadcast %cst_15 : f32 to vector<1x512xf32>
    %24 = arith.addf %21, %23 : vector<1x512xf32>
    %25 = math.rsqrt %24 : vector<1x512xf32>
    %26 = arith.mulf %22, %25 : vector<1x512xf32>
    %27 = vector.broadcast %26 : vector<1x512xf32> to vector<16x512xf32>
    %28 = arith.mulf %8, %27 : vector<16x512xf32>
    %c0_16 = arith.constant 0 : index
    %c0_17 = arith.constant 0 : index
    %29 = vector.load %arg7[%c0_16, %c0_17] : memref<1x512xf32, #tpu.memory_space<vmem>>, vector<1x512xf32>
    %30 = arith.mulf %12, %26 : vector<1x512xf32>
    %31 = arith.subf %29, %30 : vector<1x512xf32>
    %32 = vector.broadcast %31 : vector<1x512xf32> to vector<16x512xf32>
    %33 = arith.addf %28, %32 : vector<16x512xf32>
    %cst_18 = arith.constant 0.000000e+00 : f32
    %34 = vector.broadcast %cst_18 : f32 to vector<16x512xf32>
    %35 = arith.cmpf ogt, %33, %34 : vector<16x512xf32>
    %cst_19 = arith.constant 2.000000e-01 : f32
    %36 = vector.broadcast %cst_19 : f32 to vector<16x512xf32>
    %37 = arith.mulf %36, %33 : vector<16x512xf32>
    %38 = arith.select %35, %33, %37 : vector<16x512xi1>, vector<16x512xf32>
    %39 = arith.truncf %38 : vector<16x512xf32> to vector<16x512xbf16>
    %c0_20 = arith.constant 0 : index
    %c0_21 = arith.constant 0 : index
    %40 = vector.load %arg8[%c0_20, %c0_21] : memref<512x512xbf16, #tpu.memory_space<vmem>>, vector<512x512xbf16>
    %cst_22 = arith.constant dense<0.000000e+00> : vector<16x512xf32>
    %41 = tpu.matmul %39, %40, %cst_22 {dimension_numbers = #tpu.dot_dimension_numbers<[1], [0], [0], [1], [0, 0, 1, 1], [], []>} : vector<16x512xbf16>, vector<512x512xbf16>, vector<16x512xf32> -> vector<16x512xf32>
    %c0_23 = arith.constant 0 : index
    %c0_24 = arith.constant 0 : index
    %42 = vector.load %arg9[%c0_23, %c0_24] : memref<1x512xf32, #tpu.memory_space<vmem>>, vector<1x512xf32>
    %43 = vector.broadcast %42 : vector<1x512xf32> to vector<16x512xf32>
    %44 = arith.addf %41, %43 : vector<16x512xf32>
    %cst_25 = arith.constant 0.000000e+00 : f32
    %45 = vector.broadcast %cst_25 : f32 to vector<16x512xf32>
    %46 = arith.cmpf ogt, %44, %45 : vector<16x512xf32>
    %cst_26 = arith.constant 2.000000e-01 : f32
    %47 = vector.broadcast %cst_26 : f32 to vector<16x512xf32>
    %48 = arith.mulf %47, %44 : vector<16x512xf32>
    %49 = arith.select %46, %44, %48 : vector<16x512xi1>, vector<16x512xf32>
    %c0_27 = arith.constant 0 : index
    %c0_28 = arith.constant 0 : index
    %50 = vector.load %arg10[%c0_27, %c0_28] : memref<1x512xf32, #tpu.memory_space<vmem>>, vector<1x512xf32>
    "tpu.trace_start"() <{level = 10 : i32, message = "od,md->om"}> : () -> ()
    %cst_29 = arith.constant dense<0.000000e+00> : vector<1x16xf32>
    %51 = tpu.matmul %50, %49, %cst_29 {dimension_numbers = #tpu.dot_dimension_numbers<[1], [1], [0], [0], [0, 0, 1, 0], [], []>} : vector<1x512xf32>, vector<16x512xf32>, vector<1x16xf32> -> vector<1x16xf32>
    "tpu.trace_stop"() : () -> ()
    %c0_30 = arith.constant 0 : index
    %c0_31 = arith.constant 0 : index
    %52 = memref.load %arg11[%c0_30, %c0_31] : memref<1x1xf32, #tpu.memory_space<smem>>
    %53 = vector.broadcast %52 : f32 to vector<1x16xf32>
    %54 = arith.addf %51, %53 : vector<1x16xf32>
    %c0_32 = arith.constant 0 : index
    %c0_33 = arith.constant 0 : index
    %55 = vector.load %arg2[%c0_32, %c0_33] : memref<16x16xf32, #tpu.memory_space<vmem>>, vector<16x16xf32>
    %56 = vector.shape_cast %54 : vector<1x16xf32> to vector<1x16xf32>
    %57 = vector.broadcast %56 : vector<1x16xf32> to vector<16x16xf32>
    %cst_34 = arith.constant 0.000000e+00 : f32
    %58 = vector.broadcast %cst_34 : f32 to vector<16x16xf32>
    %59 = arith.cmpf ogt, %55, %58 : vector<16x16xf32>
    %cst_35 = arith.constant -1.000000e+30 : f32
    %60 = vector.broadcast %cst_35 : f32 to vector<16x16xf32>
    %61 = arith.select %59, %57, %60 : vector<16x16xi1>, vector<16x16xf32>
    %cst_36 = arith.constant dense<0xFF800000> : vector<16xf32>
    %62 = vector.multi_reduction <maximumf>, %61, %cst_36 [1] : vector<16x16xf32> to vector<16xf32>
    %63 = vector.shape_cast %62 : vector<16xf32> to vector<16x1xf32>
    %cst_37 = arith.constant 0.000000e+00 : f32
    %64 = vector.broadcast %cst_37 : f32 to vector<16x16xf32>
    %65 = arith.cmpf ogt, %55, %64 : vector<16x16xf32>
    %66 = vector.broadcast %63 : vector<16x1xf32> to vector<16x16xf32>
    %67 = arith.subf %57, %66 : vector<16x16xf32>
    %68 = math.exp %67 : vector<16x16xf32>
    %cst_38 = arith.constant 0.000000e+00 : f32
    %69 = vector.broadcast %cst_38 : f32 to vector<16x16xf32>
    %70 = arith.select %65, %68, %69 : vector<16x16xi1>, vector<16x16xf32>
    %cst_39 = arith.constant dense<0.000000e+00> : vector<16xf32>
    %71 = vector.multi_reduction <add>, %70, %cst_39 [1] : vector<16x16xf32> to vector<16xf32>
    %72 = vector.shape_cast %71 : vector<16xf32> to vector<16x1xf32>
    %73 = tpu.iota {dimensions = array<i32: 0>} : vector<16x16xi32>
    %74 = tpu.iota {dimensions = array<i32: 1>} : vector<16x16xi32>
    %75 = arith.cmpi eq, %73, %74 : vector<16x16xi32>
    %cst_40 = arith.constant 0.000000e+00 : f32
    %76 = vector.broadcast %cst_40 : f32 to vector<16x16xf32>
    %77 = arith.select %75, %70, %76 : vector<16x16xi1>, vector<16x16xf32>
    %cst_41 = arith.constant dense<0.000000e+00> : vector<16xf32>
    %78 = vector.multi_reduction <add>, %77, %cst_41 [1] : vector<16x16xf32> to vector<16xf32>
    %79 = vector.shape_cast %78 : vector<16xf32> to vector<16x1xf32>
    %80 = arith.divf %79, %72 : vector<16x1xf32>
    %81 = vector.broadcast %80 : vector<16x1xf32> to vector<16x512xf32>
    %82 = arith.mulf %38, %81 : vector<16x512xf32>
    %83 = arith.truncf %82 : vector<16x512xf32> to vector<16x512xbf16>
    %c0_42 = arith.constant 0 : index
    %c0_43 = arith.constant 0 : index
    %84 = vector.load %arg4[%c0_42, %c0_43] : memref<512x512xbf16, #tpu.memory_space<vmem>>, vector<512x512xbf16>
    %cst_44 = arith.constant dense<0.000000e+00> : vector<16x512xf32>
    %85 = tpu.matmul %83, %84, %cst_44 {dimension_numbers = #tpu.dot_dimension_numbers<[1], [0], [0], [1], [0, 0, 1, 1], [], []>} : vector<16x512xbf16>, vector<512x512xbf16>, vector<16x512xf32> -> vector<16x512xf32>
    %c0_45 = arith.constant 0 : index
    %c0_46 = arith.constant 0 : index
    %86 = vector.load %arg5[%c0_45, %c0_46] : memref<1x512xf32, #tpu.memory_space<vmem>>, vector<1x512xf32>
    %87 = vector.broadcast %86 : vector<1x512xf32> to vector<16x512xf32>
    %88 = arith.addf %85, %87 : vector<16x512xf32>
    %cst_47 = arith.constant dense<0.000000e+00> : vector<512xf32>
    %89 = vector.multi_reduction <add>, %88, %cst_47 [0] : vector<16x512xf32> to vector<512xf32>
    %90 = vector.shape_cast %89 : vector<512xf32> to vector<1x512xf32>
    %cst_48 = arith.constant 6.250000e-02 : f32
    %91 = vector.broadcast %cst_48 : f32 to vector<1x512xf32>
    %92 = arith.mulf %90, %91 : vector<1x512xf32>
    %93 = arith.mulf %88, %88 : vector<16x512xf32>
    %cst_49 = arith.constant dense<0.000000e+00> : vector<512xf32>
    %94 = vector.multi_reduction <add>, %93, %cst_49 [0] : vector<16x512xf32> to vector<512xf32>
    %95 = vector.shape_cast %94 : vector<512xf32> to vector<1x512xf32>
    %cst_50 = arith.constant 6.250000e-02 : f32
    %96 = vector.broadcast %cst_50 : f32 to vector<1x512xf32>
    %97 = arith.mulf %95, %96 : vector<1x512xf32>
    %98 = arith.mulf %92, %92 : vector<1x512xf32>
    %99 = arith.subf %97, %98 : vector<1x512xf32>
    %cst_51 = arith.constant 0.000000e+00 : f32
    %100 = vector.broadcast %cst_51 : f32 to vector<1x512xf32>
    %101 = arith.maximumf %99, %100 : vector<1x512xf32>
    %c0_52 = arith.constant 0 : index
    %c0_53 = arith.constant 0 : index
    %102 = vector.load %arg6[%c0_52, %c0_53] : memref<1x512xf32, #tpu.memory_space<vmem>>, vector<1x512xf32>
    %cst_54 = arith.constant 9.99999974E-6 : f32
    %103 = vector.broadcast %cst_54 : f32 to vector<1x512xf32>
    %104 = arith.addf %101, %103 : vector<1x512xf32>
    %105 = math.rsqrt %104 : vector<1x512xf32>
    %106 = arith.mulf %102, %105 : vector<1x512xf32>
    %107 = vector.broadcast %106 : vector<1x512xf32> to vector<16x512xf32>
    %108 = arith.mulf %88, %107 : vector<16x512xf32>
    %c0_55 = arith.constant 0 : index
    %c0_56 = arith.constant 0 : index
    %109 = vector.load %arg7[%c0_55, %c0_56] : memref<1x512xf32, #tpu.memory_space<vmem>>, vector<1x512xf32>
    %110 = arith.mulf %92, %106 : vector<1x512xf32>
    %111 = arith.subf %109, %110 : vector<1x512xf32>
    %112 = vector.broadcast %111 : vector<1x512xf32> to vector<16x512xf32>
    %113 = arith.addf %108, %112 : vector<16x512xf32>
    %cst_57 = arith.constant 0.000000e+00 : f32
    %114 = vector.broadcast %cst_57 : f32 to vector<16x512xf32>
    %115 = arith.cmpf ogt, %113, %114 : vector<16x512xf32>
    %cst_58 = arith.constant 2.000000e-01 : f32
    %116 = vector.broadcast %cst_58 : f32 to vector<16x512xf32>
    %117 = arith.mulf %116, %113 : vector<16x512xf32>
    %118 = arith.select %115, %113, %117 : vector<16x512xi1>, vector<16x512xf32>
    %c0_59 = arith.constant 0 : index
    %c0_60 = arith.constant 0 : index
    %119 = vector.load %arg12[%c0_59, %c0_60] : memref<16x512xf32, #tpu.memory_space<vmem>>, vector<16x512xf32>
    tpu.vector_store %arg12[%c0_59, %c0_60], %118 {strides = array<i32>} : memref<16x512xf32, #tpu.memory_space<vmem>>, vector<16x512xf32>,
    return
  }
  func.func @transform_0(%arg0: i32) -> (i32, i32) {
    %c0_i32 = arith.constant 0 : i32
    %c0_i32_0 = arith.constant 0 : i32
    %c0_i32_1 = arith.constant 0 : i32
    return %c0_i32, %c0_i32_0 : i32, i32
  }
  func.func @transform_1(%arg0: i32) -> (i32, i32) {
    %c0_i32 = arith.constant 0 : i32
    %c0_i32_0 = arith.constant 0 : i32
    %c0_i32_1 = arith.constant 0 : i32
    return %c0_i32, %c0_i32_0 : i32, i32
  }
  func.func @transform_2(%arg0: i32) -> (i32, i32) {
    %c0_i32 = arith.constant 0 : i32
    %c0_i32_0 = arith.constant 0 : i32
    %c0_i32_1 = arith.constant 0 : i32
    return %c0_i32, %c0_i32_0 : i32, i32
  }
  func.func @transform_3(%arg0: i32) -> (i32, i32) {
    %c0_i32 = arith.constant 0 : i32
    %c0_i32_0 = arith.constant 0 : i32
    %c0_i32_1 = arith.constant 0 : i32
    return %c0_i32, %c0_i32_0 : i32, i32
  }
  func.func @transform_4(%arg0: i32) -> (i32, i32) {
    %c0_i32 = arith.constant 0 : i32
    %c0_i32_0 = arith.constant 0 : i32
    %c0_i32_1 = arith.constant 0 : i32
    return %c0_i32, %c0_i32_0 : i32, i32
  }
  func.func @transform_5(%arg0: i32) -> (i32, i32) {
    %c0_i32 = arith.constant 0 : i32
    %c0_i32_0 = arith.constant 0 : i32
    %c0_i32_1 = arith.constant 0 : i32
    return %c0_i32, %c0_i32_0 : i32, i32
  }
  func.func @transform_6(%arg0: i32) -> (i32, i32) {
    %c0_i32 = arith.constant 0 : i32
    %c0_i32_0 = arith.constant 0 : i32
    %c0_i32_1 = arith.constant 0 : i32
    return %c0_i32, %c0_i32_0 : i32, i32
  }
  func.func @transform_7(%arg0: i32) -> (i32, i32) {
    %c0_i32 = arith.constant 0 : i32
    %c0_i32_0 = arith.constant 0 : i32
    %c0_i32_1 = arith.constant 0 : i32
    return %c0_i32, %c0_i32_0 : i32, i32
  }
  func.func @transform_8(%arg0: i32) -> (i32, i32) {
    %c0_i32 = arith.constant 0 : i32
    %c0_i32_0 = arith.constant 0 : i32
    %c0_i32_1 = arith.constant 0 : i32
    return %c0_i32, %c0_i32_0 : i32, i32
  }
  func.func @transform_9(%arg0: i32) -> (i32, i32) {
    %c0_i32 = arith.constant 0 : i32
    %c0_i32_0 = arith.constant 0 : i32
    %c0_i32_1 = arith.constant 0 : i32
    return %c0_i32, %c0_i32_0 : i32, i32
  }
  func.func @transform_10(%arg0: i32) -> (i32, i32) {
    %c0_i32 = arith.constant 0 : i32
    %c0_i32_0 = arith.constant 0 : i32
    %c0_i32_1 = arith.constant 0 : i32
    return %c0_i32, %c0_i32_0 : i32, i32
  }
  func.func @transform_11(%arg0: i32) -> (i32, i32) {
    %c0_i32 = arith.constant 0 : i32
    %c0_i32_0 = arith.constant 0 : i32
    %c0_i32_1 = arith.constant 0 : i32
    return %c0_i32, %c0_i32_0 : i32, i32
  }
}

</mosaic_0001>

<llo_original>
// kernel: eq.1
$region0: #{eq.1}
  %s0 = inlined_call_operand.vmem [shape: s32[2,8,4], index: 0, kind: input, shape index: {}]
  %s1 = inlined_call_operand.vmem [shape: s32[16,4], index: 1, kind: output, shape index: {}]
  $region1: #{eq.1} parent=0
    #allocation0 [shape = 'u8[4096]{0}', space=vmem, size = 0x1000, scoped, tag = 'scoped mem for output reshape']
    #allocation1 [shape = 'u8[16384]{0}', space=vmem, size = 0x4000, scoped, tag = 'scoped mem for input reshape']
    %s3 = sshll.u32 1, 2
    %s4 = ssub.s32 %s3, 1
    %s5 = smul.addr 2, 3
    %s6 = scalar_lea.vmem %s0, %s5
    %v7 = vld [vmem:[%s6] sm:%s4]
    %s8 = scalar_lea.vmem [#allocation1], 24
    %9 = vst [vmem:[%s8] sm:%s4] %v7
    %s10 = smul.addr 2, 2
    %s11 = scalar_lea.vmem %s0, %s10
    %v12 = vld [vmem:[%s11] sm:%s4]
    %s13 = scalar_lea.vmem [#allocation1], 16
    %14 = vst [vmem:[%s13] sm:%s4] %v12
    %s15 = scalar_lea.vmem %s0, 2
    %v16 = vld [vmem:[%s15] sm:%s4]
    %s17 = scalar_lea.vmem [#allocation1], 8
    %18 = vst [vmem:[%s17] sm:%s4] %v16
    %v19 = vld [vmem:[%s0] sm:%s4]
    %20 = vst [vmem:[#allocation1] sm:%s4] %v19
    %v21 = vld [vmem:[#allocation1] ss:$8 sm:$0xf]
    %vm22 = vcmask 64512
    %23 = vst.msk [vmem:[#allocation0] sm:$0xf] %vm22, %v21
    %s24 = scalar_lea.vmem [#allocation1], 1
    %v25 = vld [vmem:[%s24] ss:$8 sm:$0xf]
    %26 = vrot.lane.b32.xlu0 %v25, 8
    %v27 = vpop.permute.xlu0 %26
    %vm28 = vcmask 130112
    %29 = vst.msk [vmem:[#allocation0] sm:$0xf] %vm28, %v27
    %s31 = sshll.u32 1, 4
    %s32 = ssub.s32 %s31, 1
    %v34 = vld [vmem:[#allocation0] sm:%s32]
    %s35 = sshll.u32 1, 4
    %s36 = ssub.s32 %s35, 1
    %37 = vst [vmem:[%s1] sm:%s36] %v34

// kernel: sub.1
$region0: #{sub.1}
  #allocation0 [shape = 's32[1]{0}', space=sflag, size = 0x4, scoped, tag = 'scoped memory for sub.1']
  %s0 = inlined_call_operand.vmem [shape: f32[64,3], index: 0, kind: input, shape index: {}]
  %s1 = inlined_call_operand.vmem [shape: f32[64,3], index: 1, kind: input, shape index: {}]
  %s2 = inlined_call_operand.vmem [shape: f32[64,3], index: 2, kind: output, shape index: {}]
  %v3 = vld [vmem:[%s0] sm:$0x7]
  %v4 = vld [vmem:[%s1] sm:$0x7]
  %5 = xla_tuple %v3, %v4
  %6 = xla_tuple %5
  %v7 = vsub.f32 %v3, %v4
  %8 = xla_tuple %v7
  %9 = vst [vmem:[%s2] sm:$0xf] %v7

// kernel: squeeze.1
$region0: #{squeeze.1}
  %s0 = inlined_call_operand.vmem [shape: f32[64], index: 0, kind: input, shape index: {}]
  %s1 = inlined_call_operand.vmem [shape: f32[16,4], index: 1, kind: output, shape index: {}]
  $region1: #{squeeze.1} parent=0
    #allocation0 [shape = 'u8[4096]{0}', space=vmem, size = 0x1000, scoped, tag = 'scoped mem for input reshape']
    %s3 = sshll.u32 1, 1
    %s4 = ssub.s32 %s3, 1
    %v5 = vld [vmem:[%s0] sm:%s4]
    %6 = vst [vmem:[#allocation0] sm:%s4] %v5
    %v7 = vld [vmem:[#allocation0] sm:$0x1]
    %vm8 = vcmask 31744
    %9 = vst.msk [vmem:[%s1] sm:$0x1] %vm8, %v7
    %v10 = vld [vmem:[#allocation0] sm:$0x1]
    %11 = vrot.lane.b32.xlu0 %v10, 124
    %v12 = vpop.permute.xlu0 %11
    %vm13 = vcmask 31744
    %s14 = scalar_lea.vmem %s1, 1
    %15 = vst.msk [vmem:[%s14] sm:$0x1] %vm13, %v12
    %v16 = vld [vmem:[#allocation0] sm:$0x1]
    %17 = vrot.lane.b32.xlu0 %v16, 120
    %v18 = vpop.permute.xlu0 %17
    %vm19 = vcmask 31744
    %s20 = scalar_lea.vmem %s1, 2
    %21 = vst.msk [vmem:[%s20] sm:$0x1] %vm19, %v18
    %v22 = vld [vmem:[#allocation0] sm:$0x1]
    %23 = vrot.lane.b32.xlu0 %v22, 116
    %v24 = vpop.permute.xlu0 %23
    %vm25 = vcmask 31744
    %s26 = scalar_lea.vmem %s1, 3
    %27 = vst.msk [vmem:[%s26] sm:$0x1] %vm25, %v24
    %v28 = vld [vmem:[#allocation0] sm:$0x1]
    %29 = vrot.lane.b32.xlu0 %v28, 112
    %v30 = vpop.permute.xlu0 %29
    %vm31 = vcmask 31744
    %s32 = scalar_lea.vmem %s1, 4
    %33 = vst.msk [vmem:[%s32] sm:$0x1] %vm31, %v30
    %v34 = vld [vmem:[#allocation0] sm:$0x1]
    %35 = vrot.lane.b32.xlu0 %v34, 108
    %v36 = vpop.permute.xlu0 %35
    %vm37 = vcmask 31744
    %s38 = scalar_lea.vmem %s1, 5
    %39 = vst.msk [vmem:[%s38] sm:$0x1] %vm37, %v36
    %v40 = vld [vmem:[#allocation0] sm:$0x1]
    %41 = vrot.lane.b32.xlu0 %v40, 104
    %v42 = vpop.permute.xlu0 %41
    %vm43 = vcmask 31744
    %s44 = scalar_lea.vmem %s1, 6
    %45 = vst.msk [vmem:[%s44] sm:$0x1] %vm43, %v42
    %v46 = vld [vmem:[#allocation0] sm:$0x1]
    %47 = vrot.lane.b32.xlu0 %v46, 100
    %v48 = vpop.permute.xlu0 %47
    %vm49 = vcmask 31744
    %s50 = scalar_lea.vmem %s1, 7
    %51 = vst.msk [vmem:[%s50] sm:$0x1] %vm49, %v48
    %v52 = vld [vmem:[#allocation0] sm:$0x1]
    %53 = vrot.lane.b32.xlu0 %v52, 96
    %v54 = vpop.permute.xlu0 %53
    %vm55 = vcmask 31744
    %s56 = scalar_lea.vmem %s1, 8
    %57 = vst.msk [vmem:[%s56] sm:$0x1] %vm55, %v54
    %v58 = vld [vmem:[#allocation0] sm:$0x1]
    %59 = vrot.lane.b32.xlu0 %v58, 92
    %v60 = vpop.permute.xlu0 %59
    %vm61 = vcmask 31744
    %s62 = scalar_lea.vmem %s1, 9
    %63 = vst.msk [vmem:[%s62] sm:$0x1] %vm61, %v60
    %v64 = vld [vmem:[#allocation0] sm:$0x1]
    %65 = vrot.lane.b32.xlu0 %v64, 88
    %v66 = vpop.permute.xlu0 %65
    %vm67 = vcmask 31744
    %s68 = scalar_lea.vmem %s1, 10
    %69 = vst.msk [vmem:[%s68] sm:$0x1] %vm67, %v66
    %v70 = vld [vmem:[#allocation0] sm:$0x1]
    %71 = vrot.lane.b32.xlu0 %v70, 84
    %v72 = vpop.permute.xlu0 %71
    %vm73 = vcmask 31744
    %s74 = scalar_lea.vmem %s1, 11
    %75 = vst.msk [vmem:[%s74] sm:$0x1] %vm73, %v72
    %v76 = vld [vmem:[#allocation0] sm:$0x1]
    %77 = vrot.lane.b32.xlu0 %v76, 80
    %v78 = vpop.permute.xlu0 %77
    %vm79 = vcmask 31744
    %s80 = scalar_lea.vmem %s1, 12
    %81 = vst.msk [vmem:[%s80] sm:$0x1] %vm79, %v78
    %v82 = vld [vmem:[#allocation0] sm:$0x1]
    %83 = vrot.lane.b32.xlu0 %v82, 76
    %v84 = vpop.permute.xlu0 %83
    %vm85 = vcmask 31744
    %s86 = scalar_lea.vmem %s1, 13
    %87 = vst.msk [vmem:[%s86] sm:$0x1] %vm85, %v84
    %v88 = vld [vmem:[#allocation0] sm:$0x1]
    %89 = vrot.lane.b32.xlu0 %v88, 72
    %v90 = vpop.permute.xlu0 %89
    %vm91 = vcmask 31744
    %s92 = scalar_lea.vmem %s1, 14
    %93 = vst.msk [vmem:[%s92] sm:$0x1] %vm91, %v90
    %v94 = vld [vmem:[#allocation0] sm:$0x1]
    %95 = vrot.lane.b32.xlu0 %v94, 68
    %v96 = vpop.permute.xlu0 %95
    %vm97 = vcmask 31744
    %s98 = scalar_lea.vmem %s1, 15
    %99 = vst.msk [vmem:[%s98] sm:$0x1] %vm97, %v96

// kernel: graph_attention_forward.2
$region0: #{graph_attention_forward.2}
  #allocation0 [shape = 'u32[]', space=smem, size = 0x4, offset = 0x4, fixed_abs, tag = 'smem constant byte address 0x4 - core index']
  #allocation1 [shape = 'u32[144,128]{1,0:T(1,128)}', space=vmem, size = 0x12000, scoped, tag = 'internal scratch']
  #allocation2 [shape = 'f32[1,1]{1,0:T(1,128)S(6)}', space=smem, size = 0x200, scoped, tag = 'scoped memory for graph_attention_forward.2']
  %s0 = inlined_call_operand.vmem [shape: f32[10,128], index: 0, kind: input, shape index: {}]
  %s1 = inlined_call_operand.vmem [shape: f32[10,10], index: 1, kind: input, shape index: {}]
  %s2 = inlined_call_operand.vmem [shape: f32[10,1], index: 2, kind: input, shape index: {}]
  %s3 = inlined_call_operand.vmem [shape: f32[10,10], index: 3, kind: input, shape index: {}]
  %s4 = inlined_call_operand.vmem [shape: f32[10,1], index: 4, kind: input, shape index: {}]
  %s5 = inlined_call_operand.vmem [shape: f32[1,10], index: 5, kind: input, shape index: {}]
  %s6 = inlined_call_operand.<no memory space> [shape: f32[1,1], index: 6, kind: input, shape index: {}]
  %s7 = inlined_call_operand.vmem [shape: f32[1,128], index: 7, kind: output, shape index: {}]
  %s8 = sld [smem:[#allocation0]]
  $region38: #{graph_attention_forward.2} parent=0
    _
  %s10 = ssub.s32 1, %s8
  %s11 = scalar_select 0, %s10, %s8
  %12 = sst [smem:[#allocation2]] %s6
  // Predicated region
  $region2: #{graph_attention_forward.2} parent=0 // pred_check
    _
  $region3: #{graph_attention_forward.2} parent=0 // pred_check_branch
    %14 = sbr.rel (0) target = $region5
  $region4: #{graph_attention_forward.2} parent=0 // pred_region
    _
  $region5: #{graph_attention_forward.2} parent=0 // pred_fallthru
    _
  // Predicated region
  $region6: #{graph_attention_forward.2} parent=0 // pred_check
    _
  $region7: #{graph_attention_forward.2} parent=0 // pred_check_branch
    %16 = sbr.rel (0) target = $region9
  $region8: #{graph_attention_forward.2} parent=0 // pred_region
    _
  $region9: #{graph_attention_forward.2} parent=0 // pred_fallthru
    _
  // Predicated region
  $region10: #{graph_attention_forward.2} parent=0 // pred_check
    _
  $region11: #{graph_attention_forward.2} parent=0 // pred_check_branch
    %18 = sbr.rel (0) target = $region13
  $region12: #{graph_attention_forward.2} parent=0 // pred_region
    _
  $region13: #{graph_attention_forward.2} parent=0 // pred_fallthru
    _
  // Predicated region
  $region14: #{graph_attention_forward.2} parent=0 // pred_check
    _
  $region15: #{graph_attention_forward.2} parent=0 // pred_check_branch
    %20 = sbr.rel (0) target = $region17
  $region16: #{graph_attention_forward.2} parent=0 // pred_region
    _
  $region17: #{graph_attention_forward.2} parent=0 // pred_fallthru
    _
  // Predicated region
  $region18: #{graph_attention_forward.2} parent=0 // pred_check
    _
  $region19: #{graph_attention_forward.2} parent=0 // pred_check_branch
    %22 = sbr.rel (0) target = $region21
  $region20: #{graph_attention_forward.2} parent=0 // pred_region
    _
  $region21: #{graph_attention_forward.2} parent=0 // pred_fallthru
    _
  // Predicated region
  $region22: #{graph_attention_forward.2} parent=0 // pred_check
    _
  $region23: #{graph_attention_forward.2} parent=0 // pred_check_branch
    %24 = sbr.rel (0) target = $region25
  $region24: #{graph_attention_forward.2} parent=0 // pred_region
    _
  $region25: #{graph_attention_forward.2} parent=0 // pred_fallthru
    _
  // Predicated region
  $region26: #{graph_attention_forward.2} parent=0 // pred_check
    _
  $region27: #{graph_attention_forward.2} parent=0 // pred_check_branch
    %26 = sbr.rel (0) target = $region29
  $region28: #{graph_attention_forward.2} parent=0 // pred_region
    _
  $region29: #{graph_attention_forward.2} parent=0 // pred_fallthru
    _
  %v27 = vld [vmem:[%s0] sm:$0xff]
  %v28 = vld [vmem:[%s0 + $0x8] sm:$0x3]
  %v29 = vld [vmem:[%s1] sm:$0xff]
  %v30 = vld [vmem:[%s1 + $0x8] sm:$0x3]
  %v31 = vld [vmem:[%s2] sm:$0xff]
  %v32 = vld [vmem:[%s2 + $0x8] sm:$0x3]
  %34 = vset.pattern.permute.xlu0 0
  %35 = vperm.xlu0 %34, %v31
  %v36 = vpop.permute.xlu0 %35
  %39 = vset.pattern.permute.xlu0 0
  %40 = vperm.xlu0 %39, %v32
  %v41 = vpop.permute.xlu0 %40
  %vm43 = vcmask 80896
  %v45 = vsel %vm43, %v29, 0
  %v48 = vsel %vm43, %v30, 0
  %vm50 = vcmask 1041408
  %v52 = vsel %vm50, %v28, 0
  %54 = vmatprep.subr.mxu0 0.0
  %55 = vmatpush1.msra.mxu0 0.0
  %56 = vmatprep.subr.mxu0 0.0
  %57 = vmatpush1.msra.mxu0 0.0
  %58 = vmatprep.subr.mxu0 0.0
  %59 = vmatpush1.msra.mxu0 0.0
  %60 = vmatprep.subr.mxu0 0.0
  %61 = vmatpush1.msra.mxu0 0.0
  %62 = vmatprep.subr.mxu0 0.0
  %63 = vmatpush1.msra.mxu0 0.0
  %64 = vmatprep.subr.mxu0 0.0
  %65 = vmatpush1.msra.mxu0 0.0
  %66 = vmatprep.subr.mxu0 0.0
  %67 = vmatpush1.msra.mxu0 0.0
  %68 = vmatprep.subr.mxu0 0.0
  %69 = vmatpush1.msra.mxu0 0.0
  %70 = vmatprep.subr.mxu0 0.0
  %71 = vmatpush1.msra.mxu0 0.0
  %72 = vmatprep.subr.mxu0 0.0
  %73 = vmatpush1.msra.mxu0 0.0
  %74 = vmatprep.subr.mxu0 0.0
  %75 = vmatpush1.msra.mxu0 0.0
  %76 = vmatprep.subr.mxu0 0.0
  %77 = vmatpush1.msra.mxu0 0.0
  %78 = vmatprep.subr.mxu0 0.0
  %79 = vmatpush1.msra.mxu0 0.0
  %80 = vmatprep.subr.mxu0 0.0
  %81 = vmatpush1.msra.mxu0 0.0
  %82 = vmatprep.subr.mxu0 0.0
  %83 = vmatpush1.msra.mxu0 %v52
  %84 = vmatprep.subr.mxu0 0.0
  %85 = vmatpush1.msra.mxu0 %v27
  %86 = vmatprep.subr.mxu0 0.0
  %87 = vmatpush2.msra.mxu0 0.0
  %88 = vmatprep.subr.mxu0 0.0
  %89 = vmatpush2.msra.mxu0 0.0
  %90 = vmatprep.subr.mxu0 0.0
  %91 = vmatpush2.msra.mxu0 0.0
  %92 = vmatprep.subr.mxu0 0.0
  %93 = vmatpush2.msra.mxu0 0.0
  %94 = vmatprep.subr.mxu0 0.0
  %95 = vmatpush2.msra.mxu0 0.0
  %96 = vmatprep.subr.mxu0 0.0
  %97 = vmatpush2.msra.mxu0 0.0
  %98 = vmatprep.subr.mxu0 0.0
  %99 = vmatpush2.msra.mxu0 0.0
  %100 = vmatprep.subr.mxu0 0.0
  %101 = vmatpush2.msra.mxu0 0.0
  %102 = vmatprep.subr.mxu0 0.0
  %103 = vmatpush2.msra.mxu0 0.0
  %104 = vmatprep.subr.mxu0 0.0
  %105 = vmatpush2.msra.mxu0 0.0
  %106 = vmatprep.subr.mxu0 0.0
  %107 = vmatpush2.msra.mxu0 0.0
  %108 = vmatprep.subr.mxu0 0.0
  %109 = vmatpush2.msra.mxu0 0.0
  %110 = vmatprep.subr.mxu0 0.0
  %111 = vmatpush2.msra.mxu0 0.0
  %112 = vmatprep.subr.mxu0 0.0
  %113 = vmatpush2.msra.mxu0 0.0
  %114 = vmatprep.subr.mxu0 0.0
  %115 = vmatpush2.msra.mxu0 0.0
  %116 = vmatprep.subr.mxu0 0.0
  %117 = vmatpush2.msra.mxu0 0.0
  %118 = vmatprep.mubr.f32.mxu0 0.0
  %119 = vmatmul.mubr.f32.gmra.mxu0 %v45
  %v120 = vpop.f32.mrf.mxu0
  %v121 = vadd.f32 %v36, %v120
  %v122 = vpop.f32.mrf.mxu0
  %123 = vmatprep.mubr.f32.mxu0 0.0
  %124 = vmatmul.mubr.f32.gmra.mxu0 %v48
  %v125 = vpop.f32.mrf.mxu0
  %v126 = vadd.f32 %v41, %v125
  %v127 = vpop.f32.mrf.mxu0
  %128 = vdwg.mxu0
  %vm129 = vcmp.gt.f32.partialorder %v121, 0.0
  %vm130 = vcmp.gt.f32.partialorder %v126, 0.0
  %v131 = vmul.f32 %v121, 0.2
  %v132 = vmul.f32 %v126, 0.2
  %v133 = vsel %vm129, %v121, %v131
  %v134 = vsel %vm130, %v126, %v132
  %v135 = vld [vmem:[%s3] sm:$0xff]
  %v136 = vld [vmem:[%s3 + $0x8] sm:$0x3]
  %v137 = vld [vmem:[%s4] sm:$0xff]
  %v138 = vld [vmem:[%s4 + $0x8] sm:$0x3]
  %140 = vset.pattern.permute.xlu0 0
  %141 = vperm.xlu0 %140, %v137
  %v142 = vpop.permute.xlu0 %141
  %145 = vset.pattern.permute.xlu0 0
  %146 = vperm.xlu0 %145, %v138
  %v147 = vpop.permute.xlu0 %146
  %v150 = vsel %vm43, %v135, 0
  %v153 = vsel %vm43, %v136, 0
  %v156 = vsel %vm50, %v134, 0
  %158 = vmatprep.subr.mxu0 0.0
  %159 = vmatpush1.msra.mxu0 0.0
  %160 = vmatprep.subr.mxu0 0.0
  %161 = vmatpush1.msra.mxu0 0.0
  %162 = vmatprep.subr.mxu0 0.0
  %163 = vmatpush1.msra.mxu0 0.0
  %164 = vmatprep.subr.mxu0 0.0
  %165 = vmatpush1.msra.mxu0 0.0
  %166 = vmatprep.subr.mxu0 0.0
  %167 = vmatpush1.msra.mxu0 0.0
  %168 = vmatprep.subr.mxu0 0.0
  %169 = vmatpush1.msra.mxu0 0.0
  %170 = vmatprep.subr.mxu0 0.0
  %171 = vmatpush1.msra.mxu0 0.0
  %172 = vmatprep.subr.mxu0 0.0
  %173 = vmatpush1.msra.mxu0 0.0
  %174 = vmatprep.subr.mxu0 0.0
  %175 = vmatpush1.msra.mxu0 0.0
  %176 = vmatprep.subr.mxu0 0.0
  %177 = vmatpush1.msra.mxu0 0.0
  %178 = vmatprep.subr.mxu0 0.0
  %179 = vmatpush1.msra.mxu0 0.0
  %180 = vmatprep.subr.mxu0 0.0
  %181 = vmatpush1.msra.mxu0 0.0
  %182 = vmatprep.subr.mxu0 0.0
  %183 = vmatpush1.msra.mxu0 0.0
  %184 = vmatprep.subr.mxu0 0.0
  %185 = vmatpush1.msra.mxu0 0.0
  %186 = vmatprep.subr.mxu0 0.0
  %187 = vmatpush1.msra.mxu0 %v156
  %188 = vmatprep.subr.mxu0 0.0
  %189 = vmatpush1.msra.mxu0 %v133
  %190 = vmatprep.subr.mxu0 0.0
  %191 = vmatpush2.msra.mxu0 0.0
  %192 = vmatprep.subr.mxu0 0.0
  %193 = vmatpush2.msra.mxu0 0.0
  %194 = vmatprep.subr.mxu0 0.0
  %195 = vmatpush2.msra.mxu0 0.0
  %196 = vmatprep.subr.mxu0 0.0
  %197 = vmatpush2.msra.mxu0 0.0
  %198 = vmatprep.subr.mxu0 0.0
  %199 = vmatpush2.msra.mxu0 0.0
  %200 = vmatprep.subr.mxu0 0.0
  %201 = vmatpush2.msra.mxu0 0.0
  %202 = vmatprep.subr.mxu0 0.0
  %203 = vmatpush2.msra.mxu0 0.0
  %204 = vmatprep.subr.mxu0 0.0
  %205 = vmatpush2.msra.mxu0 0.0
  %206 = vmatprep.subr.mxu0 0.0
  %207 = vmatpush2.msra.mxu0 0.0
  %208 = vmatprep.subr.mxu0 0.0
  %209 = vmatpush2.msra.mxu0 0.0
  %210 = vmatprep.subr.mxu0 0.0
  %211 = vmatpush2.msra.mxu0 0.0
  %212 = vmatprep.subr.mxu0 0.0
  %213 = vmatpush2.msra.mxu0 0.0
  %214 = vmatprep.subr.mxu0 0.0
  %215 = vmatpush2.msra.mxu0 0.0
  %216 = vmatprep.subr.mxu0 0.0
  %217 = vmatpush2.msra.mxu0 0.0
  %218 = vmatprep.subr.mxu0 0.0
  %219 = vmatpush2.msra.mxu0 0.0
  %220 = vmatprep.subr.mxu0 0.0
  %221 = vmatpush2.msra.mxu0 0.0
  %222 = vmatprep.mubr.f32.mxu0 0.0
  %223 = vmatmul.mubr.f32.gmra.mxu0 %v150
  %v224 = vpop.f32.mrf.mxu0
  %v225 = vadd.f32 %v142, %v224
  %v226 = vpop.f32.mrf.mxu0
  %227 = vmatprep.mubr.f32.mxu0 0.0
  %228 = vmatmul.mubr.f32.gmra.mxu0 %v153
  %v229 = vpop.f32.mrf.mxu0
  %v230 = vadd.f32 %v147, %v229
  %v231 = vpop.f32.mrf.mxu0
  %232 = vdwg.mxu0
  %vm233 = vcmp.gt.f32.partialorder %v225, 0.0
  %vm234 = vcmp.gt.f32.partialorder %v230, 0.0
  %v235 = vmul.f32 %v225, 0.2
  %v236 = vmul.f32 %v230, 0.2
  %v237 = vsel %vm233, %v225, %v235
  %v238 = vsel %vm234, %v230, %v236
  %v239 = vld [vmem:[%s5] sm:$0x1]
  %s240 = sld [smem:[#allocation2]]
  %v241 = vstv %s240
  %v243 = vsel %vm43, %v239, 0
  %v246 = vsel %vm50, %v238, 0
  %248 = vmatprep.subr.mxu0 0.0
  %249 = vmatpush1.msra.mxu0 0.0
  %250 = vmatprep.subr.mxu0 0.0
  %251 = vmatpush1.msra.mxu0 0.0
  %252 = vmatprep.subr.mxu0 0.0
  %253 = vmatpush1.msra.mxu0 0.0
  %254 = vmatprep.subr.mxu0 0.0
  %255 = vmatpush1.msra.mxu0 0.0
  %256 = vmatprep.subr.mxu0 0.0
  %257 = vmatpush1.msra.mxu0 0.0
  %258 = vmatprep.subr.mxu0 0.0
  %259 = vmatpush1.msra.mxu0 0.0
  %260 = vmatprep.subr.mxu0 0.0
  %261 = vmatpush1.msra.mxu0 0.0
  %262 = vmatprep.subr.mxu0 0.0
  %263 = vmatpush1.msra.mxu0 0.0
  %264 = vmatprep.subr.mxu0 0.0
  %265 = vmatpush1.msra.mxu0 0.0
  %266 = vmatprep.subr.mxu0 0.0
  %267 = vmatpush1.msra.mxu0 0.0
  %268 = vmatprep.subr.mxu0 0.0
  %269 = vmatpush1.msra.mxu0 0.0
  %270 = vmatprep.subr.mxu0 0.0
  %271 = vmatpush1.msra.mxu0 0.0
  %272 = vmatprep.subr.mxu0 0.0
  %273 = vmatpush1.msra.mxu0 0.0
  %274 = vmatprep.subr.mxu0 0.0
  %275 = vmatpush1.msra.mxu0 0.0
  %276 = vmatprep.subr.mxu0 0.0
  %277 = vmatpush1.msra.mxu0 %v246
  %278 = vmatprep.subr.mxu0 0.0
  %279 = vmatpush1.msra.mxu0 %v237
  %280 = vmatprep.subr.mxu0 0.0
  %281 = vmatpush2.msra.mxu0 0.0
  %282 = vmatprep.subr.mxu0 0.0
  %283 = vmatpush2.msra.mxu0 0.0
  %284 = vmatprep.subr.mxu0 0.0
  %285 = vmatpush2.msra.mxu0 0.0
  %286 = vmatprep.subr.mxu0 0.0
  %287 = vmatpush2.msra.mxu0 0.0
  %288 = vmatprep.subr.mxu0 0.0
  %289 = vmatpush2.msra.mxu0 0.0
  %290 = vmatprep.subr.mxu0 0.0
  %291 = vmatpush2.msra.mxu0 0.0
  %292 = vmatprep.subr.mxu0 0.0
  %293 = vmatpush2.msra.mxu0 0.0
  %294 = vmatprep.subr.mxu0 0.0
  %295 = vmatpush2.msra.mxu0 0.0
  %296 = vmatprep.subr.mxu0 0.0
  %297 = vmatpush2.msra.mxu0 0.0
  %298 = vmatprep.subr.mxu0 0.0
  %299 = vmatpush2.msra.mxu0 0.0
  %300 = vmatprep.subr.mxu0 0.0
  %301 = vmatpush2.msra.mxu0 0.0
  %302 = vmatprep.subr.mxu0 0.0
  %303 = vmatpush2.msra.mxu0 0.0
  %304 = vmatprep.subr.mxu0 0.0
  %305 = vmatpush2.msra.mxu0 0.0
  %306 = vmatprep.subr.mxu0 0.0
  %307 = vmatpush2.msra.mxu0 0.0
  %308 = vmatprep.subr.mxu0 0.0
  %309 = vmatpush2.msra.mxu0 0.0
  %310 = vmatprep.subr.mxu0 0.0
  %311 = vmatpush2.msra.mxu0 0.0
  %312 = vmatprep.mubr.f32.mxu0 0.0
  %313 = vmatmul.mubr.f32.gmra.mxu0 %v243
  %v314 = vpop.f32.mrf.mxu0
  %v315 = vadd.f32 %v241, %v314
  %v316 = vpop.f32.mrf.mxu0
  %317 = vdwg.mxu0
  %318 = vst [vmem:[%s7] sm:$0x1] %v315
  // Predicated region
  $region30: #{graph_attention_forward.2} parent=0 // pred_check
    _
  $region31: #{graph_attention_forward.2} parent=0 // pred_check_branch
    %320 = sbr.rel (0) target = $region33
  $region32: #{graph_attention_forward.2} parent=0 // pred_region
    _
  $region33: #{graph_attention_forward.2} parent=0 // pred_fallthru
    _
  // Predicated region
  $region34: #{graph_attention_forward.2} parent=0 // pred_check
    _
  $region35: #{graph_attention_forward.2} parent=0 // pred_check_branch
    %322 = sbr.rel (0) target = $region37
  $region36: #{graph_attention_forward.2} parent=0 // pred_region
    _
  $region37: #{graph_attention_forward.2} parent=0 // pred_fallthru
    _

// kernel: graph_attention_forward.3
$region0: #{graph_attention_forward.3}
  #allocation0 [shape = 'u32[]', space=smem, size = 0x4, offset = 0x4, fixed_abs, tag = 'smem constant byte address 0x4 - core index']
  #allocation1 [shape = 'u32[144,128]{1,0:T(1,128)}', space=vmem, size = 0x12000, scoped, tag = 'internal scratch']
  #allocation2 [shape = 'f32[1,1]{1,0:T(1,128)S(6)}', space=smem, size = 0x200, scoped, tag = 'scoped memory for graph_attention_forward.3']
  %s0 = inlined_call_operand.vmem [shape: f32[16,16], index: 0, kind: input, shape index: {}]
  %s1 = inlined_call_operand.vmem [shape: f32[16,16], index: 1, kind: input, shape index: {}]
  %s2 = inlined_call_operand.vmem [shape: f32[16,512], index: 2, kind: input, shape index: {}]
  %s3 = inlined_call_operand.vmem [shape: bf16[512,512], index: 3, kind: input, shape index: {}]
  %s4 = inlined_call_operand.vmem [shape: f32[1,512], index: 4, kind: input, shape index: {}]
  %s5 = inlined_call_operand.vmem [shape: f32[1,512], index: 5, kind: input, shape index: {}]
  %s6 = inlined_call_operand.vmem [shape: f32[1,512], index: 6, kind: input, shape index: {}]
  %s7 = inlined_call_operand.hbm [shape: bf16[512,512], index: 7, kind: input, shape index: {}]
  %s8 = inlined_call_operand.vmem [shape: f32[1,512], index: 8, kind: input, shape index: {}]
  %s9 = inlined_call_operand.vmem [shape: f32[1,512], index: 9, kind: input, shape index: {}]
  %s10 = inlined_call_operand.<no memory space> [shape: f32[1,1], index: 10, kind: input, shape index: {}]
  %s11 = inlined_call_operand.hbm [shape: f32[16,512], index: 11, kind: output, shape index: {}]
  %s12 = sld [smem:[#allocation0]]
  $region58: #{graph_attention_forward.3} parent=0
    _
  %s14 = ssub.s32 1, %s12
  %s15 = scalar_select 0, %s14, %s12
  %16 = sst [smem:[#allocation2]] %s10
  $region1: #{graph_attention_forward.3} parent=0
    #allocation3 [shape = 'u8[524288]{0}', space=vmem, size = 0x80000, scoped, tag = 'input window, operand 7, single buffered']
    #allocation4 [shape = 's32[1]{0}', space=sflag, size = 0x4, scoped, tag = 'scoped memory for graph_attention_forward.3']
    #allocation5 [shape = 's32[1]{0}', space=sflag, size = 0x4, scoped, tag = 'scoped memory for graph_attention_forward.3']
    #allocation6 [shape = 'u8[32768]{0}', space=vmem, size = 0x8000, scoped, tag = 'output window, operand 0, single buffered']
    %17 = vsyncpa [#allocation4], 0
    %18 = vsyncpa [#allocation5], 0
    // Predicated region
    $region2: #{graph_attention_forward.3} parent=1 // pred_check
      _
    $region3: #{graph_attention_forward.3} parent=1 // pred_check_branch
      %20 = sbr.rel (0) target = $region5
    $region4: #{graph_attention_forward.3} parent=1 // pred_region
      _
    $region5: #{graph_attention_forward.3} parent=1 // pred_fallthru
      _
    // Predicated region
    $region6: #{graph_attention_forward.3} parent=1 // pred_check
      _
    $region7: #{graph_attention_forward.3} parent=1 // pred_check_branch
      %22 = sbr.rel (0) target = $region9
    $region8: #{graph_attention_forward.3} parent=1 // pred_region
      _
    $region9: #{graph_attention_forward.3} parent=1 // pred_fallthru
      _
    // Predicated region
    $region10: #{graph_attention_forward.3} parent=1 // pred_check
      _
    $region11: #{graph_attention_forward.3} parent=1 // pred_check_branch
      %24 = sbr.rel (0) target = $region13
    $region12: #{graph_attention_forward.3} parent=1 // pred_region
      _
    $region13: #{graph_attention_forward.3} parent=1 // pred_fallthru
      _
    // Predicated region
    $region14: #{graph_attention_forward.3} parent=1 // pred_check
      _
    $region15: #{graph_attention_forward.3} parent=1 // pred_check_branch
      %26 = sbr.rel (0) target = $region17
    $region16: #{graph_attention_forward.3} parent=1 // pred_region
      _
    $region17: #{graph_attention_forward.3} parent=1 // pred_fallthru
      _
    // Predicated region
    $region18: #{graph_attention_forward.3} parent=1 // pred_check
      _
    $region19: #{graph_attention_forward.3} parent=1 // pred_check_branch
      %28 = sbr.rel (0) target = $region21
    $region20: #{graph_attention_forward.3} parent=1 // pred_region
      _
    $region21: #{graph_attention_forward.3} parent=1 // pred_fallthru
      _
    // Predicated region
    $region22: #{graph_attention_forward.3} parent=1 // pred_check
      _
    $region23: #{graph_attention_forward.3} parent=1 // pred_check_branch
      %30 = sbr.rel (0) target = $region25
    $region24: #{graph_attention_forward.3} parent=1 // pred_region
      _
    $region25: #{graph_attention_forward.3} parent=1 // pred_fallthru
      _
    // Predicated region
    $region26: #{graph_attention_forward.3} parent=1 // pred_check
      _
    $region27: #{graph_attention_forward.3} parent=1 // pred_check_branch
      %32 = sbr.rel (0) target = $region29
    $region28: #{graph_attention_forward.3} parent=1 // pred_region
      _
    $region29: #{graph_attention_forward.3} parent=1 // pred_fallthru
      _
    // Predicated region
    $region30: #{graph_attention_forward.3} parent=1 // pred_check
      _
    $region31: #{graph_attention_forward.3} parent=1 // pred_check_branch
      %34 = sbr.rel (0) target = $region33
    $region32: #{graph_attention_forward.3} parent=1 // pred_region
      %s36 = ssub.s32 16384, 16384
      %37 = vsyncadd [#allocation4], %s36
      %s38 = sshll.u32 [#allocation3], 4
      %s39 = int_to_ptr.vmem [resolvable:$true] %s38
      %44 = dma.hbm_to_vmem [thread:$0]  %s7, 16384, %s39, [#allocation4], 256, 256, 16
    $region33: #{graph_attention_forward.3} parent=1 // pred_fallthru
      _
    // Predicated region
    $region34: #{graph_attention_forward.3} parent=1 // pred_check
      _
    $region35: #{graph_attention_forward.3} parent=1 // pred_check_branch
      %46 = sbr.rel (0) target = $region37
    $region36: #{graph_attention_forward.3} parent=1 // pred_region
      _
    $region37: #{graph_attention_forward.3} parent=1 // pred_fallthru
      _
    // Predicated region
    $region38: #{graph_attention_forward.3} parent=1 // pred_check
      _
    $region39: #{graph_attention_forward.3} parent=1 // pred_check_branch
      %48 = sbr.rel (0) target = $region41
    $region40: #{graph_attention_forward.3} parent=1 // pred_region
      _
    $region41: #{graph_attention_forward.3} parent=1 // pred_fallthru
      _
    // Predicated region
    $region42: #{graph_attention_forward.3} parent=1 // pred_check
      _
    $region43: #{graph_attention_forward.3} parent=1 // pred_check_branch
      %50 = sbr.rel (0) target = $region45
    $region44: #{graph_attention_forward.3} parent=1 // pred_region
      _
    $region45: #{graph_attention_forward.3} parent=1 // pred_fallthru
      _
    // Predicated region
    $region46: #{graph_attention_forward.3} parent=1 // pred_check
      _
    $region47: #{graph_attention_forward.3} parent=1 // pred_check_branch
      %52 = sbr.rel (0) target = $region49
    $region48: #{graph_attention_forward.3} parent=1 // pred_region
      %53 = dma.done [#allocation4], 16384
    $region49: #{graph_attention_forward.3} parent=1 // pred_fallthru
      _
    %v54 = vld [vmem:[%s0] sm:$0xff]
    %v55 = vld [vmem:[%s0 + $0x8] sm:$0xff]
    %v56 = vld [vmem:[%s2] sm:$0xff]
    %v57 = vld [vmem:[%s2 + $0x8] sm:$0xff]
    %v58 = vld [vmem:[%s2 + $0x10] sm:$0xff]
    %v59 = vld [vmem:[%s2 + $0x18] sm:$0xff]
    %v60 = vld [vmem:[%s2 + $0x20] sm:$0xff]
    %v61 = vld [vmem:[%s2 + $0x28] sm:$0xff]
    %v62 = vld [vmem:[%s2 + $0x30] sm:$0xff]
    %v63 = vld [vmem:[%s2 + $0x38] sm:$0xff]
    %vm64 = vcmask 130048
    %v66 = vsel %vm64, %v54, 0
    %v69 = vsel %vm64, %v55, 0
    %71 = vmatprep.subr.mxu0 0.0
    %72 = vmatpush1.msra.mxu0 0.0
    %73 = vmatprep.subr.mxu0 0.0
    %74 = vmatpush1.msra.mxu0 0.0
    %75 = vmatprep.subr.mxu0 0.0
    %76 = vmatpush1.msra.mxu0 0.0
    %77 = vmatprep.subr.mxu0 0.0
    %78 = vmatpush1.msra.mxu0 0.0
    %79 = vmatprep.subr.mxu0 0.0
    %80 = vmatpush1.msra.mxu0 0.0
    %81 = vmatprep.subr.mxu0 0.0
    %82 = vmatpush1.msra.mxu0 0.0
    %83 = vmatprep.subr.mxu0 0.0
    %84 = vmatpush1.msra.mxu0 0.0
    %85 = vmatprep.subr.mxu0 0.0
    %86 = vmatpush1.msra.mxu0 0.0
    %87 = vmatprep.subr.mxu0 0.0
    %88 = vmatpush1.msra.mxu0 0.0
    %89 = vmatprep.subr.mxu0 0.0
    %90 = vmatpush1.msra.mxu0 0.0
    %91 = vmatprep.subr.mxu0 0.0
    %92 = vmatpush1.msra.mxu0 0.0
    %93 = vmatprep.subr.mxu0 0.0
    %94 = vmatpush1.msra.mxu0 0.0
    %95 = vmatprep.subr.mxu0 0.0
    %96 = vmatpush1.msra.mxu0 0.0
    %97 = vmatprep.subr.mxu0 0.0
    %98 = vmatpush1.msra.mxu0 0.0
    %99 = vmatprep.subr.mxu0 %v61
    %100 = vmatpush1.msra.mxu0 %v60
    %101 = vmatprep.subr.mxu0 %v57
    %102 = vmatpush1.msra.mxu0 %v56
    %103 = vmatprep.subr.mxu0 0.0
    %104 = vmatpush2.msra.mxu0 0.0
    %105 = vmatprep.subr.mxu0 0.0
    %106 = vmatpush2.msra.mxu0 0.0
    %107 = vmatprep.subr.mxu0 0.0
    %108 = vmatpush2.msra.mxu0 0.0
    %109 = vmatprep.subr.mxu0 0.0
    %110 = vmatpush2.msra.mxu0 0.0
    %111 = vmatprep.subr.mxu0 0.0
    %112 = vmatpush2.msra.mxu0 0.0
    %113 = vmatprep.subr.mxu0 0.0
    %114 = vmatpush2.msra.mxu0 0.0
    %115 = vmatprep.subr.mxu0 0.0
    %116 = vmatpush2.msra.mxu0 0.0
    %117 = vmatprep.subr.mxu0 0.0
    %118 = vmatpush2.msra.mxu0 0.0
    %119 = vmatprep.subr.mxu0 0.0
    %120 = vmatpush2.msra.mxu0 0.0
    %121 = vmatprep.subr.mxu0 0.0
    %122 = vmatpush2.msra.mxu0 0.0
    %123 = vmatprep.subr.mxu0 0.0
    %124 = vmatpush2.msra.mxu0 0.0
    %125 = vmatprep.subr.mxu0 0.0
    %126 = vmatpush2.msra.mxu0 0.0
    %127 = vmatprep.subr.mxu0 0.0
    %128 = vmatpush2.msra.mxu0 0.0
    %129 = vmatprep.subr.mxu0 0.0
    %130 = vmatpush2.msra.mxu0 0.0
    %131 = vmatprep.subr.mxu0 0.0
    %132 = vmatpush2.msra.mxu0 0.0
    %133 = vmatprep.subr.mxu0 0.0
    %134 = vmatpush2.msra.mxu0 0.0
    %135 = vmatprep.mubr.f32.mxu0 0.0
    %136 = vmatmul.mubr.f32.gmra.mxu0 %v66
    %v137 = vpop.f32.mrf.mxu0
    %v138 = vadd.f32 0.0, %v137
    %v139 = vpop.f32.mrf.mxu0
    %v140 = vadd.f32 0.0, %v139
    %141 = vmatprep.mubr.f32.mxu0 0.0
    %142 = vmatmul.mubr.f32.gmra.mxu0 %v69
    %v143 = vpop.f32.mrf.mxu0
    %v144 = vadd.f32 0.0, %v143
    %v145 = vpop.f32.mrf.mxu0
    %v146 = vadd.f32 0.0, %v145
    %147 = vdwg.mxu0
    %148 = vmatprep.subr.mxu0 0.0
    %149 = vmatpush1.msra.mxu0 0.0
    %150 = vmatprep.subr.mxu0 0.0
    %151 = vmatpush1.msra.mxu0 0.0
    %152 = vmatprep.subr.mxu0 0.0
    %153 = vmatpush1.msra.mxu0 0.0
    %154 = vmatprep.subr.mxu0 0.0
    %155 = vmatpush1.msra.mxu0 0.0
    %156 = vmatprep.subr.mxu0 0.0
    %157 = vmatpush1.msra.mxu0 0.0
    %158 = vmatprep.subr.mxu0 0.0
    %159 = vmatpush1.msra.mxu0 0.0
    %160 = vmatprep.subr.mxu0 0.0
    %161 = vmatpush1.msra.mxu0 0.0
    %162 = vmatprep.subr.mxu0 0.0
    %163 = vmatpush1.msra.mxu0 0.0
    %164 = vmatprep.subr.mxu0 0.0
    %165 = vmatpush1.msra.mxu0 0.0
    %166 = vmatprep.subr.mxu0 0.0
    %167 = vmatpush1.msra.mxu0 0.0
    %168 = vmatprep.subr.mxu0 0.0
    %169 = vmatpush1.msra.mxu0 0.0
    %170 = vmatprep.subr.mxu0 0.0
    %171 = vmatpush1.msra.mxu0 0.0
    %172 = vmatprep.subr.mxu0 0.0
    %173 = vmatpush1.msra.mxu0 0.0
    %174 = vmatprep.subr.mxu0 0.0
    %175 = vmatpush1.msra.mxu0 0.0
    %176 = vmatprep.subr.mxu0 %v63
    %177 = vmatpush1.msra.mxu0 %v62
    %178 = vmatprep.subr.mxu0 %v59
    %179 = vmatpush1.msra.mxu0 %v58
    %180 = vmatprep.subr.mxu0 0.0
    %181 = vmatpush2.msra.mxu0 0.0
    %182 = vmatprep.subr.mxu0 0.0
    %183 = vmatpush2.msra.mxu0 0.0
    %184 = vmatprep.subr.mxu0 0.0
    %185 = vmatpush2.msra.mxu0 0.0
    %186 = vmatprep.subr.mxu0 0.0
    %187 = vmatpush2.msra.mxu0 0.0
    %188 = vmatprep.subr.mxu0 0.0
    %189 = vmatpush2.msra.mxu0 0.0
    %190 = vmatprep.subr.mxu0 0.0
    %191 = vmatpush2.msra.mxu0 0.0
    %192 = vmatprep.subr.mxu0 0.0
    %193 = vmatpush2.msra.mxu0 0.0
    %194 = vmatprep.subr.mxu0 0.0
    %195 = vmatpush2.msra.mxu0 0.0
    %196 = vmatprep.subr.mxu0 0.0
    %197 = vmatpush2.msra.mxu0 0.0
    %198 = vmatprep.subr.mxu0 0.0
    %199 = vmatpush2.msra.mxu0 0.0
    %200 = vmatprep.subr.mxu0 0.0
    %201 = vmatpush2.msra.mxu0 0.0
    %202 = vmatprep.subr.mxu0 0.0
    %203 = vmatpush2.msra.mxu0 0.0
    %204 = vmatprep.subr.mxu0 0.0
    %205 = vmatpush2.msra.mxu0 0.0
    %206 = vmatprep.subr.mxu0 0.0
    %207 = vmatpush2.msra.mxu0 0.0
    %208 = vmatprep.subr.mxu0 0.0
    %209 = vmatpush2.msra.mxu0 0.0
    %210 = vmatprep.subr.mxu0 0.0
    %211 = vmatpush2.msra.mxu0 0.0
    %212 = vmatprep.mubr.f32.mxu0 0.0
    %213 = vmatmul.mubr.f32.gmra.mxu0 %v66
    %v214 = vpop.f32.mrf.mxu0
    %v215 = vadd.f32 0.0, %v214
    %v216 = vpop.f32.mrf.mxu0
    %v217 = vadd.f32 0.0, %v216
    %218 = vmatprep.mubr.f32.mxu0 0.0
    %219 = vmatmul.mubr.f32.gmra.mxu0 %v69
    %v220 = vpop.f32.mrf.mxu0
    %v221 = vadd.f32 0.0, %v220
    %v222 = vpop.f32.mrf.mxu0
    %v223 = vadd.f32 0.0, %v222
    %224 = vdwg.mxu0
    %v225 = vpack.c.bf16 %v144, %v138
    %v226 = vpack.c.bf16 %v146, %v140
    %v227 = vpack.c.bf16 %v221, %v215
    %v228 = vpack.c.bf16 %v223, %v217
    %v229 = vld [vmem:[%s3] sm:$0xff]
    %v230 = vld [vmem:[%s3 + $0x8] sm:$0xff]
    %v231 = vld [vmem:[%s3 + $0x10] sm:$0xff]
    %v232 = vld [vmem:[%s3 + $0x18] sm:$0xff]
    %v233 = vld [vmem:[%s3 + $0x20] sm:$0xff]
    %v234 = vld [vmem:[%s3 + $0x28] sm:$0xff]
    %v235 = vld [vmem:[%s3 + $0x30] sm:$0xff]
    %v236 = vld [vmem:[%s3 + $0x38] sm:$0xff]
    %v237 = vld [vmem:[%s3 + $0x40] sm:$0xff]
    %v238 = vld [vmem:[%s3 + $0x48] sm:$0xff]
    %v239 = vld [vmem:[%s3 + $0x50] sm:$0xff]
    %v240 = vld [vmem:[%s3 + $0x58] sm:$0xff]
    %v241 = vld [vmem:[%s3 + $0x60] sm:$0xff]
    %v242 = vld [vmem:[%s3 + $0x68] sm:$0xff]
    %v243 = vld [vmem:[%s3 + $0x70] sm:$0xff]
    %v244 = vld [vmem:[%s3 + $0x78] sm:$0xff]
    %v245 = vld [vmem:[%s3 + $0x80] sm:$0xff]
    %v246 = vld [vmem:[%s3 + $0x88] sm:$0xff]
    %v247 = vld [vmem:[%s3 + $0x90] sm:$0xff]
    %v248 = vld [vmem:[%s3 + $0x98] sm:$0xff]
    %v249 = vld [vmem:[%s3 + $0xa0] sm:$0xff]
    %v250 = vld [vmem:[%s3 + $0xa8] sm:$0xff]
    %v251 = vld [vmem:[%s3 + $0xb0] sm:$0xff]
    %v252 = vld [vmem:[%s3 + $0xb8] sm:$0xff]
    %v253 = vld [vmem:[%s3 + $0xc0] sm:$0xff]
    %v254 = vld [vmem:[%s3 + $0xc8] sm:$0xff]
    %v255 = vld [vmem:[%s3 + $0xd0] sm:$0xff]
    %v256 = vld [vmem:[%s3 + $0xd8] sm:$0xff]
    %v257 = vld [vmem:[%s3 + $0xe0] sm:$0xff]
    %v258 = vld [vmem:[%s3 + $0xe8] sm:$0xff]
    %v259 = vld [vmem:[%s3 + $0xf0] sm:$0xff]
    %v260 = vld [vmem:[%s3 + $0xf8] sm:$0xff]
    %v261 = vld [vmem:[%s3 + $0x100] sm:$0xff]
    %v262 = vld [vmem:[%s3 + $0x108] sm:$0xff]
    %v263 = vld [vmem:[%s3 + $0x110] sm:$0xff]
    %v264 = vld [vmem:[%s3 + $0x118] sm:$0xff]
    %v265 = vld [vmem:[%s3 + $0x120] sm:$0xff]
    %v266 = vld [vmem:[%s3 + $0x128] sm:$0xff]
    %v267 = vld [vmem:[%s3 + $0x130] sm:$0xff]
    %v268 = vld [vmem:[%s3 + $0x138] sm:$0xff]
    %v269 = vld [vmem:[%s3 + $0x140] sm:$0xff]
    %v270 = vld [vmem:[%s3 + $0x148] sm:$0xff]
    %v271 = vld [vmem:[%s3 + $0x150] sm:$0xff]
    %v272 = vld [vmem:[%s3 + $0x158] sm:$0xff]
    %v273 = vld [vmem:[%s3 + $0x160] sm:$0xff]
    %v274 = vld [vmem:[%s3 + $0x168] sm:$0xff]
    %v275 = vld [vmem:[%s3 + $0x170] sm:$0xff]
    %v276 = vld [vmem:[%s3 + $0x178] sm:$0xff]
    %v277 = vld [vmem:[%s3 + $0x180] sm:$0xff]
    %v278 = vld [vmem:[%s3 + $0x188] sm:$0xff]
    %v279 = vld [vmem:[%s3 + $0x190] sm:$0xff]
    %v280 = vld [vmem:[%s3 + $0x198] sm:$0xff]
    %v281 = vld [vmem:[%s3 + $0x1a0] sm:$0xff]
    %v282 = vld [vmem:[%s3 + $0x1a8] sm:$0xff]
    %v283 = vld [vmem:[%s3 + $0x1b0] sm:$0xff]
    %v284 = vld [vmem:[%s3 + $0x1b8] sm:$0xff]
    %v285 = vld [vmem:[%s3 + $0x1c0] sm:$0xff]
    %v286 = vld [vmem:[%s3 + $0x1c8] sm:$0xff]
    %v287 = vld [vmem:[%s3 + $0x1d0] sm:$0xff]
    %v288 = vld [vmem:[%s3 + $0x1d8] sm:$0xff]
    %v289 = vld [vmem:[%s3 + $0x1e0] sm:$0xff]
    %v290 = vld [vmem:[%s3 + $0x1e8] sm:$0xff]
    %v291 = vld [vmem:[%s3 + $0x1f0] sm:$0xff]
    %v292 = vld [vmem:[%s3 + $0x1f8] sm:$0xff]
    %v293 = vld [vmem:[%s3 + $0x200] sm:$0xff]
    %v294 = vld [vmem:[%s3 + $0x208] sm:$0xff]
    %v295 = vld [vmem:[%s3 + $0x210] sm:$0xff]
    %v296 = vld [vmem:[%s3 + $0x218] sm:$0xff]
    %v297 = vld [vmem:[%s3 + $0x220] sm:$0xff]
    %v298 = vld [vmem:[%s3 + $0x228] sm:$0xff]
    %v299 = vld [vmem:[%s3 + $0x230] sm:$0xff]
    %v300 = vld [vmem:[%s3 + $0x238] sm:$0xff]
    %v301 = vld [vmem:[%s3 + $0x240] sm:$0xff]
    %v302 = vld [vmem:[%s3 + $0x248] sm:$0xff]
    %v303 = vld [vmem:[%s3 + $0x250] sm:$0xff]
    %v304 = vld [vmem:[%s3 + $0x258] sm:$0xff]
    %v305 = vld [vmem:[%s3 + $0x260] sm:$0xff]
    %v306 = vld [vmem:[%s3 + $0x268] sm:$0xff]
    %v307 = vld [vmem:[%s3 + $0x270] sm:$0xff]
    %v308 = vld [vmem:[%s3 + $0x278] sm:$0xff]
    %v309 = vld [vmem:[%s3 + $0x280] sm:$0xff]
    %v310 = vld [vmem:[%s3 + $0x288] sm:$0xff]
    %v311 = vld [vmem:[%s3 + $0x290] sm:$0xff]
    %v312 = vld [vmem:[%s3 + $0x298] sm:$0xff]
    %v313 = vld [vmem:[%s3 + $0x2a0] sm:$0xff]
    %v314 = vld [vmem:[%s3 + $0x2a8] sm:$0xff]
    %v315 = vld [vmem:[%s3 + $0x2b0] sm:$0xff]
    %v316 = vld [vmem:[%s3 + $0x2b8] sm:$0xff]
    %v317 = vld [vmem:[%s3 + $0x2c0] sm:$0xff]
    %v318 = vld [vmem:[%s3 + $0x2c8] sm:$0xff]
    %v319 = vld [vmem:[%s3 + $0x2d0] sm:$0xff]
    %v320 = vld [vmem:[%s3 + $0x2d8] sm:$0xff]
    %v321 = vld [vmem:[%s3 + $0x2e0] sm:$0xff]
    %v322 = vld [vmem:[%s3 + $0x2e8] sm:$0xff]
    %v323 = vld [vmem:[%s3 + $0x2f0] sm:$0xff]
    %v324 = vld [vmem:[%s3 + $0x2f8] sm:$0xff]
    %v325 = vld [vmem:[%s3 + $0x300] sm:$0xff]
    %v326 = vld [vmem:[%s3 + $0x308] sm:$0xff]
    %v327 = vld [vmem:[%s3 + $0x310] sm:$0xff]
    %v328 = vld [vmem:[%s3 + $0x318] sm:$0xff]
    %v329 = vld [vmem:[%s3 + $0x320] sm:$0xff]
    %v330 = vld [vmem:[%s3 + $0x328] sm:$0xff]
    %v331 = vld [vmem:[%s3 + $0x330] sm:$0xff]
    %v332 = vld [vmem:[%s3 + $0x338] sm:$0xff]
    %v333 = vld [vmem:[%s3 + $0x340] sm:$0xff]
    %v334 = vld [vmem:[%s3 + $0x348] sm:$0xff]
    %v335 = vld [vmem:[%s3 + $0x350] sm:$0xff]
    %v336 = vld [vmem:[%s3 + $0x358] sm:$0xff]
    %v337 = vld [vmem:[%s3 + $0x360] sm:$0xff]
    %v338 = vld [vmem:[%s3 + $0x368] sm:$0xff]
    %v339 = vld [vmem:[%s3 + $0x370] sm:$0xff]
    %v340 = vld [vmem:[%s3 + $0x378] sm:$0xff]
    %v341 = vld [vmem:[%s3 + $0x380] sm:$0xff]
    %v342 = vld [vmem:[%s3 + $0x388] sm:$0xff]
    %v343 = vld [vmem:[%s3 + $0x390] sm:$0xff]
    %v344 = vld [vmem:[%s3 + $0x398] sm:$0xff]
    %v345 = vld [vmem:[%s3 + $0x3a0] sm:$0xff]
    %v346 = vld [vmem:[%s3 + $0x3a8] sm:$0xff]
    %v347 = vld [vmem:[%s3 + $0x3b0] sm:$0xff]
    %v348 = vld [vmem:[%s3 + $0x3b8] sm:$0xff]
    %v349 = vld [vmem:[%s3 + $0x3c0] sm:$0xff]
    %v350 = vld [vmem:[%s3 + $0x3c8] sm:$0xff]
    %v351 = vld [vmem:[%s3 + $0x3d0] sm:$0xff]
    %v352 = vld [vmem:[%s3 + $0x3d8] sm:$0xff]
    %v353 = vld [vmem:[%s3 + $0x3e0] sm:$0xff]
    %v354 = vld [vmem:[%s3 + $0x3e8] sm:$0xff]
    %v355 = vld [vmem:[%s3 + $0x3f0] sm:$0xff]
    %v356 = vld [vmem:[%s3 + $0x3f8] sm:$0xff]
    %v357 = vld [vmem:[%s4] sm:$0xf]
    %v359 = vlaneseq
    %v360 = vshrl.u32 %v359, 7
    %v361 = vsub.s32 0, %v360
    %v362 = vrot.slane %v357, %v361
    %v363 = vlaneseq
    %v364 = vshrl.u32 %v363, 7
    %v365 = vsub.s32 1, %v364
    %v366 = vrot.slane %v357, %v365
    %v367 = vlaneseq
    %v368 = vshrl.u32 %v367, 7
    %v369 = vsub.s32 2, %v368
    %v370 = vrot.slane %v357, %v369
    %v371 = vlaneseq
    %v372 = vshrl.u32 %v371, 7
    %v373 = vsub.s32 3, %v372
    %v374 = vrot.slane %v357, %v373
    %v507 = vunpack.c.l.b16 %v229
    %v508 = vunpack.c.h.b16 %v229
    %v509 = vunpack.c.l.b16 %v230
    %v510 = vunpack.c.h.b16 %v230
    %v511 = vunpack.c.l.b16 %v231
    %v512 = vunpack.c.h.b16 %v231
    %v513 = vunpack.c.l.b16 %v232
    %v514 = vunpack.c.h.b16 %v232
    %v515 = vunpack.c.l.b16 %v233
    %v516 = vunpack.c.h.b16 %v233
    %v517 = vunpack.c.l.b16 %v234
    %v518 = vunpack.c.h.b16 %v234
    %v519 = vunpack.c.l.b16 %v235
    %v520 = vunpack.c.h.b16 %v235
    %v521 = vunpack.c.l.b16 %v236
    %v522 = vunpack.c.h.b16 %v236
    %v523 = vunpack.c.l.b16 %v237
    %v524 = vunpack.c.h.b16 %v237
    %v525 = vunpack.c.l.b16 %v238
    %v526 = vunpack.c.h.b16 %v238
    %v527 = vunpack.c.l.b16 %v239
    %v528 = vunpack.c.h.b16 %v239
    %v529 = vunpack.c.l.b16 %v240
    %v530 = vunpack.c.h.b16 %v240
    %v531 = vunpack.c.l.b16 %v241
    %v532 = vunpack.c.h.b16 %v241
    %v533 = vunpack.c.l.b16 %v242
    %v534 = vunpack.c.h.b16 %v242
    %v535 = vunpack.c.l.b16 %v243
    %v536 = vunpack.c.h.b16 %v243
    %v537 = vunpack.c.l.b16 %v244
    %v538 = vunpack.c.h.b16 %v244
    %v539 = vunpack.c.l.b16 %v245
    %v540 = vunpack.c.h.b16 %v245
    %v541 = vunpack.c.l.b16 %v246
    %v542 = vunpack.c.h.b16 %v246
    %v543 = vunpack.c.l.b16 %v247
    %v544 = vunpack.c.h.b16 %v247
    %v545 = vunpack.c.l.b16 %v248
    %v546 = vunpack.c.h.b16 %v248
    %v547 = vunpack.c.l.b16 %v249
    %v548 = vunpack.c.h.b16 %v249
    %v549 = vunpack.c.l.b16 %v250
    %v550 = vunpack.c.h.b16 %v250
    %v551 = vunpack.c.l.b16 %v251
    %v552 = vunpack.c.h.b16 %v251
    %v553 = vunpack.c.l.b16 %v252
    %v554 = vunpack.c.h.b16 %v252
    %v555 = vunpack.c.l.b16 %v253
    %v556 = vunpack.c.h.b16 %v253
    %v557 = vunpack.c.l.b16 %v254
    %v558 = vunpack.c.h.b16 %v254
    %v559 = vunpack.c.l.b16 %v255
    %v560 = vunpack.c.h.b16 %v255
    %v561 = vunpack.c.l.b16 %v256
    %v562 = vunpack.c.h.b16 %v256
    %v563 = vunpack.c.l.b16 %v257
    %v564 = vunpack.c.h.b16 %v257
    %v565 = vunpack.c.l.b16 %v258
    %v566 = vunpack.c.h.b16 %v258
    %v567 = vunpack.c.l.b16 %v259
    %v568 = vunpack.c.h.b16 %v259
    %v569 = vunpack.c.l.b16 %v260
    %v570 = vunpack.c.h.b16 %v260
    %v571 = vunpack.c.l.b16 %v261
    %v572 = vunpack.c.h.b16 %v261
    %v573 = vunpack.c.l.b16 %v262
    %v574 = vunpack.c.h.b16 %v262
    %v575 = vunpack.c.l.b16 %v263
    %v576 = vunpack.c.h.b16 %v263
    %v577 = vunpack.c.l.b16 %v264
    %v578 = vunpack.c.h.b16 %v264
    %v579 = vunpack.c.l.b16 %v265
    %v580 = vunpack.c.h.b16 %v265
    %v581 = vunpack.c.l.b16 %v266
    %v582 = vunpack.c.h.b16 %v266
    %v583 = vunpack.c.l.b16 %v267
    %v584 = vunpack.c.h.b16 %v267
    %v585 = vunpack.c.l.b16 %v268
    %v586 = vunpack.c.h.b16 %v268
    %v587 = vunpack.c.l.b16 %v269
    %v588 = vunpack.c.h.b16 %v269
    %v589 = vunpack.c.l.b16 %v270
    %v590 = vunpack.c.h.b16 %v270
    %v591 = vunpack.c.l.b16 %v271
    %v592 = vunpack.c.h.b16 %v271
    %v593 = vunpack.c.l.b16 %v272
    %v594 = vunpack.c.h.b16 %v272
    %v595 = vunpack.c.l.b16 %v273
    %v596 = vunpack.c.h.b16 %v273
    %v597 = vunpack.c.l.b16 %v274
    %v598 = vunpack.c.h.b16 %v274
    %v599 = vunpack.c.l.b16 %v275
    %v600 = vunpack.c.h.b16 %v275
    %v601 = vunpack.c.l.b16 %v276
    %v602 = vunpack.c.h.b16 %v276
    %v603 = vunpack.c.l.b16 %v277
    %v604 = vunpack.c.h.b16 %v277
    %v605 = vunpack.c.l.b16 %v278
    %v606 = vunpack.c.h.b16 %v278
    %v607 = vunpack.c.l.b16 %v279
    %v608 = vunpack.c.h.b16 %v279
    %v609 = vunpack.c.l.b16 %v280
    %v610 = vunpack.c.h.b16 %v280
    %v611 = vunpack.c.l.b16 %v281
    %v612 = vunpack.c.h.b16 %v281
    %v613 = vunpack.c.l.b16 %v282
    %v614 = vunpack.c.h.b16 %v282
    %v615 = vunpack.c.l.b16 %v283
    %v616 = vunpack.c.h.b16 %v283
    %v617 = vunpack.c.l.b16 %v284
    %v618 = vunpack.c.h.b16 %v284
    %v619 = vunpack.c.l.b16 %v285
    %v620 = vunpack.c.h.b16 %v285
    %v621 = vunpack.c.l.b16 %v286
    %v622 = vunpack.c.h.b16 %v286
    %v623 = vunpack.c.l.b16 %v287
    %v624 = vunpack.c.h.b16 %v287
    %v625 = vunpack.c.l.b16 %v288
    %v626 = vunpack.c.h.b16 %v288
    %v627 = vunpack.c.l.b16 %v289
    %v628 = vunpack.c.h.b16 %v289
    %v629 = vunpack.c.l.b16 %v290
    %v630 = vunpack.c.h.b16 %v290
    %v631 = vunpack.c.l.b16 %v291
    %v632 = vunpack.c.h.b16 %v291
    %v633 = vunpack.c.l.b16 %v292
    %v634 = vunpack.c.h.b16 %v292
    %v635 = vunpack.c.l.b16 %v293
    %v636 = vunpack.c.h.b16 %v293
    %v637 = vunpack.c.l.b16 %v294
    %v638 = vunpack.c.h.b16 %v294
    %v639 = vunpack.c.l.b16 %v295
    %v640 = vunpack.c.h.b16 %v295
    %v641 = vunpack.c.l.b16 %v296
    %v642 = vunpack.c.h.b16 %v296
    %v643 = vunpack.c.l.b16 %v297
    %v644 = vunpack.c.h.b16 %v297
    %v645 = vunpack.c.l.b16 %v298
    %v646 = vunpack.c.h.b16 %v298
    %v647 = vunpack.c.l.b16 %v299
    %v648 = vunpack.c.h.b16 %v299
    %v649 = vunpack.c.l.b16 %v300
    %v650 = vunpack.c.h.b16 %v300
    %v651 = vunpack.c.l.b16 %v301
    %v652 = vunpack.c.h.b16 %v301
    %v653 = vunpack.c.l.b16 %v302
    %v654 = vunpack.c.h.b16 %v302
    %v655 = vunpack.c.l.b16 %v303
    %v656 = vunpack.c.h.b16 %v303
    %v657 = vunpack.c.l.b16 %v304
    %v658 = vunpack.c.h.b16 %v304
    %v659 = vunpack.c.l.b16 %v305
    %v660 = vunpack.c.h.b16 %v305
    %v661 = vunpack.c.l.b16 %v306
    %v662 = vunpack.c.h.b16 %v306
    %v663 = vunpack.c.l.b16 %v307
    %v664 = vunpack.c.h.b16 %v307
    %v665 = vunpack.c.l.b16 %v308
    %v666 = vunpack.c.h.b16 %v308
    %v667 = vunpack.c.l.b16 %v309
    %v668 = vunpack.c.h.b16 %v309
    %v669 = vunpack.c.l.b16 %v310
    %v670 = vunpack.c.h.b16 %v310
    %v671 = vunpack.c.l.b16 %v311
    %v672 = vunpack.c.h.b16 %v311
    %v673 = vunpack.c.l.b16 %v312
    %v674 = vunpack.c.h.b16 %v312
    %v675 = vunpack.c.l.b16 %v313
    %v676 = vunpack.c.h.b16 %v313
    %v677 = vunpack.c.l.b16 %v314
    %v678 = vunpack.c.h.b16 %v314
    %v679 = vunpack.c.l.b16 %v315
    %v680 = vunpack.c.h.b16 %v315
    %v681 = vunpack.c.l.b16 %v316
    %v682 = vunpack.c.h.b16 %v316
    %v683 = vunpack.c.l.b16 %v317
    %v684 = vunpack.c.h.b16 %v317
    %v685 = vunpack.c.l.b16 %v318
    %v686 = vunpack.c.h.b16 %v318
    %v687 = vunpack.c.l.b16 %v319
    %v688 = vunpack.c.h.b16 %v319
    %v689 = vunpack.c.l.b16 %v320
    %v690 = vunpack.c.h.b16 %v320
    %v691 = vunpack.c.l.b16 %v321
    %v692 = vunpack.c.h.b16 %v321
    %v693 = vunpack.c.l.b16 %v322
    %v694 = vunpack.c.h.b16 %v322
    %v695 = vunpack.c.l.b16 %v323
    %v696 = vunpack.c.h.b16 %v323
    %v697 = vunpack.c.l.b16 %v324
    %v698 = vunpack.c.h.b16 %v324
    %v699 = vunpack.c.l.b16 %v325
    %v700 = vunpack.c.h.b16 %v325
    %v701 = vunpack.c.l.b16 %v326
    %v702 = vunpack.c.h.b16 %v326
    %v703 = vunpack.c.l.b16 %v327
    %v704 = vunpack.c.h.b16 %v327
    %v705 = vunpack.c.l.b16 %v328
    %v706 = vunpack.c.h.b16 %v328
    %v707 = vunpack.c.l.b16 %v329
    %v708 = vunpack.c.h.b16 %v329
    %v709 = vunpack.c.l.b16 %v330
    %v710 = vunpack.c.h.b16 %v330
    %v711 = vunpack.c.l.b16 %v331
    %v712 = vunpack.c.h.b16 %v331
    %v713 = vunpack.c.l.b16 %v332
    %v714 = vunpack.c.h.b16 %v332
    %v715 = vunpack.c.l.b16 %v333
    %v716 = vunpack.c.h.b16 %v333
    %v717 = vunpack.c.l.b16 %v334
    %v718 = vunpack.c.h.b16 %v334
    %v719 = vunpack.c.l.b16 %v335
    %v720 = vunpack.c.h.b16 %v335
    %v721 = vunpack.c.l.b16 %v336
    %v722 = vunpack.c.h.b16 %v336
    %v723 = vunpack.c.l.b16 %v337
    %v724 = vunpack.c.h.b16 %v337
    %v725 = vunpack.c.l.b16 %v338
    %v726 = vunpack.c.h.b16 %v338
    %v727 = vunpack.c.l.b16 %v339
    %v728 = vunpack.c.h.b16 %v339
    %v729 = vunpack.c.l.b16 %v340
    %v730 = vunpack.c.h.b16 %v340
    %v731 = vunpack.c.l.b16 %v341
    %v732 = vunpack.c.h.b16 %v341
    %v733 = vunpack.c.l.b16 %v342
    %v734 = vunpack.c.h.b16 %v342
    %v735 = vunpack.c.l.b16 %v343
    %v736 = vunpack.c.h.b16 %v343
    %v737 = vunpack.c.l.b16 %v344
    %v738 = vunpack.c.h.b16 %v344
    %v739 = vunpack.c.l.b16 %v345
    %v740 = vunpack.c.h.b16 %v345
    %v741 = vunpack.c.l.b16 %v346
    %v742 = vunpack.c.h.b16 %v346
    %v743 = vunpack.c.l.b16 %v347
    %v744 = vunpack.c.h.b16 %v347
    %v745 = vunpack.c.l.b16 %v348
    %v746 = vunpack.c.h.b16 %v348
    %v747 = vunpack.c.l.b16 %v349
    %v748 = vunpack.c.h.b16 %v349
    %v749 = vunpack.c.l.b16 %v350
    %v750 = vunpack.c.h.b16 %v350
    %v751 = vunpack.c.l.b16 %v351
    %v752 = vunpack.c.h.b16 %v351
    %v753 = vunpack.c.l.b16 %v352
    %v754 = vunpack.c.h.b16 %v352
    %v755 = vunpack.c.l.b16 %v353
    %v756 = vunpack.c.h.b16 %v353
    %v757 = vunpack.c.l.b16 %v354
    %v758 = vunpack.c.h.b16 %v354
    %v759 = vunpack.c.l.b16 %v355
    %v760 = vunpack.c.h.b16 %v355
    %v761 = vunpack.c.l.b16 %v356
    %v762 = vunpack.c.h.b16 %v356
    %v763 = vpack.c.b16 %v511, %v507
    %v764 = vpack.c.b16 %v512, %v508
    %v765 = vpack.c.b16 %v513, %v509
    %v766 = vpack.c.b16 %v514, %v510
    %v767 = vpack.c.b16 %v519, %v515
    %v768 = vpack.c.b16 %v520, %v516
    %v769 = vpack.c.b16 %v521, %v517
    %v770 = vpack.c.b16 %v522, %v518
    %v771 = vpack.c.b16 %v527, %v523
    %v772 = vpack.c.b16 %v528, %v524
    %v773 = vpack.c.b16 %v529, %v525
    %v774 = vpack.c.b16 %v530, %v526
    %v775 = vpack.c.b16 %v535, %v531
    %v776 = vpack.c.b16 %v536, %v532
    %v777 = vpack.c.b16 %v537, %v533
    %v778 = vpack.c.b16 %v538, %v534
    %v779 = vpack.c.b16 %v543, %v539
    %v780 = vpack.c.b16 %v544, %v540
    %v781 = vpack.c.b16 %v545, %v541
    %v782 = vpack.c.b16 %v546, %v542
    %v783 = vpack.c.b16 %v551, %v547
    %v784 = vpack.c.b16 %v552, %v548
    %v785 = vpack.c.b16 %v553, %v549
    %v786 = vpack.c.b16 %v554, %v550
    %v787 = vpack.c.b16 %v559, %v555
    %v788 = vpack.c.b16 %v560, %v556
    %v789 = vpack.c.b16 %v561, %v557
    %v790 = vpack.c.b16 %v562, %v558
    %v791 = vpack.c.b16 %v567, %v563
    %v792 = vpack.c.b16 %v568, %v564
    %v793 = vpack.c.b16 %v569, %v565
    %v794 = vpack.c.b16 %v570, %v566
    %v795 = vpack.c.b16 %v575, %v571
    %v796 = vpack.c.b16 %v576, %v572
    %v797 = vpack.c.b16 %v577, %v573
    %v798 = vpack.c.b16 %v578, %v574
    %v799 = vpack.c.b16 %v583, %v579
    %v800 = vpack.c.b16 %v584, %v580
    %v801 = vpack.c.b16 %v585, %v581
    %v802 = vpack.c.b16 %v586, %v582
    %v803 = vpack.c.b16 %v591, %v587
    %v804 = vpack.c.b16 %v592, %v588
    %v805 = vpack.c.b16 %v593, %v589
    %v806 = vpack.c.b16 %v594, %v590
    %v807 = vpack.c.b16 %v599, %v595
    %v808 = vpack.c.b16 %v600, %v596
    %v809 = vpack.c.b16 %v601, %v597
    %v810 = vpack.c.b16 %v602, %v598
    %v811 = vpack.c.b16 %v607, %v603
    %v812 = vpack.c.b16 %v608, %v604
    %v813 = vpack.c.b16 %v609, %v605
    %v814 = vpack.c.b16 %v610, %v606
    %v815 = vpack.c.b16 %v615, %v611
    %v816 = vpack.c.b16 %v616, %v612
    %v817 = vpack.c.b16 %v617, %v613
    %v818 = vpack.c.b16 %v618, %v614
    %v819 = vpack.c.b16 %v623, %v619
    %v820 = vpack.c.b16 %v624, %v620
    %v821 = vpack.c.b16 %v625, %v621
    %v822 = vpack.c.b16 %v626, %v622
    %v823 = vpack.c.b16 %v631, %v627
    %v824 = vpack.c.b16 %v632, %v628
    %v825 = vpack.c.b16 %v633, %v629
    %v826 = vpack.c.b16 %v634, %v630
    %v827 = vpack.c.b16 %v639, %v635
    %v828 = vpack.c.b16 %v640, %v636
    %v829 = vpack.c.b16 %v641, %v637
    %v830 = vpack.c.b16 %v642, %v638
    %v831 = vpack.c.b16 %v647, %v643
    %v832 = vpack.c.b16 %v648, %v644
    %v833 = vpack.c.b16 %v649, %v645
    %v834 = vpack.c.b16 %v650, %v646
    %v835 = vpack.c.b16 %v655, %v651
    %v836 = vpack.c.b16 %v656, %v652
    %v837 = vpack.c.b16 %v657, %v653
    %v838 = vpack.c.b16 %v658, %v654
    %v839 = vpack.c.b16 %v663, %v659
    %v840 = vpack.c.b16 %v664, %v660
    %v841 = vpack.c.b16 %v665, %v661
    %v842 = vpack.c.b16 %v666, %v662
    %v843 = vpack.c.b16 %v671, %v667
    %v844 = vpack.c.b16 %v672, %v668
    %v845 = vpack.c.b16 %v673, %v669
    %v846 = vpack.c.b16 %v674, %v670
    %v847 = vpack.c.b16 %v679, %v675
    %v848 = vpack.c.b16 %v680, %v676
    %v849 = vpack.c.b16 %v681, %v677
    %v850 = vpack.c.b16 %v682, %v678
    %v851 = vpack.c.b16 %v687, %v683
    %v852 = vpack.c.b16 %v688, %v684
    %v853 = vpack.c.b16 %v689, %v685
    %v854 = vpack.c.b16 %v690, %v686
    %v855 = vpack.c.b16 %v695, %v691
    %v856 = vpack.c.b16 %v696, %v692
    %v857 = vpack.c.b16 %v697, %v693
    %v858 = vpack.c.b16 %v698, %v694
    %v859 = vpack.c.b16 %v703, %v699
    %v860 = vpack.c.b16 %v704, %v700
    %v861 = vpack.c.b16 %v705, %v701
    %v862 = vpack.c.b16 %v706, %v702
    %v863 = vpack.c.b16 %v711, %v707
    %v864 = vpack.c.b16 %v712, %v708
    %v865 = vpack.c.b16 %v713, %v709
    %v866 = vpack.c.b16 %v714, %v710
    %v867 = vpack.c.b16 %v719, %v715
    %v868 = vpack.c.b16 %v720, %v716
    %v869 = vpack.c.b16 %v721, %v717
    %v870 = vpack.c.b16 %v722, %v718
    %v871 = vpack.c.b16 %v727, %v723
    %v872 = vpack.c.b16 %v728, %v724
    %v873 = vpack.c.b16 %v729, %v725
    %v874 = vpack.c.b16 %v730, %v726
    %v875 = vpack.c.b16 %v735, %v731
    %v876 = vpack.c.b16 %v736, %v732
    %v877 = vpack.c.b16 %v737, %v733
    %v878 = vpack.c.b16 %v738, %v734
    %v879 = vpack.c.b16 %v743, %v739
    %v880 = vpack.c.b16 %v744, %v740
    %v881 = vpack.c.b16 %v745, %v741
    %v882 = vpack.c.b16 %v746, %v742
    %v883 = vpack.c.b16 %v751, %v747
    %v884 = vpack.c.b16 %v752, %v748
    %v885 = vpack.c.b16 %v753, %v749
    %v886 = vpack.c.b16 %v754, %v750
    %v887 = vpack.c.b16 %v759, %v755
    %v888 = vpack.c.b16 %v760, %v756
    %v889 = vpack.c.b16 %v761, %v757
    %v890 = vpack.c.b16 %v762, %v758
    %1019 = vmatprep.subr.bf16.mxu0 %v792
    %1020 = vmatpush1.bf16.msra.mxu0 %v791
    %1021 = vmatprep.subr.bf16.mxu0 %v788
    %1022 = vmatpush1.bf16.msra.mxu0 %v787
    %1023 = vmatprep.subr.bf16.mxu0 %v784
    %1024 = vmatpush1.bf16.msra.mxu0 %v783
    %1025 = vmatprep.subr.bf16.mxu0 %v780
    %1026 = vmatpush1.bf16.msra.mxu0 %v779
    %1027 = vmatprep.subr.bf16.mxu0 %v776
    %1028 = vmatpush1.bf16.msra.mxu0 %v775
    %1029 = vmatprep.subr.bf16.mxu0 %v772
    %1030 = vmatpush1.bf16.msra.mxu0 %v771
    %1031 = vmatprep.subr.bf16.mxu0 %v768
    %1032 = vmatpush1.bf16.msra.mxu0 %v767
    %1033 = vmatprep.subr.bf16.mxu0 %v764
    %1034 = vmatpush1.bf16.msra.mxu0 %v763
    %1035 = vmatprep.subr.bf16.mxu0 %v824
    %1036 = vmatpush2.bf16.msra.mxu0 %v823
    %1037 = vmatprep.subr.bf16.mxu0 %v820
    %1038 = vmatpush2.bf16.msra.mxu0 %v819
    %1039 = vmatprep.subr.bf16.mxu0 %v816
    %1040 = vmatpush2.bf16.msra.mxu0 %v815
    %1041 = vmatprep.subr.bf16.mxu0 %v812
    %1042 = vmatpush2.bf16.msra.mxu0 %v811
    %1043 = vmatprep.subr.bf16.mxu0 %v808
    %1044 = vmatpush2.bf16.msra.mxu0 %v807
    %1045 = vmatprep.subr.bf16.mxu0 %v804
    %1046 = vmatpush2.bf16.msra.mxu0 %v803
    %1047 = vmatprep.subr.bf16.mxu0 %v800
    %1048 = vmatpush2.bf16.msra.mxu0 %v799
    %1049 = vmatprep.subr.bf16.mxu0 %v796
    %1050 = vmatpush2.bf16.msra.mxu0 %v795
    %1051 = vmatprep.mubr.bf16.mxu0 %v226
    %1052 = vmatmul.mubr.bf16.gmra.mxu0 %v225
    %v1053 = vpop.f32.mrf.mxu0
    %v1054 = vadd.f32 %v362, %v1053
    %v1055 = vpop.f32.mrf.mxu0
    %v1056 = vadd.f32 %v366, %v1055
    %v1057 = vpop.f32.mrf.mxu0
    %v1058 = vadd.f32 %v362, %v1057
    %v1059 = vpop.f32.mrf.mxu0
    %v1060 = vadd.f32 %v366, %v1059
    %1061 = vdwg.mxu0
    %1062 = vmatprep.subr.bf16.mxu0 %v856
    %1063 = vmatpush1.bf16.msra.mxu0 %v855
    %1064 = vmatprep.subr.bf16.mxu0 %v852
    %1065 = vmatpush1.bf16.msra.mxu0 %v851
    %1066 = vmatprep.subr.bf16.mxu0 %v848
    %1067 = vmatpush1.bf16.msra.mxu0 %v847
    %1068 = vmatprep.subr.bf16.mxu0 %v844
    %1069 = vmatpush1.bf16.msra.mxu0 %v843
    %1070 = vmatprep.subr.bf16.mxu0 %v840
    %1071 = vmatpush1.bf16.msra.mxu0 %v839
    %1072 = vmatprep.subr.bf16.mxu0 %v836
    %1073 = vmatpush1.bf16.msra.mxu0 %v835
    %1074 = vmatprep.subr.bf16.mxu0 %v832
    %1075 = vmatpush1.bf16.msra.mxu0 %v831
    %1076 = vmatprep.subr.bf16.mxu0 %v828
    %1077 = vmatpush1.bf16.msra.mxu0 %v827
    %1078 = vmatprep.subr.bf16.mxu0 %v888
    %1079 = vmatpush2.bf16.msra.mxu0 %v887
    %1080 = vmatprep.subr.bf16.mxu0 %v884
    %1081 = vmatpush2.bf16.msra.mxu0 %v883
    %1082 = vmatprep.subr.bf16.mxu0 %v880
    %1083 = vmatpush2.bf16.msra.mxu0 %v879
    %1084 = vmatprep.subr.bf16.mxu0 %v876
    %1085 = vmatpush2.bf16.msra.mxu0 %v875
    %1086 = vmatprep.subr.bf16.mxu0 %v872
    %1087 = vmatpush2.bf16.msra.mxu0 %v871
    %1088 = vmatprep.subr.bf16.mxu0 %v868
    %1089 = vmatpush2.bf16.msra.mxu0 %v867
    %1090 = vmatprep.subr.bf16.mxu0 %v864
    %1091 = vmatpush2.bf16.msra.mxu0 %v863
    %1092 = vmatprep.subr.bf16.mxu0 %v860
    %1093 = vmatpush2.bf16.msra.mxu0 %v859
    %1094 = vmatprep.mubr.bf16.mxu0 %v228
    %1095 = vmatmul.mubr.bf16.gmra.mxu0 %v227
    %v1096 = vpop.f32.mrf.mxu0
    %v1097 = vadd.f32 %v1054, %v1096
    %v1098 = vpop.f32.mrf.mxu0
    %v1099 = vadd.f32 %v1056, %v1098
    %v1100 = vpop.f32.mrf.mxu0
    %v1101 = vadd.f32 %v1058, %v1100
    %v1102 = vpop.f32.mrf.mxu0
    %v1103 = vadd.f32 %v1060, %v1102
    %1104 = vdwg.mxu0
    %1105 = vmatprep.subr.bf16.mxu0 %v794
    %1106 = vmatpush1.bf16.msra.mxu0 %v793
    %1107 = vmatprep.subr.bf16.mxu0 %v790
    %1108 = vmatpush1.bf16.msra.mxu0 %v789
    %1109 = vmatprep.subr.bf16.mxu0 %v786
    %1110 = vmatpush1.bf16.msra.mxu0 %v785
    %1111 = vmatprep.subr.bf16.mxu0 %v782
    %1112 = vmatpush1.bf16.msra.mxu0 %v781
    %1113 = vmatprep.subr.bf16.mxu0 %v778
    %1114 = vmatpush1.bf16.msra.mxu0 %v777
    %1115 = vmatprep.subr.bf16.mxu0 %v774
    %1116 = vmatpush1.bf16.msra.mxu0 %v773
    %1117 = vmatprep.subr.bf16.mxu0 %v770
    %1118 = vmatpush1.bf16.msra.mxu0 %v769
    %1119 = vmatprep.subr.bf16.mxu0 %v766
    %1120 = vmatpush1.bf16.msra.mxu0 %v765
    %1121 = vmatprep.subr.bf16.mxu0 %v826
    %1122 = vmatpush2.bf16.msra.mxu0 %v825
    %1123 = vmatprep.subr.bf16.mxu0 %v822
    %1124 = vmatpush2.bf16.msra.mxu0 %v821
    %1125 = vmatprep.subr.bf16.mxu0 %v818
    %1126 = vmatpush2.bf16.msra.mxu0 %v817
    %1127 = vmatprep.subr.bf16.mxu0 %v814
    %1128 = vmatpush2.bf16.msra.mxu0 %v813
    %1129 = vmatprep.subr.bf16.mxu0 %v810
    %1130 = vmatpush2.bf16.msra.mxu0 %v809
    %1131 = vmatprep.subr.bf16.mxu0 %v806
    %1132 = vmatpush2.bf16.msra.mxu0 %v805
    %1133 = vmatprep.subr.bf16.mxu0 %v802
    %1134 = vmatpush2.bf16.msra.mxu0 %v801
    %1135 = vmatprep.subr.bf16.mxu0 %v798
    %1136 = vmatpush2.bf16.msra.mxu0 %v797
    %1137 = vmatprep.mubr.bf16.mxu0 %v226
    %1138 = vmatmul.mubr.bf16.gmra.mxu0 %v225
    %v1139 = vpop.f32.mrf.mxu0
    %v1140 = vadd.f32 %v370, %v1139
    %v1141 = vpop.f32.mrf.mxu0
    %v1142 = vadd.f32 %v374, %v1141
    %v1143 = vpop.f32.mrf.mxu0
    %v1144 = vadd.f32 %v370, %v1143
    %v1145 = vpop.f32.mrf.mxu0
    %v1146 = vadd.f32 %v374, %v1145
    %1147 = vdwg.mxu0
    %1148 = vmatprep.subr.bf16.mxu0 %v858
    %1149 = vmatpush1.bf16.msra.mxu0 %v857
    %1150 = vmatprep.subr.bf16.mxu0 %v854
    %1151 = vmatpush1.bf16.msra.mxu0 %v853
    %1152 = vmatprep.subr.bf16.mxu0 %v850
    %1153 = vmatpush1.bf16.msra.mxu0 %v849
    %1154 = vmatprep.subr.bf16.mxu0 %v846
    %1155 = vmatpush1.bf16.msra.mxu0 %v845
    %1156 = vmatprep.subr.bf16.mxu0 %v842
    %1157 = vmatpush1.bf16.msra.mxu0 %v841
    %1158 = vmatprep.subr.bf16.mxu0 %v838
    %1159 = vmatpush1.bf16.msra.mxu0 %v837
    %1160 = vmatprep.subr.bf16.mxu0 %v834
    %1161 = vmatpush1.bf16.msra.mxu0 %v833
    %1162 = vmatprep.subr.bf16.mxu0 %v830
    %1163 = vmatpush1.bf16.msra.mxu0 %v829
    %1164 = vmatprep.subr.bf16.mxu0 %v890
    %1165 = vmatpush2.bf16.msra.mxu0 %v889
    %1166 = vmatprep.subr.bf16.mxu0 %v886
    %1167 = vmatpush2.bf16.msra.mxu0 %v885
    %1168 = vmatprep.subr.bf16.mxu0 %v882
    %1169 = vmatpush2.bf16.msra.mxu0 %v881
    %1170 = vmatprep.subr.bf16.mxu0 %v878
    %1171 = vmatpush2.bf16.msra.mxu0 %v877
    %1172 = vmatprep.subr.bf16.mxu0 %v874
    %1173 = vmatpush2.bf16.msra.mxu0 %v873
    %1174 = vmatprep.subr.bf16.mxu0 %v870
    %1175 = vmatpush2.bf16.msra.mxu0 %v869
    %1176 = vmatprep.subr.bf16.mxu0 %v866
    %1177 = vmatpush2.bf16.msra.mxu0 %v865
    %1178 = vmatprep.subr.bf16.mxu0 %v862
    %1179 = vmatpush2.bf16.msra.mxu0 %v861
    %1180 = vmatprep.mubr.bf16.mxu0 %v228
    %1181 = vmatmul.mubr.bf16.gmra.mxu0 %v227
    %v1182 = vpop.f32.mrf.mxu0
    %v1183 = vadd.f32 %v1140, %v1182
    %v1184 = vpop.f32.mrf.mxu0
    %v1185 = vadd.f32 %v1142, %v1184
    %v1186 = vpop.f32.mrf.mxu0
    %v1187 = vadd.f32 %v1144, %v1186
    %v1188 = vpop.f32.mrf.mxu0
    %v1189 = vadd.f32 %v1146, %v1188
    %1190 = vdwg.mxu0
    %v1191 = vadd.f32 %v1097, %v1101
    %v1192 = vrot.slane %v1191, 4
    %v1193 = vadd.f32 %v1191, %v1192
    %v1194 = vrot.slane %v1193, 2
    %v1195 = vadd.f32 %v1193, %v1194
    %v1196 = vrot.slane %v1195, 1
    %v1197 = vadd.f32 %v1195, %v1196
    %v1198 = vadd.f32 %v1099, %v1103
    %v1199 = vrot.slane %v1198, 4
    %v1200 = vadd.f32 %v1198, %v1199
    %v1201 = vrot.slane %v1200, 2
    %v1202 = vadd.f32 %v1200, %v1201
    %v1203 = vrot.slane %v1202, 1
    %v1204 = vadd.f32 %v1202, %v1203
    %v1205 = vadd.f32 %v1183, %v1187
    %v1206 = vrot.slane %v1205, 4
    %v1207 = vadd.f32 %v1205, %v1206
    %v1208 = vrot.slane %v1207, 2
    %v1209 = vadd.f32 %v1207, %v1208
    %v1210 = vrot.slane %v1209, 1
    %v1211 = vadd.f32 %v1209, %v1210
    %v1212 = vadd.f32 %v1185, %v1189
    %v1213 = vrot.slane %v1212, 4
    %v1214 = vadd.f32 %v1212, %v1213
    %v1215 = vrot.slane %v1214, 2
    %v1216 = vadd.f32 %v1214, %v1215
    %v1217 = vrot.slane %v1216, 1
    %v1218 = vadd.f32 %v1216, %v1217
    %v1219 = vmul.f32 %v1197, 0.0625
    %v1220 = vmul.f32 %v1204, 0.0625
    %v1221 = vmul.f32 %v1211, 0.0625
    %v1222 = vmul.f32 %v1218, 0.0625
    %v1223 = vmul.f32 %v1097, %v1097
    %v1224 = vmul.f32 %v1099, %v1099
    %v1225 = vmul.f32 %v1183, %v1183
    %v1226 = vmul.f32 %v1185, %v1185
    %v1227 = vmul.f32 %v1101, %v1101
    %v1228 = vmul.f32 %v1103, %v1103
    %v1229 = vmul.f32 %v1187, %v1187
    %v1230 = vmul.f32 %v1189, %v1189
    %v1231 = vadd.f32 %v1223, %v1227
    %v1232 = vrot.slane %v1231, 4
    %v1233 = vadd.f32 %v1231, %v1232
    %v1234 = vrot.slane %v1233, 2
    %v1235 = vadd.f32 %v1233, %v1234
    %v1236 = vrot.slane %v1235, 1
    %v1237 = vadd.f32 %v1235, %v1236
    %v1238 = vadd.f32 %v1224, %v1228
    %v1239 = vrot.slane %v1238, 4
    %v1240 = vadd.f32 %v1238, %v1239
    %v1241 = vrot.slane %v1240, 2
    %v1242 = vadd.f32 %v1240, %v1241
    %v1243 = vrot.slane %v1242, 1
    %v1244 = vadd.f32 %v1242, %v1243
    %v1245 = vadd.f32 %v1225, %v1229
    %v1246 = vrot.slane %v1245, 4
    %v1247 = vadd.f32 %v1245, %v1246
    %v1248 = vrot.slane %v1247, 2
    %v1249 = vadd.f32 %v1247, %v1248
    %v1250 = vrot.slane %v1249, 1
    %v1251 = vadd.f32 %v1249, %v1250
    %v1252 = vadd.f32 %v1226, %v1230
    %v1253 = vrot.slane %v1252, 4
    %v1254 = vadd.f32 %v1252, %v1253
    %v1255 = vrot.slane %v1254, 2
    %v1256 = vadd.f32 %v1254, %v1255
    %v1257 = vrot.slane %v1256, 1
    %v1258 = vadd.f32 %v1256, %v1257
    %v1259 = vmul.f32 %v1237, 0.0625
    %v1260 = vmul.f32 %v1244, 0.0625
    %v1261 = vmul.f32 %v1251, 0.0625
    %v1262 = vmul.f32 %v1258, 0.0625
    %v1263 = vmul.f32 %v1219, %v1219
    %v1264 = vmul.f32 %v1220, %v1220
    %v1265 = vmul.f32 %v1221, %v1221
    %v1266 = vmul.f32 %v1222, %v1222
    %v1267 = vsub.f32 %v1259, %v1263
    %v1268 = vsub.f32 %v1260, %v1264
    %v1269 = vsub.f32 %v1261, %v1265
    %v1270 = vsub.f32 %v1262, %v1266
    %v1271 = vmax.f32 %v1267, 0.0
    %v1272 = vmax.f32 %v1268, 0.0
    %v1273 = vmax.f32 %v1269, 0.0
    %v1274 = vmax.f32 %v1270, 0.0
    %v1275 = vld [vmem:[%s5] sm:$0xf]
    %v1276 = vadd.f32 %v1271, 1e-05
    %v1277 = vadd.f32 %v1272, 1e-05
    %v1278 = vadd.f32 %v1273, 1e-05
    %v1279 = vadd.f32 %v1274, 1e-05
    %v1280 = vrsqrt.pop %v1276
    %v1281 = vrsqrt.pop %v1277
    %v1282 = vrsqrt.pop %v1278
    %v1283 = vrsqrt.pop %v1279
    %v1288 = vcombine.low %v1280, %v1281
    %v1289 = vcombine.low %v1282, %v1283
    %v1291 = vunpack.c.l.s4 1966171168
    %v1292 = vunpack.c.0.s8 %v1291
    %v1293 = vlaneseq
    %v1294 = vshrl.u32 %v1293, 7
    %v1295 = vsub.s32 %v1292, %v1294
    %v1296 = vrot.slane %v1288, %v1295
    %v1298 = vunpack.c.l.s4 1966171168
    %v1299 = vunpack.c.0.s8 %v1298
    %v1300 = vlaneseq
    %v1301 = vshrl.u32 %v1300, 7
    %v1302 = vsub.s32 %v1299, %v1301
    %v1303 = vrot.slane %v1289, %v1302
    %v1304 = vcombine.low %v1296, %v1303
    %v1306 = vunpack.c.l.s4 1966171168
    %v1307 = vunpack.c.0.s8 %v1306
    %v1308 = vlaneseq
    %v1309 = vshrl.u32 %v1308, 7
    %v1310 = vsub.s32 %v1307, %v1309
    %v1311 = vrot.slane %v1304, %v1310
    %v1313 = vmul.f32 %v1275, %v1311
    %v1315 = vlaneseq
    %v1316 = vshrl.u32 %v1315, 7
    %v1317 = vsub.s32 0, %v1316
    %v1318 = vrot.slane %v1313, %v1317
    %v1319 = vlaneseq
    %v1320 = vshrl.u32 %v1319, 7
    %v1321 = vsub.s32 1, %v1320
    %v1322 = vrot.slane %v1313, %v1321
    %v1323 = vlaneseq
    %v1324 = vshrl.u32 %v1323, 7
    %v1325 = vsub.s32 2, %v1324
    %v1326 = vrot.slane %v1313, %v1325
    %v1327 = vlaneseq
    %v1328 = vshrl.u32 %v1327, 7
    %v1329 = vsub.s32 3, %v1328
    %v1330 = vrot.slane %v1313, %v1329
    %v1335 = vmul.f32 %v1097, %v1318
    %v1336 = vmul.f32 %v1099, %v1322
    %v1337 = vmul.f32 %v1183, %v1326
    %v1338 = vmul.f32 %v1185, %v1330
    %v1339 = vmul.f32 %v1101, %v1318
    %v1340 = vmul.f32 %v1103, %v1322
    %v1341 = vmul.f32 %v1187, %v1326
    %v1342 = vmul.f32 %v1189, %v1330
    %v1343 = vld [vmem:[%s6] sm:$0xf]
    %v1344 = vmul.f32 %v1219, %v1318
    %v1345 = vmul.f32 %v1220, %v1322
    %v1346 = vmul.f32 %v1221, %v1326
    %v1347 = vmul.f32 %v1222, %v1330
    %v1352 = vcombine.low %v1344, %v1345
    %v1353 = vcombine.low %v1346, %v1347
    %v1355 = vunpack.c.l.s4 1966171168
    %v1356 = vunpack.c.0.s8 %v1355
    %v1357 = vlaneseq
    %v1358 = vshrl.u32 %v1357, 7
    %v1359 = vsub.s32 %v1356, %v1358
    %v1360 = vrot.slane %v1352, %v1359
    %v1362 = vunpack.c.l.s4 1966171168
    %v1363 = vunpack.c.0.s8 %v1362
    %v1364 = vlaneseq
    %v1365 = vshrl.u32 %v1364, 7
    %v1366 = vsub.s32 %v1363, %v1365
    %v1367 = vrot.slane %v1353, %v1366
    %v1368 = vcombine.low %v1360, %v1367
    %v1370 = vunpack.c.l.s4 1966171168
    %v1371 = vunpack.c.0.s8 %v1370
    %v1372 = vlaneseq
    %v1373 = vshrl.u32 %v1372, 7
    %v1374 = vsub.s32 %v1371, %v1373
    %v1375 = vrot.slane %v1368, %v1374
    %v1377 = vsub.f32 %v1343, %v1375
    %v1379 = vlaneseq
    %v1380 = vshrl.u32 %v1379, 7
    %v1381 = vsub.s32 0, %v1380
    %v1382 = vrot.slane %v1377, %v1381
    %v1383 = vlaneseq
    %v1384 = vshrl.u32 %v1383, 7
    %v1385 = vsub.s32 1, %v1384
    %v1386 = vrot.slane %v1377, %v1385
    %v1387 = vlaneseq
    %v1388 = vshrl.u32 %v1387, 7
    %v1389 = vsub.s32 2, %v1388
    %v1390 = vrot.slane %v1377, %v1389
    %v1391 = vlaneseq
    %v1392 = vshrl.u32 %v1391, 7
    %v1393 = vsub.s32 3, %v1392
    %v1394 = vrot.slane %v1377, %v1393
    %v1399 = vadd.f32 %v1335, %v1382
    %v1400 = vadd.f32 %v1336, %v1386
    %v1401 = vadd.f32 %v1337, %v1390
    %v1402 = vadd.f32 %v1338, %v1394
    %v1403 = vadd.f32 %v1339, %v1382
    %v1404 = vadd.f32 %v1340, %v1386
    %v1405 = vadd.f32 %v1341, %v1390
    %v1406 = vadd.f32 %v1342, %v1394
    %vm1407 = vcmp.gt.f32.partialorder %v1399, 0.0
    %vm1408 = vcmp.gt.f32.partialorder %v1400, 0.0
    %vm1409 = vcmp.gt.f32.partialorder %v1401, 0.0
    %vm1410 = vcmp.gt.f32.partialorder %v1402, 0.0
    %vm1411 = vcmp.gt.f32.partialorder %v1403, 0.0
    %vm1412 = vcmp.gt.f32.partialorder %v1404, 0.0
    %vm1413 = vcmp.gt.f32.partialorder %v1405, 0.0
    %vm1414 = vcmp.gt.f32.partialorder %v1406, 0.0
    %v1415 = vmul.f32 %v1399, 0.2
    %v1416 = vmul.f32 %v1400, 0.2
    %v1417 = vmul.f32 %v1401, 0.2
    %v1418 = vmul.f32 %v1402, 0.2
    %v1419 = vmul.f32 %v1403, 0.2
    %v1420 = vmul.f32 %v1404, 0.2
    %v1421 = vmul.f32 %v1405, 0.2
    %v1422 = vmul.f32 %v1406, 0.2
    %v1423 = vsel %vm1407, %v1399, %v1415
    %v1424 = vsel %vm1408, %v1400, %v1416
    %v1425 = vsel %vm1409, %v1401, %v1417
    %v1426 = vsel %vm1410, %v1402, %v1418
    %v1427 = vsel %vm1411, %v1403, %v1419
    %v1428 = vsel %vm1412, %v1404, %v1420
    %v1429 = vsel %vm1413, %v1405, %v1421
    %v1430 = vsel %vm1414, %v1406, %v1422
    %v1431 = vpack.c.bf16 %v1427, %v1423
    %v1432 = vpack.c.bf16 %v1428, %v1424
    %v1433 = vpack.c.bf16 %v1429, %v1425
    %v1434 = vpack.c.bf16 %v1430, %v1426
    %v1435 = vld [vmem:[#allocation3] sm:$0xff]
    %v1436 = vld [vmem:[#allocation3 + $0x8] sm:$0xff]
    %v1437 = vld [vmem:[#allocation3 + $0x10] sm:$0xff]
    %v1438 = vld [vmem:[#allocation3 + $0x18] sm:$0xff]
    %v1439 = vld [vmem:[#allocation3 + $0x20] sm:$0xff]
    %v1440 = vld [vmem:[#allocation3 + $0x28] sm:$0xff]
    %v1441 = vld [vmem:[#allocation3 + $0x30] sm:$0xff]
    %v1442 = vld [vmem:[#allocation3 + $0x38] sm:$0xff]
    %v1443 = vld [vmem:[#allocation3 + $0x40] sm:$0xff]
    %v1444 = vld [vmem:[#allocation3 + $0x48] sm:$0xff]
    %v1445 = vld [vmem:[#allocation3 + $0x50] sm:$0xff]
    %v1446 = vld [vmem:[#allocation3 + $0x58] sm:$0xff]
    %v1447 = vld [vmem:[#allocation3 + $0x60] sm:$0xff]
    %v1448 = vld [vmem:[#allocation3 + $0x68] sm:$0xff]
    %v1449 = vld [vmem:[#allocation3 + $0x70] sm:$0xff]
    %v1450 = vld [vmem:[#allocation3 + $0x78] sm:$0xff]
    %v1451 = vld [vmem:[#allocation3 + $0x80] sm:$0xff]
    %v1452 = vld [vmem:[#allocation3 + $0x88] sm:$0xff]
    %v1453 = vld [vmem:[#allocation3 + $0x90] sm:$0xff]
    %v1454 = vld [vmem:[#allocation3 + $0x98] sm:$0xff]
    %v1455 = vld [vmem:[#allocation3 + $0xa0] sm:$0xff]
    %v1456 = vld [vmem:[#allocation3 + $0xa8] sm:$0xff]
    %v1457 = vld [vmem:[#allocation3 + $0xb0] sm:$0xff]
    %v1458 = vld [vmem:[#allocation3 + $0xb8] sm:$0xff]
    %v1459 = vld [vmem:[#allocation3 + $0xc0] sm:$0xff]
    %v1460 = vld [vmem:[#allocation3 + $0xc8] sm:$0xff]
    %v1461 = vld [vmem:[#allocation3 + $0xd0] sm:$0xff]
    %v1462 = vld [vmem:[#allocation3 + $0xd8] sm:$0xff]
    %v1463 = vld [vmem:[#allocation3 + $0xe0] sm:$0xff]
    %v1464 = vld [vmem:[#allocation3 + $0xe8] sm:$0xff]
    %v1465 = vld [vmem:[#allocation3 + $0xf0] sm:$0xff]
    %v1466 = vld [vmem:[#allocation3 + $0xf8] sm:$0xff]
    %v1467 = vld [vmem:[#allocation3 + $0x100] sm:$0xff]
    %v1468 = vld [vmem:[#allocation3 + $0x108] sm:$0xff]
    %v1469 = vld [vmem:[#allocation3 + $0x110] sm:$0xff]
    %v1470 = vld [vmem:[#allocation3 + $0x118] sm:$0xff]
    %v1471 = vld [vmem:[#allocation3 + $0x120] sm:$0xff]
    %v1472 = vld [vmem:[#allocation3 + $0x128] sm:$0xff]
    %v1473 = vld [vmem:[#allocation3 + $0x130] sm:$0xff]
    %v1474 = vld [vmem:[#allocation3 + $0x138] sm:$0xff]
    %v1475 = vld [vmem:[#allocation3 + $0x140] sm:$0xff]
    %v1476 = vld [vmem:[#allocation3 + $0x148] sm:$0xff]
    %v1477 = vld [vmem:[#allocation3 + $0x150] sm:$0xff]
    %v1478 = vld [vmem:[#allocation3 + $0x158] sm:$0xff]
    %v1479 = vld [vmem:[#allocation3 + $0x160] sm:$0xff]
    %v1480 = vld [vmem:[#allocation3 + $0x168] sm:$0xff]
    %v1481 = vld [vmem:[#allocation3 + $0x170] sm:$0xff]
    %v1482 = vld [vmem:[#allocation3 + $0x178] sm:$0xff]
    %v1483 = vld [vmem:[#allocation3 + $0x180] sm:$0xff]
    %v1484 = vld [vmem:[#allocation3 + $0x188] sm:$0xff]
    %v1485 = vld [vmem:[#allocation3 + $0x190] sm:$0xff]
    %v1486 = vld [vmem:[#allocation3 + $0x198] sm:$0xff]
    %v1487 = vld [vmem:[#allocation3 + $0x1a0] sm:$0xff]
    %v1488 = vld [vmem:[#allocation3 + $0x1a8] sm:$0xff]
    %v1489 = vld [vmem:[#allocation3 + $0x1b0] sm:$0xff]
    %v1490 = vld [vmem:[#allocation3 + $0x1b8] sm:$0xff]
    %v1491 = vld [vmem:[#allocation3 + $0x1c0] sm:$0xff]
    %v1492 = vld [vmem:[#allocation3 + $0x1c8] sm:$0xff]
    %v1493 = vld [vmem:[#allocation3 + $0x1d0] sm:$0xff]
    %v1494 = vld [vmem:[#allocation3 + $0x1d8] sm:$0xff]
    %v1495 = vld [vmem:[#allocation3 + $0x1e0] sm:$0xff]
    %v1496 = vld [vmem:[#allocation3 + $0x1e8] sm:$0xff]
    %v1497 = vld [vmem:[#allocation3 + $0x1f0] sm:$0xff]
    %v1498 = vld [vmem:[#allocation3 + $0x1f8] sm:$0xff]
    %v1499 = vld [vmem:[#allocation3 + $0x200] sm:$0xff]
    %v1500 = vld [vmem:[#allocation3 + $0x208] sm:$0xff]
    %v1501 = vld [vmem:[#allocation3 + $0x210] sm:$0xff]
    %v1502 = vld [vmem:[#allocation3 + $0x218] sm:$0xff]
    %v1503 = vld [vmem:[#allocation3 + $0x220] sm:$0xff]
    %v1504 = vld [vmem:[#allocation3 + $0x228] sm:$0xff]
    %v1505 = vld [vmem:[#allocation3 + $0x230] sm:$0xff]
    %v1506 = vld [vmem:[#allocation3 + $0x238] sm:$0xff]
    %v1507 = vld [vmem:[#allocation3 + $0x240] sm:$0xff]
    %v1508 = vld [vmem:[#allocation3 + $0x248] sm:$0xff]
    %v1509 = vld [vmem:[#allocation3 + $0x250] sm:$0xff]
    %v1510 = vld [vmem:[#allocation3 + $0x258] sm:$0xff]
    %v1511 = vld [vmem:[#allocation3 + $0x260] sm:$0xff]
    %v1512 = vld [vmem:[#allocation3 + $0x268] sm:$0xff]
    %v1513 = vld [vmem:[#allocation3 + $0x270] sm:$0xff]
    %v1514 = vld [vmem:[#allocation3 + $0x278] sm:$0xff]
    %v1515 = vld [vmem:[#allocation3 + $0x280] sm:$0xff]
    %v1516 = vld [vmem:[#allocation3 + $0x288] sm:$0xff]
    %v1517 = vld [vmem:[#allocation3 + $0x290] sm:$0xff]
    %v1518 = vld [vmem:[#allocation3 + $0x298] sm:$0xff]
    %v1519 = vld [vmem:[#allocation3 + $0x2a0] sm:$0xff]
    %v1520 = vld [vmem:[#allocation3 + $0x2a8] sm:$0xff]
    %v1521 = vld [vmem:[#allocation3 + $0x2b0] sm:$0xff]
    %v1522 = vld [vmem:[#allocation3 + $0x2b8] sm:$0xff]
    %v1523 = vld [vmem:[#allocation3 + $0x2c0] sm:$0xff]
    %v1524 = vld [vmem:[#allocation3 + $0x2c8] sm:$0xff]
    %v1525 = vld [vmem:[#allocation3 + $0x2d0] sm:$0xff]
    %v1526 = vld [vmem:[#allocation3 + $0x2d8] sm:$0xff]
    %v1527 = vld [vmem:[#allocation3 + $0x2e0] sm:$0xff]
    %v1528 = vld [vmem:[#allocation3 + $0x2e8] sm:$0xff]
    %v1529 = vld [vmem:[#allocation3 + $0x2f0] sm:$0xff]
    %v1530 = vld [vmem:[#allocation3 + $0x2f8] sm:$0xff]
    %v1531 = vld [vmem:[#allocation3 + $0x300] sm:$0xff]
    %v1532 = vld [vmem:[#allocation3 + $0x308] sm:$0xff]
    %v1533 = vld [vmem:[#allocation3 + $0x310] sm:$0xff]
    %v1534 = vld [vmem:[#allocation3 + $0x318] sm:$0xff]
    %v1535 = vld [vmem:[#allocation3 + $0x320] sm:$0xff]
    %v1536 = vld [vmem:[#allocation3 + $0x328] sm:$0xff]
    %v1537 = vld [vmem:[#allocation3 + $0x330] sm:$0xff]
    %v1538 = vld [vmem:[#allocation3 + $0x338] sm:$0xff]
    %v1539 = vld [vmem:[#allocation3 + $0x340] sm:$0xff]
    %v1540 = vld [vmem:[#allocation3 + $0x348] sm:$0xff]
    %v1541 = vld [vmem:[#allocation3 + $0x350] sm:$0xff]
    %v1542 = vld [vmem:[#allocation3 + $0x358] sm:$0xff]
    %v1543 = vld [vmem:[#allocation3 + $0x360] sm:$0xff]
    %v1544 = vld [vmem:[#allocation3 + $0x368] sm:$0xff]
    %v1545 = vld [vmem:[#allocation3 + $0x370] sm:$0xff]
    %v1546 = vld [vmem:[#allocation3 + $0x378] sm:$0xff]
    %v1547 = vld [vmem:[#allocation3 + $0x380] sm:$0xff]
    %v1548 = vld [vmem:[#allocation3 + $0x388] sm:$0xff]
    %v1549 = vld [vmem:[#allocation3 + $0x390] sm:$0xff]
    %v1550 = vld [vmem:[#allocation3 + $0x398] sm:$0xff]
    %v1551 = vld [vmem:[#allocation3 + $0x3a0] sm:$0xff]
    %v1552 = vld [vmem:[#allocation3 + $0x3a8] sm:$0xff]
    %v1553 = vld [vmem:[#allocation3 + $0x3b0] sm:$0xff]
    %v1554 = vld [vmem:[#allocation3 + $0x3b8] sm:$0xff]
    %v1555 = vld [vmem:[#allocation3 + $0x3c0] sm:$0xff]
    %v1556 = vld [vmem:[#allocation3 + $0x3c8] sm:$0xff]
    %v1557 = vld [vmem:[#allocation3 + $0x3d0] sm:$0xff]
    %v1558 = vld [vmem:[#allocation3 + $0x3d8] sm:$0xff]
    %v1559 = vld [vmem:[#allocation3 + $0x3e0] sm:$0xff]
    %v1560 = vld [vmem:[#allocation3 + $0x3e8] sm:$0xff]
    %v1561 = vld [vmem:[#allocation3 + $0x3f0] sm:$0xff]
    %v1562 = vld [vmem:[#allocation3 + $0x3f8] sm:$0xff]
    %v1563 = vld [vmem:[%s8] sm:$0xf]
    %v1565 = vlaneseq
    %v1566 = vshrl.u32 %v1565, 7
    %v1567 = vsub.s32 0, %v1566
    %v1568 = vrot.slane %v1563, %v1567
    %v1569 = vlaneseq
    %v1570 = vshrl.u32 %v1569, 7
    %v1571 = vsub.s32 1, %v1570
    %v1572 = vrot.slane %v1563, %v1571
    %v1573 = vlaneseq
    %v1574 = vshrl.u32 %v1573, 7
    %v1575 = vsub.s32 2, %v1574
    %v1576 = vrot.slane %v1563, %v1575
    %v1577 = vlaneseq
    %v1578 = vshrl.u32 %v1577, 7
    %v1579 = vsub.s32 3, %v1578
    %v1580 = vrot.slane %v1563, %v1579
    %v1713 = vunpack.c.l.b16 %v1435
    %v1714 = vunpack.c.h.b16 %v1435
    %v1715 = vunpack.c.l.b16 %v1436
    %v1716 = vunpack.c.h.b16 %v1436
    %v1717 = vunpack.c.l.b16 %v1437
    %v1718 = vunpack.c.h.b16 %v1437
    %v1719 = vunpack.c.l.b16 %v1438
    %v1720 = vunpack.c.h.b16 %v1438
    %v1721 = vunpack.c.l.b16 %v1439
    %v1722 = vunpack.c.h.b16 %v1439
    %v1723 = vunpack.c.l.b16 %v1440
    %v1724 = vunpack.c.h.b16 %v1440
    %v1725 = vunpack.c.l.b16 %v1441
    %v1726 = vunpack.c.h.b16 %v1441
    %v1727 = vunpack.c.l.b16 %v1442
    %v1728 = vunpack.c.h.b16 %v1442
    %v1729 = vunpack.c.l.b16 %v1443
    %v1730 = vunpack.c.h.b16 %v1443
    %v1731 = vunpack.c.l.b16 %v1444
    %v1732 = vunpack.c.h.b16 %v1444
    %v1733 = vunpack.c.l.b16 %v1445
    %v1734 = vunpack.c.h.b16 %v1445
    %v1735 = vunpack.c.l.b16 %v1446
    %v1736 = vunpack.c.h.b16 %v1446
    %v1737 = vunpack.c.l.b16 %v1447
    %v1738 = vunpack.c.h.b16 %v1447
    %v1739 = vunpack.c.l.b16 %v1448
    %v1740 = vunpack.c.h.b16 %v1448
    %v1741 = vunpack.c.l.b16 %v1449
    %v1742 = vunpack.c.h.b16 %v1449
    %v1743 = vunpack.c.l.b16 %v1450
    %v1744 = vunpack.c.h.b16 %v1450
    %v1745 = vunpack.c.l.b16 %v1451
    %v1746 = vunpack.c.h.b16 %v1451
    %v1747 = vunpack.c.l.b16 %v1452
    %v1748 = vunpack.c.h.b16 %v1452
    %v1749 = vunpack.c.l.b16 %v1453
    %v1750 = vunpack.c.h.b16 %v1453
    %v1751 = vunpack.c.l.b16 %v1454
    %v1752 = vunpack.c.h.b16 %v1454
    %v1753 = vunpack.c.l.b16 %v1455
    %v1754 = vunpack.c.h.b16 %v1455
    %v1755 = vunpack.c.l.b16 %v1456
    %v1756 = vunpack.c.h.b16 %v1456
    %v1757 = vunpack.c.l.b16 %v1457
    %v1758 = vunpack.c.h.b16 %v1457
    %v1759 = vunpack.c.l.b16 %v1458
    %v1760 = vunpack.c.h.b16 %v1458
    %v1761 = vunpack.c.l.b16 %v1459
    %v1762 = vunpack.c.h.b16 %v1459
    %v1763 = vunpack.c.l.b16 %v1460
    %v1764 = vunpack.c.h.b16 %v1460
    %v1765 = vunpack.c.l.b16 %v1461
    %v1766 = vunpack.c.h.b16 %v1461
    %v1767 = vunpack.c.l.b16 %v1462
    %v1768 = vunpack.c.h.b16 %v1462
    %v1769 = vunpack.c.l.b16 %v1463
    %v1770 = vunpack.c.h.b16 %v1463
    %v1771 = vunpack.c.l.b16 %v1464
    %v1772 = vunpack.c.h.b16 %v1464
    %v1773 = vunpack.c.l.b16 %v1465
    %v1774 = vunpack.c.h.b16 %v1465
    %v1775 = vunpack.c.l.b16 %v1466
    %v1776 = vunpack.c.h.b16 %v1466
    %v1777 = vunpack.c.l.b16 %v1467
    %v1778 = vunpack.c.h.b16 %v1467
    %v1779 = vunpack.c.l.b16 %v1468
    %v1780 = vunpack.c.h.b16 %v1468
    %v1781 = vunpack.c.l.b16 %v1469
    %v1782 = vunpack.c.h.b16 %v1469
    %v1783 = vunpack.c.l.b16 %v1470
    %v1784 = vunpack.c.h.b16 %v1470
    %v1785 = vunpack.c.l.b16 %v1471
    %v1786 = vunpack.c.h.b16 %v1471
    %v1787 = vunpack.c.l.b16 %v1472
    %v1788 = vunpack.c.h.b16 %v1472
    %v1789 = vunpack.c.l.b16 %v1473
    %v1790 = vunpack.c.h.b16 %v1473
    %v1791 = vunpack.c.l.b16 %v1474
    %v1792 = vunpack.c.h.b16 %v1474
    %v1793 = vunpack.c.l.b16 %v1475
    %v1794 = vunpack.c.h.b16 %v1475
    %v1795 = vunpack.c.l.b16 %v1476
    %v1796 = vunpack.c.h.b16 %v1476
    %v1797 = vunpack.c.l.b16 %v1477
    %v1798 = vunpack.c.h.b16 %v1477
    %v1799 = vunpack.c.l.b16 %v1478
    %v1800 = vunpack.c.h.b16 %v1478
    %v1801 = vunpack.c.l.b16 %v1479
    %v1802 = vunpack.c.h.b16 %v1479
    %v1803 = vunpack.c.l.b16 %v1480
    %v1804 = vunpack.c.h.b16 %v1480
    %v1805 = vunpack.c.l.b16 %v1481
    %v1806 = vunpack.c.h.b16 %v1481
    %v1807 = vunpack.c.l.b16 %v1482
    %v1808 = vunpack.c.h.b16 %v1482
    %v1809 = vunpack.c.l.b16 %v1483
    %v1810 = vunpack.c.h.b16 %v1483
    %v1811 = vunpack.c.l.b16 %v1484
    %v1812 = vunpack.c.h.b16 %v1484
    %v1813 = vunpack.c.l.b16 %v1485
    %v1814 = vunpack.c.h.b16 %v1485
    %v1815 = vunpack.c.l.b16 %v1486
    %v1816 = vunpack.c.h.b16 %v1486
    %v1817 = vunpack.c.l.b16 %v1487
    %v1818 = vunpack.c.h.b16 %v1487
    %v1819 = vunpack.c.l.b16 %v1488
    %v1820 = vunpack.c.h.b16 %v1488
    %v1821 = vunpack.c.l.b16 %v1489
    %v1822 = vunpack.c.h.b16 %v1489
    %v1823 = vunpack.c.l.b16 %v1490
    %v1824 = vunpack.c.h.b16 %v1490
    %v1825 = vunpack.c.l.b16 %v1491
    %v1826 = vunpack.c.h.b16 %v1491
    %v1827 = vunpack.c.l.b16 %v1492
    %v1828 = vunpack.c.h.b16 %v1492
    %v1829 = vunpack.c.l.b16 %v1493
    %v1830 = vunpack.c.h.b16 %v1493
    %v1831 = vunpack.c.l.b16 %v1494
    %v1832 = vunpack.c.h.b16 %v1494
    %v1833 = vunpack.c.l.b16 %v1495
    %v1834 = vunpack.c.h.b16 %v1495
    %v1835 = vunpack.c.l.b16 %v1496
    %v1836 = vunpack.c.h.b16 %v1496
    %v1837 = vunpack.c.l.b16 %v1497
    %v1838 = vunpack.c.h.b16 %v1497
    %v1839 = vunpack.c.l.b16 %v1498
    %v1840 = vunpack.c.h.b16 %v1498
    %v1841 = vunpack.c.l.b16 %v1499
    %v1842 = vunpack.c.h.b16 %v1499
    %v1843 = vunpack.c.l.b16 %v1500
    %v1844 = vunpack.c.h.b16 %v1500
    %v1845 = vunpack.c.l.b16 %v1501
    %v1846 = vunpack.c.h.b16 %v1501
    %v1847 = vunpack.c.l.b16 %v1502
    %v1848 = vunpack.c.h.b16 %v1502
    %v1849 = vunpack.c.l.b16 %v1503
    %v1850 = vunpack.c.h.b16 %v1503
    %v1851 = vunpack.c.l.b16 %v1504
    %v1852 = vunpack.c.h.b16 %v1504
    %v1853 = vunpack.c.l.b16 %v1505
    %v1854 = vunpack.c.h.b16 %v1505
    %v1855 = vunpack.c.l.b16 %v1506
    %v1856 = vunpack.c.h.b16 %v1506
    %v1857 = vunpack.c.l.b16 %v1507
    %v1858 = vunpack.c.h.b16 %v1507
    %v1859 = vunpack.c.l.b16 %v1508
    %v1860 = vunpack.c.h.b16 %v1508
    %v1861 = vunpack.c.l.b16 %v1509
    %v1862 = vunpack.c.h.b16 %v1509
    %v1863 = vunpack.c.l.b16 %v1510
    %v1864 = vunpack.c.h.b16 %v1510
    %v1865 = vunpack.c.l.b16 %v1511
    %v1866 = vunpack.c.h.b16 %v1511
    %v1867 = vunpack.c.l.b16 %v1512
    %v1868 = vunpack.c.h.b16 %v1512
    %v1869 = vunpack.c.l.b16 %v1513
    %v1870 = vunpack.c.h.b16 %v1513
    %v1871 = vunpack.c.l.b16 %v1514
    %v1872 = vunpack.c.h.b16 %v1514
    %v1873 = vunpack.c.l.b16 %v1515
    %v1874 = vunpack.c.h.b16 %v1515
    %v1875 = vunpack.c.l.b16 %v1516
    %v1876 = vunpack.c.h.b16 %v1516
    %v1877 = vunpack.c.l.b16 %v1517
    %v1878 = vunpack.c.h.b16 %v1517
    %v1879 = vunpack.c.l.b16 %v1518
    %v1880 = vunpack.c.h.b16 %v1518
    %v1881 = vunpack.c.l.b16 %v1519
    %v1882 = vunpack.c.h.b16 %v1519
    %v1883 = vunpack.c.l.b16 %v1520
    %v1884 = vunpack.c.h.b16 %v1520
    %v1885 = vunpack.c.l.b16 %v1521
    %v1886 = vunpack.c.h.b16 %v1521
    %v1887 = vunpack.c.l.b16 %v1522
    %v1888 = vunpack.c.h.b16 %v1522
    %v1889 = vunpack.c.l.b16 %v1523
    %v1890 = vunpack.c.h.b16 %v1523
    %v1891 = vunpack.c.l.b16 %v1524
    %v1892 = vunpack.c.h.b16 %v1524
    %v1893 = vunpack.c.l.b16 %v1525
    %v1894 = vunpack.c.h.b16 %v1525
    %v1895 = vunpack.c.l.b16 %v1526
    %v1896 = vunpack.c.h.b16 %v1526
    %v1897 = vunpack.c.l.b16 %v1527
    %v1898 = vunpack.c.h.b16 %v1527
    %v1899 = vunpack.c.l.b16 %v1528
    %v1900 = vunpack.c.h.b16 %v1528
    %v1901 = vunpack.c.l.b16 %v1529
    %v1902 = vunpack.c.h.b16 %v1529
    %v1903 = vunpack.c.l.b16 %v1530
    %v1904 = vunpack.c.h.b16 %v1530
    %v1905 = vunpack.c.l.b16 %v1531
    %v1906 = vunpack.c.h.b16 %v1531
    %v1907 = vunpack.c.l.b16 %v1532
    %v1908 = vunpack.c.h.b16 %v1532
    %v1909 = vunpack.c.l.b16 %v1533
    %v1910 = vunpack.c.h.b16 %v1533
    %v1911 = vunpack.c.l.b16 %v1534
    %v1912 = vunpack.c.h.b16 %v1534
    %v1913 = vunpack.c.l.b16 %v1535
    %v1914 = vunpack.c.h.b16 %v1535
    %v1915 = vunpack.c.l.b16 %v1536
    %v1916 = vunpack.c.h.b16 %v1536
    %v1917 = vunpack.c.l.b16 %v1537
    %v1918 = vunpack.c.h.b16 %v1537
    %v1919 = vunpack.c.l.b16 %v1538
    %v1920 = vunpack.c.h.b16 %v1538
    %v1921 = vunpack.c.l.b16 %v1539
    %v1922 = vunpack.c.h.b16 %v1539
    %v1923 = vunpack.c.l.b16 %v1540
    %v1924 = vunpack.c.h.b16 %v1540
    %v1925 = vunpack.c.l.b16 %v1541
    %v1926 = vunpack.c.h.b16 %v1541
    %v1927 = vunpack.c.l.b16 %v1542
    %v1928 = vunpack.c.h.b16 %v1542
    %v1929 = vunpack.c.l.b16 %v1543
    %v1930 = vunpack.c.h.b16 %v1543
    %v1931 = vunpack.c.l.b16 %v1544
    %v1932 = vunpack.c.h.b16 %v1544
    %v1933 = vunpack.c.l.b16 %v1545
    %v1934 = vunpack.c.h.b16 %v1545
    %v1935 = vunpack.c.l.b16 %v1546
    %v1936 = vunpack.c.h.b16 %v1546
    %v1937 = vunpack.c.l.b16 %v1547
    %v1938 = vunpack.c.h.b16 %v1547
    %v1939 = vunpack.c.l.b16 %v1548
    %v1940 = vunpack.c.h.b16 %v1548
    %v1941 = vunpack.c.l.b16 %v1549
    %v1942 = vunpack.c.h.b16 %v1549
    %v1943 = vunpack.c.l.b16 %v1550
    %v1944 = vunpack.c.h.b16 %v1550
    %v1945 = vunpack.c.l.b16 %v1551
    %v1946 = vunpack.c.h.b16 %v1551
    %v1947 = vunpack.c.l.b16 %v1552
    %v1948 = vunpack.c.h.b16 %v1552
    %v1949 = vunpack.c.l.b16 %v1553
    %v1950 = vunpack.c.h.b16 %v1553
    %v1951 = vunpack.c.l.b16 %v1554
    %v1952 = vunpack.c.h.b16 %v1554
    %v1953 = vunpack.c.l.b16 %v1555
    %v1954 = vunpack.c.h.b16 %v1555
    %v1955 = vunpack.c.l.b16 %v1556
    %v1956 = vunpack.c.h.b16 %v1556
    %v1957 = vunpack.c.l.b16 %v1557
    %v1958 = vunpack.c.h.b16 %v1557
    %v1959 = vunpack.c.l.b16 %v1558
    %v1960 = vunpack.c.h.b16 %v1558
    %v1961 = vunpack.c.l.b16 %v1559
    %v1962 = vunpack.c.h.b16 %v1559
    %v1963 = vunpack.c.l.b16 %v1560
    %v1964 = vunpack.c.h.b16 %v1560
    %v1965 = vunpack.c.l.b16 %v1561
    %v1966 = vunpack.c.h.b16 %v1561
    %v1967 = vunpack.c.l.b16 %v1562
    %v1968 = vunpack.c.h.b16 %v1562
    %v1969 = vpack.c.b16 %v1717, %v1713
    %v1970 = vpack.c.b16 %v1718, %v1714
    %v1971 = vpack.c.b16 %v1719, %v1715
    %v1972 = vpack.c.b16 %v1720, %v1716
    %v1973 = vpack.c.b16 %v1725, %v1721
    %v1974 = vpack.c.b16 %v1726, %v1722
    %v1975 = vpack.c.b16 %v1727, %v1723
    %v1976 = vpack.c.b16 %v1728, %v1724
    %v1977 = vpack.c.b16 %v1733, %v1729
    %v1978 = vpack.c.b16 %v1734, %v1730
    %v1979 = vpack.c.b16 %v1735, %v1731
    %v1980 = vpack.c.b16 %v1736, %v1732
    %v1981 = vpack.c.b16 %v1741, %v1737
    %v1982 = vpack.c.b16 %v1742, %v1738
    %v1983 = vpack.c.b16 %v1743, %v1739
    %v1984 = vpack.c.b16 %v1744, %v1740
    %v1985 = vpack.c.b16 %v1749, %v1745
    %v1986 = vpack.c.b16 %v1750, %v1746
    %v1987 = vpack.c.b16 %v1751, %v1747
    %v1988 = vpack.c.b16 %v1752, %v1748
    %v1989 = vpack.c.b16 %v1757, %v1753
    %v1990 = vpack.c.b16 %v1758, %v1754
    %v1991 = vpack.c.b16 %v1759, %v1755
    %v1992 = vpack.c.b16 %v1760, %v1756
    %v1993 = vpack.c.b16 %v1765, %v1761
    %v1994 = vpack.c.b16 %v1766, %v1762
    %v1995 = vpack.c.b16 %v1767, %v1763
    %v1996 = vpack.c.b16 %v1768, %v1764
    %v1997 = vpack.c.b16 %v1773, %v1769
    %v1998 = vpack.c.b16 %v1774, %v1770
    %v1999 = vpack.c.b16 %v1775, %v1771
    %v2000 = vpack.c.b16 %v1776, %v1772
    %v2001 = vpack.c.b16 %v1781, %v1777
    %v2002 = vpack.c.b16 %v1782, %v1778
    %v2003 = vpack.c.b16 %v1783, %v1779
    %v2004 = vpack.c.b16 %v1784, %v1780
    %v2005 = vpack.c.b16 %v1789, %v1785
    %v2006 = vpack.c.b16 %v1790, %v1786
    %v2007 = vpack.c.b16 %v1791, %v1787
    %v2008 = vpack.c.b16 %v1792, %v1788
    %v2009 = vpack.c.b16 %v1797, %v1793
    %v2010 = vpack.c.b16 %v1798, %v1794
    %v2011 = vpack.c.b16 %v1799, %v1795
    %v2012 = vpack.c.b16 %v1800, %v1796
    %v2013 = vpack.c.b16 %v1805, %v1801
    %v2014 = vpack.c.b16 %v1806, %v1802
    %v2015 = vpack.c.b16 %v1807, %v1803
    %v2016 = vpack.c.b16 %v1808, %v1804
    %v2017 = vpack.c.b16 %v1813, %v1809
    %v2018 = vpack.c.b16 %v1814, %v1810
    %v2019 = vpack.c.b16 %v1815, %v1811
    %v2020 = vpack.c.b16 %v1816, %v1812
    %v2021 = vpack.c.b16 %v1821, %v1817
    %v2022 = vpack.c.b16 %v1822, %v1818
    %v2023 = vpack.c.b16 %v1823, %v1819
    %v2024 = vpack.c.b16 %v1824, %v1820
    %v2025 = vpack.c.b16 %v1829, %v1825
    %v2026 = vpack.c.b16 %v1830, %v1826
    %v2027 = vpack.c.b16 %v1831, %v1827
    %v2028 = vpack.c.b16 %v1832, %v1828
    %v2029 = vpack.c.b16 %v1837, %v1833
    %v2030 = vpack.c.b16 %v1838, %v1834
    %v2031 = vpack.c.b16 %v1839, %v1835
    %v2032 = vpack.c.b16 %v1840, %v1836
    %v2033 = vpack.c.b16 %v1845, %v1841
    %v2034 = vpack.c.b16 %v1846, %v1842
    %v2035 = vpack.c.b16 %v1847, %v1843
    %v2036 = vpack.c.b16 %v1848, %v1844
    %v2037 = vpack.c.b16 %v1853, %v1849
    %v2038 = vpack.c.b16 %v1854, %v1850
    %v2039 = vpack.c.b16 %v1855, %v1851
    %v2040 = vpack.c.b16 %v1856, %v1852
    %v2041 = vpack.c.b16 %v1861, %v1857
    %v2042 = vpack.c.b16 %v1862, %v1858
    %v2043 = vpack.c.b16 %v1863, %v1859
    %v2044 = vpack.c.b16 %v1864, %v1860
    %v2045 = vpack.c.b16 %v1869, %v1865
    %v2046 = vpack.c.b16 %v1870, %v1866
    %v2047 = vpack.c.b16 %v1871, %v1867
    %v2048 = vpack.c.b16 %v1872, %v1868
    %v2049 = vpack.c.b16 %v1877, %v1873
    %v2050 = vpack.c.b16 %v1878, %v1874
    %v2051 = vpack.c.b16 %v1879, %v1875
    %v2052 = vpack.c.b16 %v1880, %v1876
    %v2053 = vpack.c.b16 %v1885, %v1881
    %v2054 = vpack.c.b16 %v1886, %v1882
    %v2055 = vpack.c.b16 %v1887, %v1883
    %v2056 = vpack.c.b16 %v1888, %v1884
    %v2057 = vpack.c.b16 %v1893, %v1889
    %v2058 = vpack.c.b16 %v1894, %v1890
    %v2059 = vpack.c.b16 %v1895, %v1891
    %v2060 = vpack.c.b16 %v1896, %v1892
    %v2061 = vpack.c.b16 %v1901, %v1897
    %v2062 = vpack.c.b16 %v1902, %v1898
    %v2063 = vpack.c.b16 %v1903, %v1899
    %v2064 = vpack.c.b16 %v1904, %v1900
    %v2065 = vpack.c.b16 %v1909, %v1905
    %v2066 = vpack.c.b16 %v1910, %v1906
    %v2067 = vpack.c.b16 %v1911, %v1907
    %v2068 = vpack.c.b16 %v1912, %v1908
    %v2069 = vpack.c.b16 %v1917, %v1913
    %v2070 = vpack.c.b16 %v1918, %v1914
    %v2071 = vpack.c.b16 %v1919, %v1915
    %v2072 = vpack.c.b16 %v1920, %v1916
    %v2073 = vpack.c.b16 %v1925, %v1921
    %v2074 = vpack.c.b16 %v1926, %v1922
    %v2075 = vpack.c.b16 %v1927, %v1923
    %v2076 = vpack.c.b16 %v1928, %v1924
    %v2077 = vpack.c.b16 %v1933, %v1929
    %v2078 = vpack.c.b16 %v1934, %v1930
    %v2079 = vpack.c.b16 %v1935, %v1931
    %v2080 = vpack.c.b16 %v1936, %v1932
    %v2081 = vpack.c.b16 %v1941, %v1937
    %v2082 = vpack.c.b16 %v1942, %v1938
    %v2083 = vpack.c.b16 %v1943, %v1939
    %v2084 = vpack.c.b16 %v1944, %v1940
    %v2085 = vpack.c.b16 %v1949, %v1945
    %v2086 = vpack.c.b16 %v1950, %v1946
    %v2087 = vpack.c.b16 %v1951, %v1947
    %v2088 = vpack.c.b16 %v1952, %v1948
    %v2089 = vpack.c.b16 %v1957, %v1953
    %v2090 = vpack.c.b16 %v1958, %v1954
    %v2091 = vpack.c.b16 %v1959, %v1955
    %v2092 = vpack.c.b16 %v1960, %v1956
    %v2093 = vpack.c.b16 %v1965, %v1961
    %v2094 = vpack.c.b16 %v1966, %v1962
    %v2095 = vpack.c.b16 %v1967, %v1963
    %v2096 = vpack.c.b16 %v1968, %v1964
    %2225 = vmatprep.subr.bf16.mxu0 %v1998
    %2226 = vmatpush1.bf16.msra.mxu0 %v1997
    %2227 = vmatprep.subr.bf16.mxu0 %v1994
    %2228 = vmatpush1.bf16.msra.mxu0 %v1993
    %2229 = vmatprep.subr.bf16.mxu0 %v1990
    %2230 = vmatpush1.bf16.msra.mxu0 %v1989
    %2231 = vmatprep.subr.bf16.mxu0 %v1986
    %2232 = vmatpush1.bf16.msra.mxu0 %v1985
    %2233 = vmatprep.subr.bf16.mxu0 %v1982
    %2234 = vmatpush1.bf16.msra.mxu0 %v1981
    %2235 = vmatprep.subr.bf16.mxu0 %v1978
    %2236 = vmatpush1.bf16.msra.mxu0 %v1977
    %2237 = vmatprep.subr.bf16.mxu0 %v1974
    %2238 = vmatpush1.bf16.msra.mxu0 %v1973
    %2239 = vmatprep.subr.bf16.mxu0 %v1970
    %2240 = vmatpush1.bf16.msra.mxu0 %v1969
    %2241 = vmatprep.subr.bf16.mxu0 %v2030
    %2242 = vmatpush2.bf16.msra.mxu0 %v2029
    %2243 = vmatprep.subr.bf16.mxu0 %v2026
    %2244 = vmatpush2.bf16.msra.mxu0 %v2025
    %2245 = vmatprep.subr.bf16.mxu0 %v2022
    %2246 = vmatpush2.bf16.msra.mxu0 %v2021
    %2247 = vmatprep.subr.bf16.mxu0 %v2018
    %2248 = vmatpush2.bf16.msra.mxu0 %v2017
    %2249 = vmatprep.subr.bf16.mxu0 %v2014
    %2250 = vmatpush2.bf16.msra.mxu0 %v2013
    %2251 = vmatprep.subr.bf16.mxu0 %v2010
    %2252 = vmatpush2.bf16.msra.mxu0 %v2009
    %2253 = vmatprep.subr.bf16.mxu0 %v2006
    %2254 = vmatpush2.bf16.msra.mxu0 %v2005
    %2255 = vmatprep.subr.bf16.mxu0 %v2002
    %2256 = vmatpush2.bf16.msra.mxu0 %v2001
    %2257 = vmatprep.mubr.bf16.mxu0 %v1432
    %2258 = vmatmul.mubr.bf16.gmra.mxu0 %v1431
    %v2259 = vpop.f32.mrf.mxu0
    %v2260 = vadd.f32 %v1568, %v2259
    %v2261 = vpop.f32.mrf.mxu0
    %v2262 = vadd.f32 %v1572, %v2261
    %v2263 = vpop.f32.mrf.mxu0
    %v2264 = vadd.f32 %v1568, %v2263
    %v2265 = vpop.f32.mrf.mxu0
    %v2266 = vadd.f32 %v1572, %v2265
    %2267 = vdwg.mxu0
    %2268 = vmatprep.subr.bf16.mxu0 %v2062
    %2269 = vmatpush1.bf16.msra.mxu0 %v2061
    %2270 = vmatprep.subr.bf16.mxu0 %v2058
    %2271 = vmatpush1.bf16.msra.mxu0 %v2057
    %2272 = vmatprep.subr.bf16.mxu0 %v2054
    %2273 = vmatpush1.bf16.msra.mxu0 %v2053
    %2274 = vmatprep.subr.bf16.mxu0 %v2050
    %2275 = vmatpush1.bf16.msra.mxu0 %v2049
    %2276 = vmatprep.subr.bf16.mxu0 %v2046
    %2277 = vmatpush1.bf16.msra.mxu0 %v2045
    %2278 = vmatprep.subr.bf16.mxu0 %v2042
    %2279 = vmatpush1.bf16.msra.mxu0 %v2041
    %2280 = vmatprep.subr.bf16.mxu0 %v2038
    %2281 = vmatpush1.bf16.msra.mxu0 %v2037
    %2282 = vmatprep.subr.bf16.mxu0 %v2034
    %2283 = vmatpush1.bf16.msra.mxu0 %v2033
    %2284 = vmatprep.subr.bf16.mxu0 %v2094
    %2285 = vmatpush2.bf16.msra.mxu0 %v2093
    %2286 = vmatprep.subr.bf16.mxu0 %v2090
    %2287 = vmatpush2.bf16.msra.mxu0 %v2089
    %2288 = vmatprep.subr.bf16.mxu0 %v2086
    %2289 = vmatpush2.bf16.msra.mxu0 %v2085
    %2290 = vmatprep.subr.bf16.mxu0 %v2082
    %2291 = vmatpush2.bf16.msra.mxu0 %v2081
    %2292 = vmatprep.subr.bf16.mxu0 %v2078
    %2293 = vmatpush2.bf16.msra.mxu0 %v2077
    %2294 = vmatprep.subr.bf16.mxu0 %v2074
    %2295 = vmatpush2.bf16.msra.mxu0 %v2073
    %2296 = vmatprep.subr.bf16.mxu0 %v2070
    %2297 = vmatpush2.bf16.msra.mxu0 %v2069
    %2298 = vmatprep.subr.bf16.mxu0 %v2066
    %2299 = vmatpush2.bf16.msra.mxu0 %v2065
    %2300 = vmatprep.mubr.bf16.mxu0 %v1434
    %2301 = vmatmul.mubr.bf16.gmra.mxu0 %v1433
    %v2302 = vpop.f32.mrf.mxu0
    %v2303 = vadd.f32 %v2260, %v2302
    %v2304 = vpop.f32.mrf.mxu0
    %v2305 = vadd.f32 %v2262, %v2304
    %v2306 = vpop.f32.mrf.mxu0
    %v2307 = vadd.f32 %v2264, %v2306
    %v2308 = vpop.f32.mrf.mxu0
    %v2309 = vadd.f32 %v2266, %v2308
    %2310 = vdwg.mxu0
    %2311 = vmatprep.subr.bf16.mxu0 %v2000
    %2312 = vmatpush1.bf16.msra.mxu0 %v1999
    %2313 = vmatprep.subr.bf16.mxu0 %v1996
    %2314 = vmatpush1.bf16.msra.mxu0 %v1995
    %2315 = vmatprep.subr.bf16.mxu0 %v1992
    %2316 = vmatpush1.bf16.msra.mxu0 %v1991
    %2317 = vmatprep.subr.bf16.mxu0 %v1988
    %2318 = vmatpush1.bf16.msra.mxu0 %v1987
    %2319 = vmatprep.subr.bf16.mxu0 %v1984
    %2320 = vmatpush1.bf16.msra.mxu0 %v1983
    %2321 = vmatprep.subr.bf16.mxu0 %v1980
    %2322 = vmatpush1.bf16.msra.mxu0 %v1979
    %2323 = vmatprep.subr.bf16.mxu0 %v1976
    %2324 = vmatpush1.bf16.msra.mxu0 %v1975
    %2325 = vmatprep.subr.bf16.mxu0 %v1972
    %2326 = vmatpush1.bf16.msra.mxu0 %v1971
    %2327 = vmatprep.subr.bf16.mxu0 %v2032
    %2328 = vmatpush2.bf16.msra.mxu0 %v2031
    %2329 = vmatprep.subr.bf16.mxu0 %v2028
    %2330 = vmatpush2.bf16.msra.mxu0 %v2027
    %2331 = vmatprep.subr.bf16.mxu0 %v2024
    %2332 = vmatpush2.bf16.msra.mxu0 %v2023
    %2333 = vmatprep.subr.bf16.mxu0 %v2020
    %2334 = vmatpush2.bf16.msra.mxu0 %v2019
    %2335 = vmatprep.subr.bf16.mxu0 %v2016
    %2336 = vmatpush2.bf16.msra.mxu0 %v2015
    %2337 = vmatprep.subr.bf16.mxu0 %v2012
    %2338 = vmatpush2.bf16.msra.mxu0 %v2011
    %2339 = vmatprep.subr.bf16.mxu0 %v2008
    %2340 = vmatpush2.bf16.msra.mxu0 %v2007
    %2341 = vmatprep.subr.bf16.mxu0 %v2004
    %2342 = vmatpush2.bf16.msra.mxu0 %v2003
    %2343 = vmatprep.mubr.bf16.mxu0 %v1432
    %2344 = vmatmul.mubr.bf16.gmra.mxu0 %v1431
    %v2345 = vpop.f32.mrf.mxu0
    %v2346 = vadd.f32 %v1576, %v2345
    %v2347 = vpop.f32.mrf.mxu0
    %v2348 = vadd.f32 %v1580, %v2347
    %v2349 = vpop.f32.mrf.mxu0
    %v2350 = vadd.f32 %v1576, %v2349
    %v2351 = vpop.f32.mrf.mxu0
    %v2352 = vadd.f32 %v1580, %v2351
    %2353 = vdwg.mxu0
    %2354 = vmatprep.subr.bf16.mxu0 %v2064
    %2355 = vmatpush1.bf16.msra.mxu0 %v2063
    %2356 = vmatprep.subr.bf16.mxu0 %v2060
    %2357 = vmatpush1.bf16.msra.mxu0 %v2059
    %2358 = vmatprep.subr.bf16.mxu0 %v2056
    %2359 = vmatpush1.bf16.msra.mxu0 %v2055
    %2360 = vmatprep.subr.bf16.mxu0 %v2052
    %2361 = vmatpush1.bf16.msra.mxu0 %v2051
    %2362 = vmatprep.subr.bf16.mxu0 %v2048
    %2363 = vmatpush1.bf16.msra.mxu0 %v2047
    %2364 = vmatprep.subr.bf16.mxu0 %v2044
    %2365 = vmatpush1.bf16.msra.mxu0 %v2043
    %2366 = vmatprep.subr.bf16.mxu0 %v2040
    %2367 = vmatpush1.bf16.msra.mxu0 %v2039
    %2368 = vmatprep.subr.bf16.mxu0 %v2036
    %2369 = vmatpush1.bf16.msra.mxu0 %v2035
    %2370 = vmatprep.subr.bf16.mxu0 %v2096
    %2371 = vmatpush2.bf16.msra.mxu0 %v2095
    %2372 = vmatprep.subr.bf16.mxu0 %v2092
    %2373 = vmatpush2.bf16.msra.mxu0 %v2091
    %2374 = vmatprep.subr.bf16.mxu0 %v2088
    %2375 = vmatpush2.bf16.msra.mxu0 %v2087
    %2376 = vmatprep.subr.bf16.mxu0 %v2084
    %2377 = vmatpush2.bf16.msra.mxu0 %v2083
    %2378 = vmatprep.subr.bf16.mxu0 %v2080
    %2379 = vmatpush2.bf16.msra.mxu0 %v2079
    %2380 = vmatprep.subr.bf16.mxu0 %v2076
    %2381 = vmatpush2.bf16.msra.mxu0 %v2075
    %2382 = vmatprep.subr.bf16.mxu0 %v2072
    %2383 = vmatpush2.bf16.msra.mxu0 %v2071
    %2384 = vmatprep.subr.bf16.mxu0 %v2068
    %2385 = vmatpush2.bf16.msra.mxu0 %v2067
    %2386 = vmatprep.mubr.bf16.mxu0 %v1434
    %2387 = vmatmul.mubr.bf16.gmra.mxu0 %v1433
    %v2388 = vpop.f32.mrf.mxu0
    %v2389 = vadd.f32 %v2346, %v2388
    %v2390 = vpop.f32.mrf.mxu0
    %v2391 = vadd.f32 %v2348, %v2390
    %v2392 = vpop.f32.mrf.mxu0
    %v2393 = vadd.f32 %v2350, %v2392
    %v2394 = vpop.f32.mrf.mxu0
    %v2395 = vadd.f32 %v2352, %v2394
    %2396 = vdwg.mxu0
    %vm2397 = vcmp.gt.f32.partialorder %v2303, 0.0
    %vm2398 = vcmp.gt.f32.partialorder %v2305, 0.0
    %vm2399 = vcmp.gt.f32.partialorder %v2389, 0.0
    %vm2400 = vcmp.gt.f32.partialorder %v2391, 0.0
    %vm2401 = vcmp.gt.f32.partialorder %v2307, 0.0
    %vm2402 = vcmp.gt.f32.partialorder %v2309, 0.0
    %vm2403 = vcmp.gt.f32.partialorder %v2393, 0.0
    %vm2404 = vcmp.gt.f32.partialorder %v2395, 0.0
    %v2405 = vmul.f32 %v2303, 0.2
    %v2406 = vmul.f32 %v2305, 0.2
    %v2407 = vmul.f32 %v2389, 0.2
    %v2408 = vmul.f32 %v2391, 0.2
    %v2409 = vmul.f32 %v2307, 0.2
    %v2410 = vmul.f32 %v2309, 0.2
    %v2411 = vmul.f32 %v2393, 0.2
    %v2412 = vmul.f32 %v2395, 0.2
    %v2413 = vsel %vm2397, %v2303, %v2405
    %v2414 = vsel %vm2398, %v2305, %v2406
    %v2415 = vsel %vm2399, %v2389, %v2407
    %v2416 = vsel %vm2400, %v2391, %v2408
    %v2417 = vsel %vm2401, %v2307, %v2409
    %v2418 = vsel %vm2402, %v2309, %v2410
    %v2419 = vsel %vm2403, %v2393, %v2411
    %v2420 = vsel %vm2404, %v2395, %v2412
    %v2421 = vld [vmem:[%s9] sm:$0xf]
    %s2422 = sld [smem:[#allocation2]]
    %v2423 = vstv %s2422
    %v2425 = vlaneseq
    %v2426 = vshrl.u32 %v2425, 7
    %v2427 = vsub.s32 0, %v2426
    %v2428 = vrot.slane %v2421, %v2427
    %v2429 = vlaneseq
    %v2430 = vshrl.u32 %v2429, 7
    %v2431 = vsub.s32 1, %v2430
    %v2432 = vrot.slane %v2421, %v2431
    %v2433 = vlaneseq
    %v2434 = vshrl.u32 %v2433, 7
    %v2435 = vsub.s32 2, %v2434
    %v2436 = vrot.slane %v2421, %v2435
    %v2437 = vlaneseq
    %v2438 = vshrl.u32 %v2437, 7
    %v2439 = vsub.s32 3, %v2438
    %v2440 = vrot.slane %v2421, %v2439
    %2445 = vmatprep.subr.mxu0 0.0
    %2446 = vmatpush1.xpose.msra.mxu0 0.0
    %2447 = vmatprep.subr.mxu0 0.0
    %2448 = vmatpush1.xpose.msra.mxu0 0.0
    %2449 = vmatprep.subr.mxu0 0.0
    %2450 = vmatpush1.xpose.msra.mxu0 0.0
    %2451 = vmatprep.subr.mxu0 0.0
    %2452 = vmatpush1.xpose.msra.mxu0 0.0
    %2453 = vmatprep.subr.mxu0 0.0
    %2454 = vmatpush1.xpose.msra.mxu0 0.0
    %2455 = vmatprep.subr.mxu0 0.0
    %2456 = vmatpush1.xpose.msra.mxu0 0.0
    %2457 = vmatprep.subr.mxu0 0.0
    %2458 = vmatpush1.xpose.msra.mxu0 0.0
    %2459 = vmatprep.subr.mxu0 0.0
    %2460 = vmatpush1.xpose.msra.mxu0 0.0
    %2461 = vmatprep.subr.mxu0 0.0
    %2462 = vmatpush1.xpose.msra.mxu0 0.0
    %2463 = vmatprep.subr.mxu0 0.0
    %2464 = vmatpush1.xpose.msra.mxu0 0.0
    %2465 = vmatprep.subr.mxu0 0.0
    %2466 = vmatpush1.xpose.msra.mxu0 0.0
    %2467 = vmatprep.subr.mxu0 0.0
    %2468 = vmatpush1.xpose.msra.mxu0 0.0
    %2469 = vmatprep.subr.mxu0 0.0
    %2470 = vmatpush1.xpose.msra.mxu0 0.0
    %2471 = vmatprep.subr.mxu0 0.0
    %2472 = vmatpush1.xpose.msra.mxu0 0.0
    %2473 = vmatprep.subr.mxu0 %v2418
    %2474 = vmatpush1.xpose.msra.mxu0 %v2417
    %2475 = vmatprep.subr.mxu0 %v2414
    %2476 = vmatpush1.xpose.msra.mxu0 %v2413
    %2477 = vmatprep.subr.mxu0 0.0
    %2478 = vmatpush2.xpose.msra.mxu0 0.0
    %2479 = vmatprep.subr.mxu0 0.0
    %2480 = vmatpush2.xpose.msra.mxu0 0.0
    %2481 = vmatprep.subr.mxu0 0.0
    %2482 = vmatpush2.xpose.msra.mxu0 0.0
    %2483 = vmatprep.subr.mxu0 0.0
    %2484 = vmatpush2.xpose.msra.mxu0 0.0
    %2485 = vmatprep.subr.mxu0 0.0
    %2486 = vmatpush2.xpose.msra.mxu0 0.0
    %2487 = vmatprep.subr.mxu0 0.0
    %2488 = vmatpush2.xpose.msra.mxu0 0.0
    %2489 = vmatprep.subr.mxu0 0.0
    %2490 = vmatpush2.xpose.msra.mxu0 0.0
    %2491 = vmatprep.subr.mxu0 0.0
    %2492 = vmatpush2.xpose.msra.mxu0 0.0
    %2493 = vmatprep.subr.mxu0 0.0
    %2494 = vmatpush2.xpose.msra.mxu0 0.0
    %2495 = vmatprep.subr.mxu0 0.0
    %2496 = vmatpush2.xpose.msra.mxu0 0.0
    %2497 = vmatprep.subr.mxu0 0.0
    %2498 = vmatpush2.xpose.msra.mxu0 0.0
    %2499 = vmatprep.subr.mxu0 0.0
    %2500 = vmatpush2.xpose.msra.mxu0 0.0
    %2501 = vmatprep.subr.mxu0 0.0
    %2502 = vmatpush2.xpose.msra.mxu0 0.0
    %2503 = vmatprep.subr.mxu0 0.0
    %2504 = vmatpush2.xpose.msra.mxu0 0.0
    %2505 = vmatprep.subr.mxu0 0.0
    %2506 = vmatpush2.xpose.msra.mxu0 0.0
    %2507 = vmatprep.subr.mxu0 0.0
    %2508 = vmatpush2.xpose.msra.mxu0 0.0
    %2509 = vmatprep.mubr.f32.mxu0 %v2432
    %2510 = vmatmul.mubr.f32.gmra.mxu0 %v2428
    %v2511 = vpop.f32.mrf.mxu0
    %v2512 = vadd.f32 %v2423, %v2511
    %v2513 = vpop.f32.mrf.mxu0
    %2514 = vdwg.mxu0
    %2515 = vmatprep.subr.mxu0 0.0
    %2516 = vmatpush1.xpose.msra.mxu0 0.0
    %2517 = vmatprep.subr.mxu0 0.0
    %2518 = vmatpush1.xpose.msra.mxu0 0.0
    %2519 = vmatprep.subr.mxu0 0.0
    %2520 = vmatpush1.xpose.msra.mxu0 0.0
    %2521 = vmatprep.subr.mxu0 0.0
    %2522 = vmatpush1.xpose.msra.mxu0 0.0
    %2523 = vmatprep.subr.mxu0 0.0
    %2524 = vmatpush1.xpose.msra.mxu0 0.0
    %2525 = vmatprep.subr.mxu0 0.0
    %2526 = vmatpush1.xpose.msra.mxu0 0.0
    %2527 = vmatprep.subr.mxu0 0.0
    %2528 = vmatpush1.xpose.msra.mxu0 0.0
    %2529 = vmatprep.subr.mxu0 0.0
    %2530 = vmatpush1.xpose.msra.mxu0 0.0
    %2531 = vmatprep.subr.mxu0 0.0
    %2532 = vmatpush1.xpose.msra.mxu0 0.0
    %2533 = vmatprep.subr.mxu0 0.0
    %2534 = vmatpush1.xpose.msra.mxu0 0.0
    %2535 = vmatprep.subr.mxu0 0.0
    %2536 = vmatpush1.xpose.msra.mxu0 0.0
    %2537 = vmatprep.subr.mxu0 0.0
    %2538 = vmatpush1.xpose.msra.mxu0 0.0
    %2539 = vmatprep.subr.mxu0 0.0
    %2540 = vmatpush1.xpose.msra.mxu0 0.0
    %2541 = vmatprep.subr.mxu0 0.0
    %2542 = vmatpush1.xpose.msra.mxu0 0.0
    %2543 = vmatprep.subr.mxu0 %v2420
    %2544 = vmatpush1.xpose.msra.mxu0 %v2419
    %2545 = vmatprep.subr.mxu0 %v2416
    %2546 = vmatpush1.xpose.msra.mxu0 %v2415
    %2547 = vmatprep.subr.mxu0 0.0
    %2548 = vmatpush2.xpose.msra.mxu0 0.0
    %2549 = vmatprep.subr.mxu0 0.0
    %2550 = vmatpush2.xpose.msra.mxu0 0.0
    %2551 = vmatprep.subr.mxu0 0.0
    %2552 = vmatpush2.xpose.msra.mxu0 0.0
    %2553 = vmatprep.subr.mxu0 0.0
    %2554 = vmatpush2.xpose.msra.mxu0 0.0
    %2555 = vmatprep.subr.mxu0 0.0
    %2556 = vmatpush2.xpose.msra.mxu0 0.0
    %2557 = vmatprep.subr.mxu0 0.0
    %2558 = vmatpush2.xpose.msra.mxu0 0.0
    %2559 = vmatprep.subr.mxu0 0.0
    %2560 = vmatpush2.xpose.msra.mxu0 0.0
    %2561 = vmatprep.subr.mxu0 0.0
    %2562 = vmatpush2.xpose.msra.mxu0 0.0
    %2563 = vmatprep.subr.mxu0 0.0
    %2564 = vmatpush2.xpose.msra.mxu0 0.0
    %2565 = vmatprep.subr.mxu0 0.0
    %2566 = vmatpush2.xpose.msra.mxu0 0.0
    %2567 = vmatprep.subr.mxu0 0.0
    %2568 = vmatpush2.xpose.msra.mxu0 0.0
    %2569 = vmatprep.subr.mxu0 0.0
    %2570 = vmatpush2.xpose.msra.mxu0 0.0
    %2571 = vmatprep.subr.mxu0 0.0
    %2572 = vmatpush2.xpose.msra.mxu0 0.0
    %2573 = vmatprep.subr.mxu0 0.0
    %2574 = vmatpush2.xpose.msra.mxu0 0.0
    %2575 = vmatprep.subr.mxu0 0.0
    %2576 = vmatpush2.xpose.msra.mxu0 0.0
    %2577 = vmatprep.subr.mxu0 0.0
    %2578 = vmatpush2.xpose.msra.mxu0 0.0
    %2579 = vmatprep.mubr.f32.mxu0 %v2440
    %2580 = vmatmul.mubr.f32.gmra.mxu0 %v2436
    %v2581 = vpop.f32.mrf.mxu0
    %v2582 = vadd.f32 %v2512, %v2581
    %v2583 = vpop.f32.mrf.mxu0
    %2584 = vdwg.mxu0
    %v2585 = vld [vmem:[%s1] sm:$0xff]
    %v2586 = vld [vmem:[%s1 + $0x8] sm:$0xff]
    %v2587 = vlaneseq
    %v2588 = vshrl.u32 %v2587, 7
    %v2589 = vsub.s32 0, %v2588
    %v2590 = vrot.slane %v2582, %v2589
    %vm2591 = vcmp.gt.f32.partialorder %v2585, 0.0
    %vm2592 = vcmp.gt.f32.partialorder %v2586, 0.0
    %v2593 = vsel %vm2591, %v2590, -1e+30
    %v2594 = vsel %vm2592, %v2590, -1e+30
    %v2595 = vsel %vm64, %v2593, -inf
    %2596 = vmax.xlane.f32.xlu0 %v2595
    %v2597 = vpop.xlane.xlu0 %2596
    %v2598 = vsel %vm64, %v2594, -inf
    %2599 = vmax.xlane.f32.xlu0 %v2598
    %v2600 = vpop.xlane.xlu0 %2599
    %v2601 = vsub.f32 %v2590, %v2597
    %v2602 = vsub.f32 %v2590, %v2600
    %v2603 = vmul.f32 %v2601, 1.442695
    %v2604 = vpow.pop %v2603
    %v2605 = vmul.f32 %v2602, 1.442695
    %v2606 = vpow.pop %v2605
    %v2607 = vsel %vm2591, %v2604, 0.0
    %v2608 = vsel %vm2592, %v2606, 0.0
    %v2609 = vsel %vm64, %v2607, 0.0
    %2610 = vadd.xlane.f32.xlu0 %v2609
    %v2611 = vpop.xlane.xlu0 %2610
    %v2612 = vsel %vm64, %v2608, 0.0
    %2613 = vadd.xlane.f32.xlu0 %v2612
    %v2614 = vpop.xlane.xlu0 %2613
    %v2615 = vlaneseq
    %v2616 = vshrl.u32 %v2615, 7
    %v2617 = vadd.s32 %v2616, 8
    %v2618 = vlaneseq
    %v2619 = vand.u32 %v2618, 127
    %vm2620 = vcmp.eq.s32.totalorder %v2616, %v2619
    %vm2621 = vcmp.eq.s32.totalorder %v2617, %v2619
    %v2622 = vsel %vm2620, %v2607, 0.0
    %v2623 = vsel %vm2621, %v2608, 0.0
    %v2624 = vsel %vm64, %v2622, 0.0
    %2625 = vadd.xlane.f32.xlu0 %v2624
    %v2626 = vpop.xlane.xlu0 %2625
    %v2627 = vsel %vm64, %v2623, 0.0
    %2628 = vadd.xlane.f32.xlu0 %v2627
    %v2629 = vpop.xlane.xlu0 %2628
    %v2630 = vrcp.pop %v2611
    %v2631 = vmul.f32 %v2626, %v2630
    %v2632 = vrcp.pop %v2614
    %v2633 = vmul.f32 %v2629, %v2632
    %v2634 = vmul.f32 %v1423, %v2631
    %v2635 = vmul.f32 %v1424, %v2631
    %v2636 = vmul.f32 %v1425, %v2631
    %v2637 = vmul.f32 %v1426, %v2631
    %v2638 = vmul.f32 %v1427, %v2633
    %v2639 = vmul.f32 %v1428, %v2633
    %v2640 = vmul.f32 %v1429, %v2633
    %v2641 = vmul.f32 %v1430, %v2633
    %v2642 = vpack.c.bf16 %v2638, %v2634
    %v2643 = vpack.c.bf16 %v2639, %v2635
    %v2644 = vpack.c.bf16 %v2640, %v2636
    %v2645 = vpack.c.bf16 %v2641, %v2637
    %v2646 = vld [vmem:[%s3] sm:$0xff]
    %v2647 = vld [vmem:[%s3 + $0x8] sm:$0xff]
    %v2648 = vld [vmem:[%s3 + $0x10] sm:$0xff]
    %v2649 = vld [vmem:[%s3 + $0x18] sm:$0xff]
    %v2650 = vld [vmem:[%s3 + $0x20] sm:$0xff]
    %v2651 = vld [vmem:[%s3 + $0x28] sm:$0xff]
    %v2652 = vld [vmem:[%s3 + $0x30] sm:$0xff]
    %v2653 = vld [vmem:[%s3 + $0x38] sm:$0xff]
    %v2654 = vld [vmem:[%s3 + $0x40] sm:$0xff]
    %v2655 = vld [vmem:[%s3 + $0x48] sm:$0xff]
    %v2656 = vld [vmem:[%s3 + $0x50] sm:$0xff]
    %v2657 = vld [vmem:[%s3 + $0x58] sm:$0xff]
    %v2658 = vld [vmem:[%s3 + $0x60] sm:$0xff]
    %v2659 = vld [vmem:[%s3 + $0x68] sm:$0xff]
    %v2660 = vld [vmem:[%s3 + $0x70] sm:$0xff]
    %v2661 = vld [vmem:[%s3 + $0x78] sm:$0xff]
    %v2662 = vld [vmem:[%s3 + $0x80] sm:$0xff]
    %v2663 = vld [vmem:[%s3 + $0x88] sm:$0xff]
    %v2664 = vld [vmem:[%s3 + $0x90] sm:$0xff]
    %v2665 = vld [vmem:[%s3 + $0x98] sm:$0xff]
    %v2666 = vld [vmem:[%s3 + $0xa0] sm:$0xff]
    %v2667 = vld [vmem:[%s3 + $0xa8] sm:$0xff]
    %v2668 = vld [vmem:[%s3 + $0xb0] sm:$0xff]
    %v2669 = vld [vmem:[%s3 + $0xb8] sm:$0xff]
    %v2670 = vld [vmem:[%s3 + $0xc0] sm:$0xff]
    %v2671 = vld [vmem:[%s3 + $0xc8] sm:$0xff]
    %v2672 = vld [vmem:[%s3 + $0xd0] sm:$0xff]
    %v2673 = vld [vmem:[%s3 + $0xd8] sm:$0xff]
    %v2674 = vld [vmem:[%s3 + $0xe0] sm:$0xff]
    %v2675 = vld [vmem:[%s3 + $0xe8] sm:$0xff]
    %v2676 = vld [vmem:[%s3 + $0xf0] sm:$0xff]
    %v2677 = vld [vmem:[%s3 + $0xf8] sm:$0xff]
    %v2678 = vld [vmem:[%s3 + $0x100] sm:$0xff]
    %v2679 = vld [vmem:[%s3 + $0x108] sm:$0xff]
    %v2680 = vld [vmem:[%s3 + $0x110] sm:$0xff]
    %v2681 = vld [vmem:[%s3 + $0x118] sm:$0xff]
    %v2682 = vld [vmem:[%s3 + $0x120] sm:$0xff]
    %v2683 = vld [vmem:[%s3 + $0x128] sm:$0xff]
    %v2684 = vld [vmem:[%s3 + $0x130] sm:$0xff]
    %v2685 = vld [vmem:[%s3 + $0x138] sm:$0xff]
    %v2686 = vld [vmem:[%s3 + $0x140] sm:$0xff]
    %v2687 = vld [vmem:[%s3 + $0x148] sm:$0xff]
    %v2688 = vld [vmem:[%s3 + $0x150] sm:$0xff]
    %v2689 = vld [vmem:[%s3 + $0x158] sm:$0xff]
    %v2690 = vld [vmem:[%s3 + $0x160] sm:$0xff]
    %v2691 = vld [vmem:[%s3 + $0x168] sm:$0xff]
    %v2692 = vld [vmem:[%s3 + $0x170] sm:$0xff]
    %v2693 = vld [vmem:[%s3 + $0x178] sm:$0xff]
    %v2694 = vld [vmem:[%s3 + $0x180] sm:$0xff]
    %v2695 = vld [vmem:[%s3 + $0x188] sm:$0xff]
    %v2696 = vld [vmem:[%s3 + $0x190] sm:$0xff]
    %v2697 = vld [vmem:[%s3 + $0x198] sm:$0xff]
    %v2698 = vld [vmem:[%s3 + $0x1a0] sm:$0xff]
    %v2699 = vld [vmem:[%s3 + $0x1a8] sm:$0xff]
    %v2700 = vld [vmem:[%s3 + $0x1b0] sm:$0xff]
    %v2701 = vld [vmem:[%s3 + $0x1b8] sm:$0xff]
    %v2702 = vld [vmem:[%s3 + $0x1c0] sm:$0xff]
    %v2703 = vld [vmem:[%s3 + $0x1c8] sm:$0xff]
    %v2704 = vld [vmem:[%s3 + $0x1d0] sm:$0xff]
    %v2705 = vld [vmem:[%s3 + $0x1d8] sm:$0xff]
    %v2706 = vld [vmem:[%s3 + $0x1e0] sm:$0xff]
    %v2707 = vld [vmem:[%s3 + $0x1e8] sm:$0xff]
    %v2708 = vld [vmem:[%s3 + $0x1f0] sm:$0xff]
    %v2709 = vld [vmem:[%s3 + $0x1f8] sm:$0xff]
    %v2710 = vld [vmem:[%s3 + $0x200] sm:$0xff]
    %v2711 = vld [vmem:[%s3 + $0x208] sm:$0xff]
    %v2712 = vld [vmem:[%s3 + $0x210] sm:$0xff]
    %v2713 = vld [vmem:[%s3 + $0x218] sm:$0xff]
    %v2714 = vld [vmem:[%s3 + $0x220] sm:$0xff]
    %v2715 = vld [vmem:[%s3 + $0x228] sm:$0xff]
    %v2716 = vld [vmem:[%s3 + $0x230] sm:$0xff]
    %v2717 = vld [vmem:[%s3 + $0x238] sm:$0xff]
    %v2718 = vld [vmem:[%s3 + $0x240] sm:$0xff]
    %v2719 = vld [vmem:[%s3 + $0x248] sm:$0xff]
    %v2720 = vld [vmem:[%s3 + $0x250] sm:$0xff]
    %v2721 = vld [vmem:[%s3 + $0x258] sm:$0xff]
    %v2722 = vld [vmem:[%s3 + $0x260] sm:$0xff]
    %v2723 = vld [vmem:[%s3 + $0x268] sm:$0xff]
    %v2724 = vld [vmem:[%s3 + $0x270] sm:$0xff]
    %v2725 = vld [vmem:[%s3 + $0x278] sm:$0xff]
    %v2726 = vld [vmem:[%s3 + $0x280] sm:$0xff]
    %v2727 = vld [vmem:[%s3 + $0x288] sm:$0xff]
    %v2728 = vld [vmem:[%s3 + $0x290] sm:$0xff]
    %v2729 = vld [vmem:[%s3 + $0x298] sm:$0xff]
    %v2730 = vld [vmem:[%s3 + $0x2a0] sm:$0xff]
    %v2731 = vld [vmem:[%s3 + $0x2a8] sm:$0xff]
    %v2732 = vld [vmem:[%s3 + $0x2b0] sm:$0xff]
    %v2733 = vld [vmem:[%s3 + $0x2b8] sm:$0xff]
    %v2734 = vld [vmem:[%s3 + $0x2c0] sm:$0xff]
    %v2735 = vld [vmem:[%s3 + $0x2c8] sm:$0xff]
    %v2736 = vld [vmem:[%s3 + $0x2d0] sm:$0xff]
    %v2737 = vld [vmem:[%s3 + $0x2d8] sm:$0xff]
    %v2738 = vld [vmem:[%s3 + $0x2e0] sm:$0xff]
    %v2739 = vld [vmem:[%s3 + $0x2e8] sm:$0xff]
    %v2740 = vld [vmem:[%s3 + $0x2f0] sm:$0xff]
    %v2741 = vld [vmem:[%s3 + $0x2f8] sm:$0xff]
    %v2742 = vld [vmem:[%s3 + $0x300] sm:$0xff]
    %v2743 = vld [vmem:[%s3 + $0x308] sm:$0xff]
    %v2744 = vld [vmem:[%s3 + $0x310] sm:$0xff]
    %v2745 = vld [vmem:[%s3 + $0x318] sm:$0xff]
    %v2746 = vld [vmem:[%s3 + $0x320] sm:$0xff]
    %v2747 = vld [vmem:[%s3 + $0x328] sm:$0xff]
    %v2748 = vld [vmem:[%s3 + $0x330] sm:$0xff]
    %v2749 = vld [vmem:[%s3 + $0x338] sm:$0xff]
    %v2750 = vld [vmem:[%s3 + $0x340] sm:$0xff]
    %v2751 = vld [vmem:[%s3 + $0x348] sm:$0xff]
    %v2752 = vld [vmem:[%s3 + $0x350] sm:$0xff]
    %v2753 = vld [vmem:[%s3 + $0x358] sm:$0xff]
    %v2754 = vld [vmem:[%s3 + $0x360] sm:$0xff]
    %v2755 = vld [vmem:[%s3 + $0x368] sm:$0xff]
    %v2756 = vld [vmem:[%s3 + $0x370] sm:$0xff]
    %v2757 = vld [vmem:[%s3 + $0x378] sm:$0xff]
    %v2758 = vld [vmem:[%s3 + $0x380] sm:$0xff]
    %v2759 = vld [vmem:[%s3 + $0x388] sm:$0xff]
    %v2760 = vld [vmem:[%s3 + $0x390] sm:$0xff]
    %v2761 = vld [vmem:[%s3 + $0x398] sm:$0xff]
    %v2762 = vld [vmem:[%s3 + $0x3a0] sm:$0xff]
    %v2763 = vld [vmem:[%s3 + $0x3a8] sm:$0xff]
    %v2764 = vld [vmem:[%s3 + $0x3b0] sm:$0xff]
    %v2765 = vld [vmem:[%s3 + $0x3b8] sm:$0xff]
    %v2766 = vld [vmem:[%s3 + $0x3c0] sm:$0xff]
    %v2767 = vld [vmem:[%s3 + $0x3c8] sm:$0xff]
    %v2768 = vld [vmem:[%s3 + $0x3d0] sm:$0xff]
    %v2769 = vld [vmem:[%s3 + $0x3d8] sm:$0xff]
    %v2770 = vld [vmem:[%s3 + $0x3e0] sm:$0xff]
    %v2771 = vld [vmem:[%s3 + $0x3e8] sm:$0xff]
    %v2772 = vld [vmem:[%s3 + $0x3f0] sm:$0xff]
    %v2773 = vld [vmem:[%s3 + $0x3f8] sm:$0xff]
    %v2774 = vld [vmem:[%s4] sm:$0xf]
    %v2776 = vlaneseq
    %v2777 = vshrl.u32 %v2776, 7
    %v2778 = vsub.s32 0, %v2777
    %v2779 = vrot.slane %v2774, %v2778
    %v2780 = vlaneseq
    %v2781 = vshrl.u32 %v2780, 7
    %v2782 = vsub.s32 1, %v2781
    %v2783 = vrot.slane %v2774, %v2782
    %v2784 = vlaneseq
    %v2785 = vshrl.u32 %v2784, 7
    %v2786 = vsub.s32 2, %v2785
    %v2787 = vrot.slane %v2774, %v2786
    %v2788 = vlaneseq
    %v2789 = vshrl.u32 %v2788, 7
    %v2790 = vsub.s32 3, %v2789
    %v2791 = vrot.slane %v2774, %v2790
    %v2924 = vunpack.c.l.b16 %v2646
    %v2925 = vunpack.c.h.b16 %v2646
    %v2926 = vunpack.c.l.b16 %v2647
    %v2927 = vunpack.c.h.b16 %v2647
    %v2928 = vunpack.c.l.b16 %v2648
    %v2929 = vunpack.c.h.b16 %v2648
    %v2930 = vunpack.c.l.b16 %v2649
    %v2931 = vunpack.c.h.b16 %v2649
    %v2932 = vunpack.c.l.b16 %v2650
    %v2933 = vunpack.c.h.b16 %v2650
    %v2934 = vunpack.c.l.b16 %v2651
    %v2935 = vunpack.c.h.b16 %v2651
    %v2936 = vunpack.c.l.b16 %v2652
    %v2937 = vunpack.c.h.b16 %v2652
    %v2938 = vunpack.c.l.b16 %v2653
    %v2939 = vunpack.c.h.b16 %v2653
    %v2940 = vunpack.c.l.b16 %v2654
    %v2941 = vunpack.c.h.b16 %v2654
    %v2942 = vunpack.c.l.b16 %v2655
    %v2943 = vunpack.c.h.b16 %v2655
    %v2944 = vunpack.c.l.b16 %v2656
    %v2945 = vunpack.c.h.b16 %v2656
    %v2946 = vunpack.c.l.b16 %v2657
    %v2947 = vunpack.c.h.b16 %v2657
    %v2948 = vunpack.c.l.b16 %v2658
    %v2949 = vunpack.c.h.b16 %v2658
    %v2950 = vunpack.c.l.b16 %v2659
    %v2951 = vunpack.c.h.b16 %v2659
    %v2952 = vunpack.c.l.b16 %v2660
    %v2953 = vunpack.c.h.b16 %v2660
    %v2954 = vunpack.c.l.b16 %v2661
    %v2955 = vunpack.c.h.b16 %v2661
    %v2956 = vunpack.c.l.b16 %v2662
    %v2957 = vunpack.c.h.b16 %v2662
    %v2958 = vunpack.c.l.b16 %v2663
    %v2959 = vunpack.c.h.b16 %v2663
    %v2960 = vunpack.c.l.b16 %v2664
    %v2961 = vunpack.c.h.b16 %v2664
    %v2962 = vunpack.c.l.b16 %v2665
    %v2963 = vunpack.c.h.b16 %v2665
    %v2964 = vunpack.c.l.b16 %v2666
    %v2965 = vunpack.c.h.b16 %v2666
    %v2966 = vunpack.c.l.b16 %v2667
    %v2967 = vunpack.c.h.b16 %v2667
    %v2968 = vunpack.c.l.b16 %v2668
    %v2969 = vunpack.c.h.b16 %v2668
    %v2970 = vunpack.c.l.b16 %v2669
    %v2971 = vunpack.c.h.b16 %v2669
    %v2972 = vunpack.c.l.b16 %v2670
    %v2973 = vunpack.c.h.b16 %v2670
    %v2974 = vunpack.c.l.b16 %v2671
    %v2975 = vunpack.c.h.b16 %v2671
    %v2976 = vunpack.c.l.b16 %v2672
    %v2977 = vunpack.c.h.b16 %v2672
    %v2978 = vunpack.c.l.b16 %v2673
    %v2979 = vunpack.c.h.b16 %v2673
    %v2980 = vunpack.c.l.b16 %v2674
    %v2981 = vunpack.c.h.b16 %v2674
    %v2982 = vunpack.c.l.b16 %v2675
    %v2983 = vunpack.c.h.b16 %v2675
    %v2984 = vunpack.c.l.b16 %v2676
    %v2985 = vunpack.c.h.b16 %v2676
    %v2986 = vunpack.c.l.b16 %v2677
    %v2987 = vunpack.c.h.b16 %v2677
    %v2988 = vunpack.c.l.b16 %v2678
    %v2989 = vunpack.c.h.b16 %v2678
    %v2990 = vunpack.c.l.b16 %v2679
    %v2991 = vunpack.c.h.b16 %v2679
    %v2992 = vunpack.c.l.b16 %v2680
    %v2993 = vunpack.c.h.b16 %v2680
    %v2994 = vunpack.c.l.b16 %v2681
    %v2995 = vunpack.c.h.b16 %v2681
    %v2996 = vunpack.c.l.b16 %v2682
    %v2997 = vunpack.c.h.b16 %v2682
    %v2998 = vunpack.c.l.b16 %v2683
    %v2999 = vunpack.c.h.b16 %v2683
    %v3000 = vunpack.c.l.b16 %v2684
    %v3001 = vunpack.c.h.b16 %v2684
    %v3002 = vunpack.c.l.b16 %v2685
    %v3003 = vunpack.c.h.b16 %v2685
    %v3004 = vunpack.c.l.b16 %v2686
    %v3005 = vunpack.c.h.b16 %v2686
    %v3006 = vunpack.c.l.b16 %v2687
    %v3007 = vunpack.c.h.b16 %v2687
    %v3008 = vunpack.c.l.b16 %v2688
    %v3009 = vunpack.c.h.b16 %v2688
    %v3010 = vunpack.c.l.b16 %v2689
    %v3011 = vunpack.c.h.b16 %v2689
    %v3012 = vunpack.c.l.b16 %v2690
    %v3013 = vunpack.c.h.b16 %v2690
    %v3014 = vunpack.c.l.b16 %v2691
    %v3015 = vunpack.c.h.b16 %v2691
    %v3016 = vunpack.c.l.b16 %v2692
    %v3017 = vunpack.c.h.b16 %v2692
    %v3018 = vunpack.c.l.b16 %v2693
    %v3019 = vunpack.c.h.b16 %v2693
    %v3020 = vunpack.c.l.b16 %v2694
    %v3021 = vunpack.c.h.b16 %v2694
    %v3022 = vunpack.c.l.b16 %v2695
    %v3023 = vunpack.c.h.b16 %v2695
    %v3024 = vunpack.c.l.b16 %v2696
    %v3025 = vunpack.c.h.b16 %v2696
    %v3026 = vunpack.c.l.b16 %v2697
    %v3027 = vunpack.c.h.b16 %v2697
    %v3028 = vunpack.c.l.b16 %v2698
    %v3029 = vunpack.c.h.b16 %v2698
    %v3030 = vunpack.c.l.b16 %v2699
    %v3031 = vunpack.c.h.b16 %v2699
    %v3032 = vunpack.c.l.b16 %v2700
    %v3033 = vunpack.c.h.b16 %v2700
    %v3034 = vunpack.c.l.b16 %v2701
    %v3035 = vunpack.c.h.b16 %v2701
    %v3036 = vunpack.c.l.b16 %v2702
    %v3037 = vunpack.c.h.b16 %v2702
    %v3038 = vunpack.c.l.b16 %v2703
    %v3039 = vunpack.c.h.b16 %v2703
    %v3040 = vunpack.c.l.b16 %v2704
    %v3041 = vunpack.c.h.b16 %v2704
    %v3042 = vunpack.c.l.b16 %v2705
    %v3043 = vunpack.c.h.b16 %v2705
    %v3044 = vunpack.c.l.b16 %v2706
    %v3045 = vunpack.c.h.b16 %v2706
    %v3046 = vunpack.c.l.b16 %v2707
    %v3047 = vunpack.c.h.b16 %v2707
    %v3048 = vunpack.c.l.b16 %v2708
    %v3049 = vunpack.c.h.b16 %v2708
    %v3050 = vunpack.c.l.b16 %v2709
    %v3051 = vunpack.c.h.b16 %v2709
    %v3052 = vunpack.c.l.b16 %v2710
    %v3053 = vunpack.c.h.b16 %v2710
    %v3054 = vunpack.c.l.b16 %v2711
    %v3055 = vunpack.c.h.b16 %v2711
    %v3056 = vunpack.c.l.b16 %v2712
    %v3057 = vunpack.c.h.b16 %v2712
    %v3058 = vunpack.c.l.b16 %v2713
    %v3059 = vunpack.c.h.b16 %v2713
    %v3060 = vunpack.c.l.b16 %v2714
    %v3061 = vunpack.c.h.b16 %v2714
    %v3062 = vunpack.c.l.b16 %v2715
    %v3063 = vunpack.c.h.b16 %v2715
    %v3064 = vunpack.c.l.b16 %v2716
    %v3065 = vunpack.c.h.b16 %v2716
    %v3066 = vunpack.c.l.b16 %v2717
    %v3067 = vunpack.c.h.b16 %v2717
    %v3068 = vunpack.c.l.b16 %v2718
    %v3069 = vunpack.c.h.b16 %v2718
    %v3070 = vunpack.c.l.b16 %v2719
    %v3071 = vunpack.c.h.b16 %v2719
    %v3072 = vunpack.c.l.b16 %v2720
    %v3073 = vunpack.c.h.b16 %v2720
    %v3074 = vunpack.c.l.b16 %v2721
    %v3075 = vunpack.c.h.b16 %v2721
    %v3076 = vunpack.c.l.b16 %v2722
    %v3077 = vunpack.c.h.b16 %v2722
    %v3078 = vunpack.c.l.b16 %v2723
    %v3079 = vunpack.c.h.b16 %v2723
    %v3080 = vunpack.c.l.b16 %v2724
    %v3081 = vunpack.c.h.b16 %v2724
    %v3082 = vunpack.c.l.b16 %v2725
    %v3083 = vunpack.c.h.b16 %v2725
    %v3084 = vunpack.c.l.b16 %v2726
    %v3085 = vunpack.c.h.b16 %v2726
    %v3086 = vunpack.c.l.b16 %v2727
    %v3087 = vunpack.c.h.b16 %v2727
    %v3088 = vunpack.c.l.b16 %v2728
    %v3089 = vunpack.c.h.b16 %v2728
    %v3090 = vunpack.c.l.b16 %v2729
    %v3091 = vunpack.c.h.b16 %v2729
    %v3092 = vunpack.c.l.b16 %v2730
    %v3093 = vunpack.c.h.b16 %v2730
    %v3094 = vunpack.c.l.b16 %v2731
    %v3095 = vunpack.c.h.b16 %v2731
    %v3096 = vunpack.c.l.b16 %v2732
    %v3097 = vunpack.c.h.b16 %v2732
    %v3098 = vunpack.c.l.b16 %v2733
    %v3099 = vunpack.c.h.b16 %v2733
    %v3100 = vunpack.c.l.b16 %v2734
    %v3101 = vunpack.c.h.b16 %v2734
    %v3102 = vunpack.c.l.b16 %v2735
    %v3103 = vunpack.c.h.b16 %v2735
    %v3104 = vunpack.c.l.b16 %v2736
    %v3105 = vunpack.c.h.b16 %v2736
    %v3106 = vunpack.c.l.b16 %v2737
    %v3107 = vunpack.c.h.b16 %v2737
    %v3108 = vunpack.c.l.b16 %v2738
    %v3109 = vunpack.c.h.b16 %v2738
    %v3110 = vunpack.c.l.b16 %v2739
    %v3111 = vunpack.c.h.b16 %v2739
    %v3112 = vunpack.c.l.b16 %v2740
    %v3113 = vunpack.c.h.b16 %v2740
    %v3114 = vunpack.c.l.b16 %v2741
    %v3115 = vunpack.c.h.b16 %v2741
    %v3116 = vunpack.c.l.b16 %v2742
    %v3117 = vunpack.c.h.b16 %v2742
    %v3118 = vunpack.c.l.b16 %v2743
    %v3119 = vunpack.c.h.b16 %v2743
    %v3120 = vunpack.c.l.b16 %v2744
    %v3121 = vunpack.c.h.b16 %v2744
    %v3122 = vunpack.c.l.b16 %v2745
    %v3123 = vunpack.c.h.b16 %v2745
    %v3124 = vunpack.c.l.b16 %v2746
    %v3125 = vunpack.c.h.b16 %v2746
    %v3126 = vunpack.c.l.b16 %v2747
    %v3127 = vunpack.c.h.b16 %v2747
    %v3128 = vunpack.c.l.b16 %v2748
    %v3129 = vunpack.c.h.b16 %v2748
    %v3130 = vunpack.c.l.b16 %v2749
    %v3131 = vunpack.c.h.b16 %v2749
    %v3132 = vunpack.c.l.b16 %v2750
    %v3133 = vunpack.c.h.b16 %v2750
    %v3134 = vunpack.c.l.b16 %v2751
    %v3135 = vunpack.c.h.b16 %v2751
    %v3136 = vunpack.c.l.b16 %v2752
    %v3137 = vunpack.c.h.b16 %v2752
    %v3138 = vunpack.c.l.b16 %v2753
    %v3139 = vunpack.c.h.b16 %v2753
    %v3140 = vunpack.c.l.b16 %v2754
    %v3141 = vunpack.c.h.b16 %v2754
    %v3142 = vunpack.c.l.b16 %v2755
    %v3143 = vunpack.c.h.b16 %v2755
    %v3144 = vunpack.c.l.b16 %v2756
    %v3145 = vunpack.c.h.b16 %v2756
    %v3146 = vunpack.c.l.b16 %v2757
    %v3147 = vunpack.c.h.b16 %v2757
    %v3148 = vunpack.c.l.b16 %v2758
    %v3149 = vunpack.c.h.b16 %v2758
    %v3150 = vunpack.c.l.b16 %v2759
    %v3151 = vunpack.c.h.b16 %v2759
    %v3152 = vunpack.c.l.b16 %v2760
    %v3153 = vunpack.c.h.b16 %v2760
    %v3154 = vunpack.c.l.b16 %v2761
    %v3155 = vunpack.c.h.b16 %v2761
    %v3156 = vunpack.c.l.b16 %v2762
    %v3157 = vunpack.c.h.b16 %v2762
    %v3158 = vunpack.c.l.b16 %v2763
    %v3159 = vunpack.c.h.b16 %v2763
    %v3160 = vunpack.c.l.b16 %v2764
    %v3161 = vunpack.c.h.b16 %v2764
    %v3162 = vunpack.c.l.b16 %v2765
    %v3163 = vunpack.c.h.b16 %v2765
    %v3164 = vunpack.c.l.b16 %v2766
    %v3165 = vunpack.c.h.b16 %v2766
    %v3166 = vunpack.c.l.b16 %v2767
    %v3167 = vunpack.c.h.b16 %v2767
    %v3168 = vunpack.c.l.b16 %v2768
    %v3169 = vunpack.c.h.b16 %v2768
    %v3170 = vunpack.c.l.b16 %v2769
    %v3171 = vunpack.c.h.b16 %v2769
    %v3172 = vunpack.c.l.b16 %v2770
    %v3173 = vunpack.c.h.b16 %v2770
    %v3174 = vunpack.c.l.b16 %v2771
    %v3175 = vunpack.c.h.b16 %v2771
    %v3176 = vunpack.c.l.b16 %v2772
    %v3177 = vunpack.c.h.b16 %v2772
    %v3178 = vunpack.c.l.b16 %v2773
    %v3179 = vunpack.c.h.b16 %v2773
    %v3180 = vpack.c.b16 %v2928, %v2924
    %v3181 = vpack.c.b16 %v2929, %v2925
    %v3182 = vpack.c.b16 %v2930, %v2926
    %v3183 = vpack.c.b16 %v2931, %v2927
    %v3184 = vpack.c.b16 %v2936, %v2932
    %v3185 = vpack.c.b16 %v2937, %v2933
    %v3186 = vpack.c.b16 %v2938, %v2934
    %v3187 = vpack.c.b16 %v2939, %v2935
    %v3188 = vpack.c.b16 %v2944, %v2940
    %v3189 = vpack.c.b16 %v2945, %v2941
    %v3190 = vpack.c.b16 %v2946, %v2942
    %v3191 = vpack.c.b16 %v2947, %v2943
    %v3192 = vpack.c.b16 %v2952, %v2948
    %v3193 = vpack.c.b16 %v2953, %v2949
    %v3194 = vpack.c.b16 %v2954, %v2950
    %v3195 = vpack.c.b16 %v2955, %v2951
    %v3196 = vpack.c.b16 %v2960, %v2956
    %v3197 = vpack.c.b16 %v2961, %v2957
    %v3198 = vpack.c.b16 %v2962, %v2958
    %v3199 = vpack.c.b16 %v2963, %v2959
    %v3200 = vpack.c.b16 %v2968, %v2964
    %v3201 = vpack.c.b16 %v2969, %v2965
    %v3202 = vpack.c.b16 %v2970, %v2966
    %v3203 = vpack.c.b16 %v2971, %v2967
    %v3204 = vpack.c.b16 %v2976, %v2972
    %v3205 = vpack.c.b16 %v2977, %v2973
    %v3206 = vpack.c.b16 %v2978, %v2974
    %v3207 = vpack.c.b16 %v2979, %v2975
    %v3208 = vpack.c.b16 %v2984, %v2980
    %v3209 = vpack.c.b16 %v2985, %v2981
    %v3210 = vpack.c.b16 %v2986, %v2982
    %v3211 = vpack.c.b16 %v2987, %v2983
    %v3212 = vpack.c.b16 %v2992, %v2988
    %v3213 = vpack.c.b16 %v2993, %v2989
    %v3214 = vpack.c.b16 %v2994, %v2990
    %v3215 = vpack.c.b16 %v2995, %v2991
    %v3216 = vpack.c.b16 %v3000, %v2996
    %v3217 = vpack.c.b16 %v3001, %v2997
    %v3218 = vpack.c.b16 %v3002, %v2998
    %v3219 = vpack.c.b16 %v3003, %v2999
    %v3220 = vpack.c.b16 %v3008, %v3004
    %v3221 = vpack.c.b16 %v3009, %v3005
    %v3222 = vpack.c.b16 %v3010, %v3006
    %v3223 = vpack.c.b16 %v3011, %v3007
    %v3224 = vpack.c.b16 %v3016, %v3012
    %v3225 = vpack.c.b16 %v3017, %v3013
    %v3226 = vpack.c.b16 %v3018, %v3014
    %v3227 = vpack.c.b16 %v3019, %v3015
    %v3228 = vpack.c.b16 %v3024, %v3020
    %v3229 = vpack.c.b16 %v3025, %v3021
    %v3230 = vpack.c.b16 %v3026, %v3022
    %v3231 = vpack.c.b16 %v3027, %v3023
    %v3232 = vpack.c.b16 %v3032, %v3028
    %v3233 = vpack.c.b16 %v3033, %v3029
    %v3234 = vpack.c.b16 %v3034, %v3030
    %v3235 = vpack.c.b16 %v3035, %v3031
    %v3236 = vpack.c.b16 %v3040, %v3036
    %v3237 = vpack.c.b16 %v3041, %v3037
    %v3238 = vpack.c.b16 %v3042, %v3038
    %v3239 = vpack.c.b16 %v3043, %v3039
    %v3240 = vpack.c.b16 %v3048, %v3044
    %v3241 = vpack.c.b16 %v3049, %v3045
    %v3242 = vpack.c.b16 %v3050, %v3046
    %v3243 = vpack.c.b16 %v3051, %v3047
    %v3244 = vpack.c.b16 %v3056, %v3052
    %v3245 = vpack.c.b16 %v3057, %v3053
    %v3246 = vpack.c.b16 %v3058, %v3054
    %v3247 = vpack.c.b16 %v3059, %v3055
    %v3248 = vpack.c.b16 %v3064, %v3060
    %v3249 = vpack.c.b16 %v3065, %v3061
    %v3250 = vpack.c.b16 %v3066, %v3062
    %v3251 = vpack.c.b16 %v3067, %v3063
    %v3252 = vpack.c.b16 %v3072, %v3068
    %v3253 = vpack.c.b16 %v3073, %v3069
    %v3254 = vpack.c.b16 %v3074, %v3070
    %v3255 = vpack.c.b16 %v3075, %v3071
    %v3256 = vpack.c.b16 %v3080, %v3076
    %v3257 = vpack.c.b16 %v3081, %v3077
    %v3258 = vpack.c.b16 %v3082, %v3078
    %v3259 = vpack.c.b16 %v3083, %v3079
    %v3260 = vpack.c.b16 %v3088, %v3084
    %v3261 = vpack.c.b16 %v3089, %v3085
    %v3262 = vpack.c.b16 %v3090, %v3086
    %v3263 = vpack.c.b16 %v3091, %v3087
    %v3264 = vpack.c.b16 %v3096, %v3092
    %v3265 = vpack.c.b16 %v3097, %v3093
    %v3266 = vpack.c.b16 %v3098, %v3094
    %v3267 = vpack.c.b16 %v3099, %v3095
    %v3268 = vpack.c.b16 %v3104, %v3100
    %v3269 = vpack.c.b16 %v3105, %v3101
    %v3270 = vpack.c.b16 %v3106, %v3102
    %v3271 = vpack.c.b16 %v3107, %v3103
    %v3272 = vpack.c.b16 %v3112, %v3108
    %v3273 = vpack.c.b16 %v3113, %v3109
    %v3274 = vpack.c.b16 %v3114, %v3110
    %v3275 = vpack.c.b16 %v3115, %v3111
    %v3276 = vpack.c.b16 %v3120, %v3116
    %v3277 = vpack.c.b16 %v3121, %v3117
    %v3278 = vpack.c.b16 %v3122, %v3118
    %v3279 = vpack.c.b16 %v3123, %v3119
    %v3280 = vpack.c.b16 %v3128, %v3124
    %v3281 = vpack.c.b16 %v3129, %v3125
    %v3282 = vpack.c.b16 %v3130, %v3126
    %v3283 = vpack.c.b16 %v3131, %v3127
    %v3284 = vpack.c.b16 %v3136, %v3132
    %v3285 = vpack.c.b16 %v3137, %v3133
    %v3286 = vpack.c.b16 %v3138, %v3134
    %v3287 = vpack.c.b16 %v3139, %v3135
    %v3288 = vpack.c.b16 %v3144, %v3140
    %v3289 = vpack.c.b16 %v3145, %v3141
    %v3290 = vpack.c.b16 %v3146, %v3142
    %v3291 = vpack.c.b16 %v3147, %v3143
    %v3292 = vpack.c.b16 %v3152, %v3148
    %v3293 = vpack.c.b16 %v3153, %v3149
    %v3294 = vpack.c.b16 %v3154, %v3150
    %v3295 = vpack.c.b16 %v3155, %v3151
    %v3296 = vpack.c.b16 %v3160, %v3156
    %v3297 = vpack.c.b16 %v3161, %v3157
    %v3298 = vpack.c.b16 %v3162, %v3158
    %v3299 = vpack.c.b16 %v3163, %v3159
    %v3300 = vpack.c.b16 %v3168, %v3164
    %v3301 = vpack.c.b16 %v3169, %v3165
    %v3302 = vpack.c.b16 %v3170, %v3166
    %v3303 = vpack.c.b16 %v3171, %v3167
    %v3304 = vpack.c.b16 %v3176, %v3172
    %v3305 = vpack.c.b16 %v3177, %v3173
    %v3306 = vpack.c.b16 %v3178, %v3174
    %v3307 = vpack.c.b16 %v3179, %v3175
    %3436 = vmatprep.subr.bf16.mxu0 %v3209
    %3437 = vmatpush1.bf16.msra.mxu0 %v3208
    %3438 = vmatprep.subr.bf16.mxu0 %v3205
    %3439 = vmatpush1.bf16.msra.mxu0 %v3204
    %3440 = vmatprep.subr.bf16.mxu0 %v3201
    %3441 = vmatpush1.bf16.msra.mxu0 %v3200
    %3442 = vmatprep.subr.bf16.mxu0 %v3197
    %3443 = vmatpush1.bf16.msra.mxu0 %v3196
    %3444 = vmatprep.subr.bf16.mxu0 %v3193
    %3445 = vmatpush1.bf16.msra.mxu0 %v3192
    %3446 = vmatprep.subr.bf16.mxu0 %v3189
    %3447 = vmatpush1.bf16.msra.mxu0 %v3188
    %3448 = vmatprep.subr.bf16.mxu0 %v3185
    %3449 = vmatpush1.bf16.msra.mxu0 %v3184
    %3450 = vmatprep.subr.bf16.mxu0 %v3181
    %3451 = vmatpush1.bf16.msra.mxu0 %v3180
    %3452 = vmatprep.subr.bf16.mxu0 %v3241
    %3453 = vmatpush2.bf16.msra.mxu0 %v3240
    %3454 = vmatprep.subr.bf16.mxu0 %v3237
    %3455 = vmatpush2.bf16.msra.mxu0 %v3236
    %3456 = vmatprep.subr.bf16.mxu0 %v3233
    %3457 = vmatpush2.bf16.msra.mxu0 %v3232
    %3458 = vmatprep.subr.bf16.mxu0 %v3229
    %3459 = vmatpush2.bf16.msra.mxu0 %v3228
    %3460 = vmatprep.subr.bf16.mxu0 %v3225
    %3461 = vmatpush2.bf16.msra.mxu0 %v3224
    %3462 = vmatprep.subr.bf16.mxu0 %v3221
    %3463 = vmatpush2.bf16.msra.mxu0 %v3220
    %3464 = vmatprep.subr.bf16.mxu0 %v3217
    %3465 = vmatpush2.bf16.msra.mxu0 %v3216
    %3466 = vmatprep.subr.bf16.mxu0 %v3213
    %3467 = vmatpush2.bf16.msra.mxu0 %v3212
    %3468 = vmatprep.mubr.bf16.mxu0 %v2643
    %3469 = vmatmul.mubr.bf16.gmra.mxu0 %v2642
    %v3470 = vpop.f32.mrf.mxu0
    %v3471 = vadd.f32 %v2779, %v3470
    %v3472 = vpop.f32.mrf.mxu0
    %v3473 = vadd.f32 %v2783, %v3472
    %v3474 = vpop.f32.mrf.mxu0
    %v3475 = vadd.f32 %v2779, %v3474
    %v3476 = vpop.f32.mrf.mxu0
    %v3477 = vadd.f32 %v2783, %v3476
    %3478 = vdwg.mxu0
    %3479 = vmatprep.subr.bf16.mxu0 %v3273
    %3480 = vmatpush1.bf16.msra.mxu0 %v3272
    %3481 = vmatprep.subr.bf16.mxu0 %v3269
    %3482 = vmatpush1.bf16.msra.mxu0 %v3268
    %3483 = vmatprep.subr.bf16.mxu0 %v3265
    %3484 = vmatpush1.bf16.msra.mxu0 %v3264
    %3485 = vmatprep.subr.bf16.mxu0 %v3261
    %3486 = vmatpush1.bf16.msra.mxu0 %v3260
    %3487 = vmatprep.subr.bf16.mxu0 %v3257
    %3488 = vmatpush1.bf16.msra.mxu0 %v3256
    %3489 = vmatprep.subr.bf16.mxu0 %v3253
    %3490 = vmatpush1.bf16.msra.mxu0 %v3252
    %3491 = vmatprep.subr.bf16.mxu0 %v3249
    %3492 = vmatpush1.bf16.msra.mxu0 %v3248
    %3493 = vmatprep.subr.bf16.mxu0 %v3245
    %3494 = vmatpush1.bf16.msra.mxu0 %v3244
    %3495 = vmatprep.subr.bf16.mxu0 %v3305
    %3496 = vmatpush2.bf16.msra.mxu0 %v3304
    %3497 = vmatprep.subr.bf16.mxu0 %v3301
    %3498 = vmatpush2.bf16.msra.mxu0 %v3300
    %3499 = vmatprep.subr.bf16.mxu0 %v3297
    %3500 = vmatpush2.bf16.msra.mxu0 %v3296
    %3501 = vmatprep.subr.bf16.mxu0 %v3293
    %3502 = vmatpush2.bf16.msra.mxu0 %v3292
    %3503 = vmatprep.subr.bf16.mxu0 %v3289
    %3504 = vmatpush2.bf16.msra.mxu0 %v3288
    %3505 = vmatprep.subr.bf16.mxu0 %v3285
    %3506 = vmatpush2.bf16.msra.mxu0 %v3284
    %3507 = vmatprep.subr.bf16.mxu0 %v3281
    %3508 = vmatpush2.bf16.msra.mxu0 %v3280
    %3509 = vmatprep.subr.bf16.mxu0 %v3277
    %3510 = vmatpush2.bf16.msra.mxu0 %v3276
    %3511 = vmatprep.mubr.bf16.mxu0 %v2645
    %3512 = vmatmul.mubr.bf16.gmra.mxu0 %v2644
    %v3513 = vpop.f32.mrf.mxu0
    %v3514 = vadd.f32 %v3471, %v3513
    %v3515 = vpop.f32.mrf.mxu0
    %v3516 = vadd.f32 %v3473, %v3515
    %v3517 = vpop.f32.mrf.mxu0
    %v3518 = vadd.f32 %v3475, %v3517
    %v3519 = vpop.f32.mrf.mxu0
    %v3520 = vadd.f32 %v3477, %v3519
    %3521 = vdwg.mxu0
    %3522 = vmatprep.subr.bf16.mxu0 %v3211
    %3523 = vmatpush1.bf16.msra.mxu0 %v3210
    %3524 = vmatprep.subr.bf16.mxu0 %v3207
    %3525 = vmatpush1.bf16.msra.mxu0 %v3206
    %3526 = vmatprep.subr.bf16.mxu0 %v3203
    %3527 = vmatpush1.bf16.msra.mxu0 %v3202
    %3528 = vmatprep.subr.bf16.mxu0 %v3199
    %3529 = vmatpush1.bf16.msra.mxu0 %v3198
    %3530 = vmatprep.subr.bf16.mxu0 %v3195
    %3531 = vmatpush1.bf16.msra.mxu0 %v3194
    %3532 = vmatprep.subr.bf16.mxu0 %v3191
    %3533 = vmatpush1.bf16.msra.mxu0 %v3190
    %3534 = vmatprep.subr.bf16.mxu0 %v3187
    %3535 = vmatpush1.bf16.msra.mxu0 %v3186
    %3536 = vmatprep.subr.bf16.mxu0 %v3183
    %3537 = vmatpush1.bf16.msra.mxu0 %v3182
    %3538 = vmatprep.subr.bf16.mxu0 %v3243
    %3539 = vmatpush2.bf16.msra.mxu0 %v3242
    %3540 = vmatprep.subr.bf16.mxu0 %v3239
    %3541 = vmatpush2.bf16.msra.mxu0 %v3238
    %3542 = vmatprep.subr.bf16.mxu0 %v3235
    %3543 = vmatpush2.bf16.msra.mxu0 %v3234
    %3544 = vmatprep.subr.bf16.mxu0 %v3231
    %3545 = vmatpush2.bf16.msra.mxu0 %v3230
    %3546 = vmatprep.subr.bf16.mxu0 %v3227
    %3547 = vmatpush2.bf16.msra.mxu0 %v3226
    %3548 = vmatprep.subr.bf16.mxu0 %v3223
    %3549 = vmatpush2.bf16.msra.mxu0 %v3222
    %3550 = vmatprep.subr.bf16.mxu0 %v3219
    %3551 = vmatpush2.bf16.msra.mxu0 %v3218
    %3552 = vmatprep.subr.bf16.mxu0 %v3215
    %3553 = vmatpush2.bf16.msra.mxu0 %v3214
    %3554 = vmatprep.mubr.bf16.mxu0 %v2643
    %3555 = vmatmul.mubr.bf16.gmra.mxu0 %v2642
    %v3556 = vpop.f32.mrf.mxu0
    %v3557 = vadd.f32 %v2787, %v3556
    %v3558 = vpop.f32.mrf.mxu0
    %v3559 = vadd.f32 %v2791, %v3558
    %v3560 = vpop.f32.mrf.mxu0
    %v3561 = vadd.f32 %v2787, %v3560
    %v3562 = vpop.f32.mrf.mxu0
    %v3563 = vadd.f32 %v2791, %v3562
    %3564 = vdwg.mxu0
    %3565 = vmatprep.subr.bf16.mxu0 %v3275
    %3566 = vmatpush1.bf16.msra.mxu0 %v3274
    %3567 = vmatprep.subr.bf16.mxu0 %v3271
    %3568 = vmatpush1.bf16.msra.mxu0 %v3270
    %3569 = vmatprep.subr.bf16.mxu0 %v3267
    %3570 = vmatpush1.bf16.msra.mxu0 %v3266
    %3571 = vmatprep.subr.bf16.mxu0 %v3263
    %3572 = vmatpush1.bf16.msra.mxu0 %v3262
    %3573 = vmatprep.subr.bf16.mxu0 %v3259
    %3574 = vmatpush1.bf16.msra.mxu0 %v3258
    %3575 = vmatprep.subr.bf16.mxu0 %v3255
    %3576 = vmatpush1.bf16.msra.mxu0 %v3254
    %3577 = vmatprep.subr.bf16.mxu0 %v3251
    %3578 = vmatpush1.bf16.msra.mxu0 %v3250
    %3579 = vmatprep.subr.bf16.mxu0 %v3247
    %3580 = vmatpush1.bf16.msra.mxu0 %v3246
    %3581 = vmatprep.subr.bf16.mxu0 %v3307
    %3582 = vmatpush2.bf16.msra.mxu0 %v3306
    %3583 = vmatprep.subr.bf16.mxu0 %v3303
    %3584 = vmatpush2.bf16.msra.mxu0 %v3302
    %3585 = vmatprep.subr.bf16.mxu0 %v3299
    %3586 = vmatpush2.bf16.msra.mxu0 %v3298
    %3587 = vmatprep.subr.bf16.mxu0 %v3295
    %3588 = vmatpush2.bf16.msra.mxu0 %v3294
    %3589 = vmatprep.subr.bf16.mxu0 %v3291
    %3590 = vmatpush2.bf16.msra.mxu0 %v3290
    %3591 = vmatprep.subr.bf16.mxu0 %v3287
    %3592 = vmatpush2.bf16.msra.mxu0 %v3286
    %3593 = vmatprep.subr.bf16.mxu0 %v3283
    %3594 = vmatpush2.bf16.msra.mxu0 %v3282
    %3595 = vmatprep.subr.bf16.mxu0 %v3279
    %3596 = vmatpush2.bf16.msra.mxu0 %v3278
    %3597 = vmatprep.mubr.bf16.mxu0 %v2645
    %3598 = vmatmul.mubr.bf16.gmra.mxu0 %v2644
    %v3599 = vpop.f32.mrf.mxu0
    %v3600 = vadd.f32 %v3557, %v3599
    %v3601 = vpop.f32.mrf.mxu0
    %v3602 = vadd.f32 %v3559, %v3601
    %v3603 = vpop.f32.mrf.mxu0
    %v3604 = vadd.f32 %v3561, %v3603
    %v3605 = vpop.f32.mrf.mxu0
    %v3606 = vadd.f32 %v3563, %v3605
    %3607 = vdwg.mxu0
    %v3608 = vadd.f32 %v3514, %v3518
    %v3609 = vrot.slane %v3608, 4
    %v3610 = vadd.f32 %v3608, %v3609
    %v3611 = vrot.slane %v3610, 2
    %v3612 = vadd.f32 %v3610, %v3611
    %v3613 = vrot.slane %v3612, 1
    %v3614 = vadd.f32 %v3612, %v3613
    %v3615 = vadd.f32 %v3516, %v3520
    %v3616 = vrot.slane %v3615, 4
    %v3617 = vadd.f32 %v3615, %v3616
    %v3618 = vrot.slane %v3617, 2
    %v3619 = vadd.f32 %v3617, %v3618
    %v3620 = vrot.slane %v3619, 1
    %v3621 = vadd.f32 %v3619, %v3620
    %v3622 = vadd.f32 %v3600, %v3604
    %v3623 = vrot.slane %v3622, 4
    %v3624 = vadd.f32 %v3622, %v3623
    %v3625 = vrot.slane %v3624, 2
    %v3626 = vadd.f32 %v3624, %v3625
    %v3627 = vrot.slane %v3626, 1
    %v3628 = vadd.f32 %v3626, %v3627
    %v3629 = vadd.f32 %v3602, %v3606
    %v3630 = vrot.slane %v3629, 4
    %v3631 = vadd.f32 %v3629, %v3630
    %v3632 = vrot.slane %v3631, 2
    %v3633 = vadd.f32 %v3631, %v3632
    %v3634 = vrot.slane %v3633, 1
    %v3635 = vadd.f32 %v3633, %v3634
    %v3636 = vmul.f32 %v3614, 0.0625
    %v3637 = vmul.f32 %v3621, 0.0625
    %v3638 = vmul.f32 %v3628, 0.0625
    %v3639 = vmul.f32 %v3635, 0.0625
    %v3640 = vmul.f32 %v3514, %v3514
    %v3641 = vmul.f32 %v3516, %v3516
    %v3642 = vmul.f32 %v3600, %v3600
    %v3643 = vmul.f32 %v3602, %v3602
    %v3644 = vmul.f32 %v3518, %v3518
    %v3645 = vmul.f32 %v3520, %v3520
    %v3646 = vmul.f32 %v3604, %v3604
    %v3647 = vmul.f32 %v3606, %v3606
    %v3648 = vadd.f32 %v3640, %v3644
    %v3649 = vrot.slane %v3648, 4
    %v3650 = vadd.f32 %v3648, %v3649
    %v3651 = vrot.slane %v3650, 2
    %v3652 = vadd.f32 %v3650, %v3651
    %v3653 = vrot.slane %v3652, 1
    %v3654 = vadd.f32 %v3652, %v3653
    %v3655 = vadd.f32 %v3641, %v3645
    %v3656 = vrot.slane %v3655, 4
    %v3657 = vadd.f32 %v3655, %v3656
    %v3658 = vrot.slane %v3657, 2
    %v3659 = vadd.f32 %v3657, %v3658
    %v3660 = vrot.slane %v3659, 1
    %v3661 = vadd.f32 %v3659, %v3660
    %v3662 = vadd.f32 %v3642, %v3646
    %v3663 = vrot.slane %v3662, 4
    %v3664 = vadd.f32 %v3662, %v3663
    %v3665 = vrot.slane %v3664, 2
    %v3666 = vadd.f32 %v3664, %v3665
    %v3667 = vrot.slane %v3666, 1
    %v3668 = vadd.f32 %v3666, %v3667
    %v3669 = vadd.f32 %v3643, %v3647
    %v3670 = vrot.slane %v3669, 4
    %v3671 = vadd.f32 %v3669, %v3670
    %v3672 = vrot.slane %v3671, 2
    %v3673 = vadd.f32 %v3671, %v3672
    %v3674 = vrot.slane %v3673, 1
    %v3675 = vadd.f32 %v3673, %v3674
    %v3676 = vmul.f32 %v3654, 0.0625
    %v3677 = vmul.f32 %v3661, 0.0625
    %v3678 = vmul.f32 %v3668, 0.0625
    %v3679 = vmul.f32 %v3675, 0.0625
    %v3680 = vmul.f32 %v3636, %v3636
    %v3681 = vmul.f32 %v3637, %v3637
    %v3682 = vmul.f32 %v3638, %v3638
    %v3683 = vmul.f32 %v3639, %v3639
    %v3684 = vsub.f32 %v3676, %v3680
    %v3685 = vsub.f32 %v3677, %v3681
    %v3686 = vsub.f32 %v3678, %v3682
    %v3687 = vsub.f32 %v3679, %v3683
    %v3688 = vmax.f32 %v3684, 0.0
    %v3689 = vmax.f32 %v3685, 0.0
    %v3690 = vmax.f32 %v3686, 0.0
    %v3691 = vmax.f32 %v3687, 0.0
    %v3692 = vld [vmem:[%s5] sm:$0xf]
    %v3693 = vadd.f32 %v3688, 1e-05
    %v3694 = vadd.f32 %v3689, 1e-05
    %v3695 = vadd.f32 %v3690, 1e-05
    %v3696 = vadd.f32 %v3691, 1e-05
    %v3697 = vrsqrt.pop %v3693
    %v3698 = vrsqrt.pop %v3694
    %v3699 = vrsqrt.pop %v3695
    %v3700 = vrsqrt.pop %v3696
    %v3705 = vcombine.low %v3697, %v3698
    %v3706 = vcombine.low %v3699, %v3700
    %v3708 = vunpack.c.l.s4 1966171168
    %v3709 = vunpack.c.0.s8 %v3708
    %v3710 = vlaneseq
    %v3711 = vshrl.u32 %v3710, 7
    %v3712 = vsub.s32 %v3709, %v3711
    %v3713 = vrot.slane %v3705, %v3712
    %v3715 = vunpack.c.l.s4 1966171168
    %v3716 = vunpack.c.0.s8 %v3715
    %v3717 = vlaneseq
    %v3718 = vshrl.u32 %v3717, 7
    %v3719 = vsub.s32 %v3716, %v3718
    %v3720 = vrot.slane %v3706, %v3719
    %v3721 = vcombine.low %v3713, %v3720
    %v3723 = vunpack.c.l.s4 1966171168
    %v3724 = vunpack.c.0.s8 %v3723
    %v3725 = vlaneseq
    %v3726 = vshrl.u32 %v3725, 7
    %v3727 = vsub.s32 %v3724, %v3726
    %v3728 = vrot.slane %v3721, %v3727
    %v3730 = vmul.f32 %v3692, %v3728
    %v3732 = vlaneseq
    %v3733 = vshrl.u32 %v3732, 7
    %v3734 = vsub.s32 0, %v3733
    %v3735 = vrot.slane %v3730, %v3734
    %v3736 = vlaneseq
    %v3737 = vshrl.u32 %v3736, 7
    %v3738 = vsub.s32 1, %v3737
    %v3739 = vrot.slane %v3730, %v3738
    %v3740 = vlaneseq
    %v3741 = vshrl.u32 %v3740, 7
    %v3742 = vsub.s32 2, %v3741
    %v3743 = vrot.slane %v3730, %v3742
    %v3744 = vlaneseq
    %v3745 = vshrl.u32 %v3744, 7
    %v3746 = vsub.s32 3, %v3745
    %v3747 = vrot.slane %v3730, %v3746
    %v3752 = vmul.f32 %v3514, %v3735
    %v3753 = vmul.f32 %v3516, %v3739
    %v3754 = vmul.f32 %v3600, %v3743
    %v3755 = vmul.f32 %v3602, %v3747
    %v3756 = vmul.f32 %v3518, %v3735
    %v3757 = vmul.f32 %v3520, %v3739
    %v3758 = vmul.f32 %v3604, %v3743
    %v3759 = vmul.f32 %v3606, %v3747
    %v3760 = vld [vmem:[%s6] sm:$0xf]
    %v3761 = vmul.f32 %v3636, %v3735
    %v3762 = vmul.f32 %v3637, %v3739
    %v3763 = vmul.f32 %v3638, %v3743
    %v3764 = vmul.f32 %v3639, %v3747
    %v3769 = vcombine.low %v3761, %v3762
    %v3770 = vcombine.low %v3763, %v3764
    %v3772 = vunpack.c.l.s4 1966171168
    %v3773 = vunpack.c.0.s8 %v3772
    %v3774 = vlaneseq
    %v3775 = vshrl.u32 %v3774, 7
    %v3776 = vsub.s32 %v3773, %v3775
    %v3777 = vrot.slane %v3769, %v3776
    %v3779 = vunpack.c.l.s4 1966171168
    %v3780 = vunpack.c.0.s8 %v3779
    %v3781 = vlaneseq
    %v3782 = vshrl.u32 %v3781, 7
    %v3783 = vsub.s32 %v3780, %v3782
    %v3784 = vrot.slane %v3770, %v3783
    %v3785 = vcombine.low %v3777, %v3784
    %v3787 = vunpack.c.l.s4 1966171168
    %v3788 = vunpack.c.0.s8 %v3787
    %v3789 = vlaneseq
    %v3790 = vshrl.u32 %v3789, 7
    %v3791 = vsub.s32 %v3788, %v3790
    %v3792 = vrot.slane %v3785, %v3791
    %v3794 = vsub.f32 %v3760, %v3792
    %v3796 = vlaneseq
    %v3797 = vshrl.u32 %v3796, 7
    %v3798 = vsub.s32 0, %v3797
    %v3799 = vrot.slane %v3794, %v3798
    %v3800 = vlaneseq
    %v3801 = vshrl.u32 %v3800, 7
    %v3802 = vsub.s32 1, %v3801
    %v3803 = vrot.slane %v3794, %v3802
    %v3804 = vlaneseq
    %v3805 = vshrl.u32 %v3804, 7
    %v3806 = vsub.s32 2, %v3805
    %v3807 = vrot.slane %v3794, %v3806
    %v3808 = vlaneseq
    %v3809 = vshrl.u32 %v3808, 7
    %v3810 = vsub.s32 3, %v3809
    %v3811 = vrot.slane %v3794, %v3810
    %v3816 = vadd.f32 %v3752, %v3799
    %v3817 = vadd.f32 %v3753, %v3803
    %v3818 = vadd.f32 %v3754, %v3807
    %v3819 = vadd.f32 %v3755, %v3811
    %v3820 = vadd.f32 %v3756, %v3799
    %v3821 = vadd.f32 %v3757, %v3803
    %v3822 = vadd.f32 %v3758, %v3807
    %v3823 = vadd.f32 %v3759, %v3811
    %vm3824 = vcmp.gt.f32.partialorder %v3816, 0.0
    %vm3825 = vcmp.gt.f32.partialorder %v3817, 0.0
    %vm3826 = vcmp.gt.f32.partialorder %v3818, 0.0
    %vm3827 = vcmp.gt.f32.partialorder %v3819, 0.0
    %vm3828 = vcmp.gt.f32.partialorder %v3820, 0.0
    %vm3829 = vcmp.gt.f32.partialorder %v3821, 0.0
    %vm3830 = vcmp.gt.f32.partialorder %v3822, 0.0
    %vm3831 = vcmp.gt.f32.partialorder %v3823, 0.0
    %v3832 = vmul.f32 %v3816, 0.2
    %v3833 = vmul.f32 %v3817, 0.2
    %v3834 = vmul.f32 %v3818, 0.2
    %v3835 = vmul.f32 %v3819, 0.2
    %v3836 = vmul.f32 %v3820, 0.2
    %v3837 = vmul.f32 %v3821, 0.2
    %v3838 = vmul.f32 %v3822, 0.2
    %v3839 = vmul.f32 %v3823, 0.2
    %v3840 = vsel %vm3824, %v3816, %v3832
    %v3841 = vsel %vm3825, %v3817, %v3833
    %v3842 = vsel %vm3826, %v3818, %v3834
    %v3843 = vsel %vm3827, %v3819, %v3835
    %v3844 = vsel %vm3828, %v3820, %v3836
    %v3845 = vsel %vm3829, %v3821, %v3837
    %v3846 = vsel %vm3830, %v3822, %v3838
    %v3847 = vsel %vm3831, %v3823, %v3839
    %3848 = vst [vmem:[#allocation6] sm:$0xff] %v3840
    %3849 = vst [vmem:[#allocation6 + $0x8] sm:$0xff] %v3841
    %3850 = vst [vmem:[#allocation6 + $0x10] sm:$0xff] %v3842
    %3851 = vst [vmem:[#allocation6 + $0x18] sm:$0xff] %v3843
    %3852 = vst [vmem:[#allocation6 + $0x20] sm:$0xff] %v3844
    %3853 = vst [vmem:[#allocation6 + $0x28] sm:$0xff] %v3845
    %3854 = vst [vmem:[#allocation6 + $0x30] sm:$0xff] %v3846
    %3855 = vst [vmem:[#allocation6 + $0x38] sm:$0xff] %v3847
    // Predicated region
    $region50: #{graph_attention_forward.3} parent=1 // pred_check
      _
    $region51: #{graph_attention_forward.3} parent=1 // pred_check_branch
      %3857 = sbr.rel (0) target = $region53
    $region52: #{graph_attention_forward.3} parent=1 // pred_region
      %s3859 = ssub.s32 1024, 1024
      %3860 = vsyncadd [#allocation5], %s3859
      %s3861 = sshll.u32 [#allocation6], 4
      %s3862 = int_to_ptr.vmem [resolvable:$true] %s3861
      %3867 = dma.vmem_to_hbm [thread:$0]  %s3862, 1024, %s11, [#allocation5], 512, 512, 32
    $region53: #{graph_attention_forward.3} parent=1 // pred_fallthru
      _
    // Predicated region
    $region54: #{graph_attention_forward.3} parent=1 // pred_check
      _
    $region55: #{graph_attention_forward.3} parent=1 // pred_check_branch
      %3869 = sbr.rel (0) target = $region57
    $region56: #{graph_attention_forward.3} parent=1 // pred_region
      %3870 = dma.done [#allocation5], 1024
    $region57: #{graph_attention_forward.3} parent=1 // pred_fallthru
      _
    %3871 = vsyncpa [#allocation4], 1
    %3872 = vsyncpa [#allocation5], 1

</llo_original>
